<compile_context>
chip_gen: v7x
topology: tpu7x:2x2x1
jax: 0.10.0
libtpu: 0.0.40
codegen_flags: <defaults>
</compile_context>

<pallas_src>
import math
import numpy as np

import jax
import jax.numpy as jnp
from jax.experimental import pallas as pl
from jax.experimental.pallas import tpu as pltpu

BN_EPS = 1e-5


# ---------------------------------------------------------------------------
# Static (host-side) helpers
# ---------------------------------------------------------------------------
def conv_out_len(L, K, pad, stride=1):
    return (L + 2 * pad - K) // stride + 1


def maxpool_out_len(L):          # MaxPool1d(kernel_size=2, stride=2, padding=1)
    return L // 2 + 1


def adaptive_pool_matrix(L, F):
    """(F, L) matrix P with P @ x == AdaptiveAvgPool1d(F) applied along L."""
    P = np.zeros((F, L), np.float32)
    for i in range(F):
        s = (i * L) // F
        e = ((i + 1) * L + F - 1) // F      # ceil((i+1)*L/F)
        P[i, s:e] = 1.0 / (e - s)
    return P


def adaptive_pool_matrix_blocked(L, F, B):
    """(F*B, B*L) block-diagonal pool matrix for a tile of B samples stacked
    along sublanes; output rows are grouped by pool tap f (then sample b)."""
    P = adaptive_pool_matrix(L, F)
    Pb = np.zeros((F * B, B * L), np.float32)
    for f in range(F):
        for b in range(B):
            Pb[f * B + b, b * L:(b + 1) * L] = P[f]
    return Pb


def flatten_scatter_matrix(F, C):
    """(F, C, F*C) one-hot tensor E so that sum_f pooled[f] @ E[f] equals the
    PyTorch row-major flatten of the (C, F) pooled tensor:
    out[:, c*F + f] = pooled_f[:, c]."""
    E = np.zeros((F, C, F * C), np.float32)
    for f in range(F):
        for c in range(C):
            E[f, c, c * F + f] = 1.0
    return E


# ---------------------------------------------------------------------------
# Fused Pallas kernel (one grid step == one tile of B samples)
# ---------------------------------------------------------------------------
def make_fused_kernel(cfg, B):
    K1 = cfg["kernel_size"]
    PAD1 = K1 // 2
    F = cfg["features_len"]

    def conv_bn_relu(xs, w2d, sb, K, pad):
        """xs: list of B arrays (Lh, C_in); w2d: (K*C_in, C_out); sb: (2, C_out).
        Returns ((B*L_out, C_out), L_out) -- one MXU dot for the whole tile."""
        scale = sb[0:1, :]
        bias = sb[1:2, :]
        Lh, C_in = xs[0].shape
        L_out = Lh + 2 * pad - K + 1
        cols = []
        for xb in xs:
            if pad > 0:
                z = jnp.zeros((pad, C_in), jnp.float32)
                xp = jnp.concatenate([z, xb, z], axis=0)       # zero pad in-kernel
            else:
                xp = xb
            taps = [xp[k:k + L_out, :] for k in range(K)]       # K shifted views
            cols.append(jnp.concatenate(taps, axis=1))          # (L_out, K*C_in)
        im2col = cols[0] if B == 1 else jnp.concatenate(cols, axis=0)
        y = jnp.dot(im2col, w2d, preferred_element_type=jnp.float32)
        return jnp.maximum(y * scale + bias, 0.0), L_out        # folded BN + ReLU

    def maxpool(y_all, L):
        """MaxPool1d(kernel=2, stride=2, padding=1) per sample on the stacked
        (B*L, C) tile; boundary windows handled explicitly (== -inf padding)."""
        Lo = L // 2 + 1
        rows = []
        for b in range(B):
            base = b * L
            rows.append(y_all[base:base + 1, :])                 # max(pad, y[0])
            for j in range(1, Lo):
                i0 = base + 2 * j - 1
                i1 = base + 2 * j
                if 2 * j <= L - 1:
                    rows.append(jnp.maximum(y_all[i0:i0 + 1, :],
                                            y_all[i1:i1 + 1, :]))
                else:
                    rows.append(y_all[i0:i0 + 1, :])             # max(y[-1], pad)
        return jnp.concatenate(rows, axis=0), Lo                 # (B*Lo, C)

    def head(pooled_all, w_ref, bias):
        """pooled_all: (F*B, C) grouped by tap f; w_ref: (F, C, M); bias (1, M)."""
        acc = bias
        for f in range(F):
            acc = acc + jnp.dot(pooled_all[f * B:(f + 1) * B, :], w_ref[f],
                                preferred_element_type=jnp.float32)
        return acc                                               # (B, M)

    def kernel(x_ref,
               w1_ref, sb1_ref, w2_ref, sb2_ref, w3_ref, sb3_ref,
               p1_ref, p2_ref, p3_ref,
               wl_ref, wm_ref, e_ref, wt_ref, hb_ref,
               out_l_ref, out_m_ref, out_t_ref, out_flat_ref):
        # ---- conv_block1 (Dropout is an inference no-op) ----
        xs = [x_ref[b] for b in range(B)]                        # B x (L, C_in)
        h, Lc = conv_bn_relu(xs, w1_ref[...], sb1_ref[...], K1, PAD1)
        h1, L1 = maxpool(h, Lc)                                  # (B*L1, mid)

        # low exit: block-diagonal adaptive pool (one matmul) + batched head
        pooled_l = jnp.dot(p1_ref[...], h1, preferred_element_type=jnp.float32)
        out_l_ref[...] = head(pooled_l, wl_ref, hb_ref[0:1, :])

        # ---- conv_block2 ----
        xs2 = [h1[b * L1:(b + 1) * L1, :] for b in range(B)]
        h, Lc = conv_bn_relu(xs2, w2_ref[...], sb2_ref[...], 8, 4)
        h2, L2 = maxpool(h, Lc)                                  # (B*L2, 2*mid)

        pooled_m = jnp.dot(p2_ref[...], h2, preferred_element_type=jnp.float32)
        out_m_ref[...] = head(pooled_m, wm_ref, hb_ref[1:2, :])

        # ---- conv_block3 ----
        xs3 = [h2[b * L2:(b + 1) * L2, :] for b in range(B)]
        h, Lc = conv_bn_relu(xs3, w3_ref[...], sb3_ref[...], 8, 4)
        h3, _ = maxpool(h, Lc)                                   # (B*L3, final)

        pooled_t = jnp.dot(p3_ref[...], h3, preferred_element_type=jnp.float32)

        # lane-dense x_flat in PyTorch (C, F)-major order: (B, F*final)
        xf = jnp.dot(pooled_t[0:B, :], e_ref[0],
                     preferred_element_type=jnp.float32)
        for f in range(1, F):
            xf = xf + jnp.dot(pooled_t[f * B:(f + 1) * B, :], e_ref[f],
                              preferred_element_type=jnp.float32)
        out_flat_ref[...] = xf
        out_t_ref[...] = jnp.dot(xf, wt_ref[...],
                                 preferred_element_type=jnp.float32) + hb_ref[2:3, :]

    return kernel


# ---------------------------------------------------------------------------
# Wrapper: parameter re-layout (host side, once) + single pallas_call
# ---------------------------------------------------------------------------
def cnn_mul_exit_forward(x_ncl, params, cfg):
    N, C_in, L = x_ncl.shape
    K1 = cfg["kernel_size"]
    pad1 = K1 // 2
    mid = cfg["mid_channels"]
    final = cfg["final_out_channels"]
    F = cfg["features_len"]
    M = cfg["num_classes"]
    assert cfg["stride"] == 1  # TODO(synk): strided conv_block1 not implemented

    # batch tile: whole batch in one grid step for small N, else tiles of 8
    B = N if N <= 8 else 8
    N_pad = ((N + B - 1) // B) * B
    T = N_pad // B

    # static length bookkeeping through the network
    L1 = maxpool_out_len(conv_out_len(L, K1, pad1))
    L2 = maxpool_out_len(conv_out_len(L1, 8, 4))
    L3 = maxpool_out_len(conv_out_len(L2, 8, 4))

    def conv_im2col_w(w):            # (C_out, C_in, K) -> (K*C_in, C_out)
        C_out, Ci, K = w.shape
        return jnp.transpose(w, (2, 1, 0)).reshape(K * Ci, C_out)

    def fold_bn(bn):                 # inference-mode BN fold -> packed (2, C)
        gamma, beta, mean, var = bn
        scale = gamma / jnp.sqrt(var + BN_EPS)
        bias = beta - mean * scale
        return jnp.stack([scale, bias]).astype(jnp.float32)

    def reorder_linear(W, C):        # (M, C*F) -> (F, C, M), matches pool order
        return jnp.transpose(W.reshape(M, C, F), (2, 1, 0))

    w1 = conv_im2col_w(params["conv1"]["w"]); sb1 = fold_bn(params["conv1"]["bn"])
    w2 = conv_im2col_w(params["conv2"]["w"]); sb2 = fold_bn(params["conv2"]["bn"])
    w3 = conv_im2col_w(params["conv3"]["w"]); sb3 = fold_bn(params["conv3"]["bn"])

    p1m = jnp.asarray(adaptive_pool_matrix_blocked(L1, F, B))
    p2m = jnp.asarray(adaptive_pool_matrix_blocked(L2, F, B))
    p3m = jnp.asarray(adaptive_pool_matrix_blocked(L3, F, B))

    wl = reorder_linear(params["lin_low"][0], mid)
    wm = reorder_linear(params["lin_mid"][0], 2 * mid)
    emat = jnp.asarray(flatten_scatter_matrix(F, final))        # (F, final, F*final)
    wt = jnp.transpose(params["lin_top"][0])                    # (F*final, M)
    hb = jnp.stack([params["lin_low"][1], params["lin_mid"][1],
                    params["lin_top"][1]]).astype(jnp.float32)  # (3, M)

    x_nlc = jnp.transpose(x_ncl, (0, 2, 1)).astype(jnp.float32)  # NCL -> NLC
    if N_pad != N:
        x_nlc = jnp.concatenate(
            [x_nlc, jnp.zeros((N_pad - N, L, C_in), jnp.float32)], axis=0)

    kernel = make_fused_kernel(cfg, B)

    def rep(shape):                  # whole-array (replicated) block
        return pl.BlockSpec(shape, lambda t, _r=len(shape): (0,) * _r)

    in_specs = [
        pl.BlockSpec((B, L, C_in), lambda t: (t, 0, 0)),         # x, one tile/step
        rep(w1.shape), rep(sb1.shape),
        rep(w2.shape), rep(sb2.shape),
        rep(w3.shape), rep(sb3.shape),
        rep(p1m.shape), rep(p2m.shape), rep(p3m.shape),
        rep(wl.shape), rep(wm.shape), rep(emat.shape), rep(wt.shape), rep(hb.shape),
    ]
    out_specs = (
        pl.BlockSpec((B, M), lambda t: (t, 0)),
        pl.BlockSpec((B, M), lambda t: (t, 0)),
        pl.BlockSpec((B, M), lambda t: (t, 0)),
        pl.BlockSpec((B, F * final), lambda t: (t, 0)),
    )
    out_shape = (
        jax.ShapeDtypeStruct((N_pad, M), jnp.float32),
        jax.ShapeDtypeStruct((N_pad, M), jnp.float32),
        jax.ShapeDtypeStruct((N_pad, M), jnp.float32),
        jax.ShapeDtypeStruct((N_pad, F * final), jnp.float32),
    )

    out_l, out_m, out_t, x_flat = pl.pallas_call(
        kernel,
        grid=(T,),
        in_specs=in_specs,
        out_specs=out_specs,
        out_shape=out_shape,
        compiler_params=pltpu.CompilerParams(
            dimension_semantics=("parallel",)),
    )(x_nlc, w1, sb1, w2, sb2, w3, sb3, p1m, p2m, p3m, wl, wm, emat, wt, hb)

    return out_l[:N], out_m[:N], out_t[:N], x_flat[:N]


# ---------------------------------------------------------------------------
# Parameter init (deterministic) and a pure-JAX reference for validation
# ---------------------------------------------------------------------------
def init_params(key, cfg):
    C_in = cfg["input_channels"]; mid = cfg["mid_channels"]
    final = cfg["final_out_channels"]; K1 = cfg["kernel_size"]
    F = cfg["features_len"]; M = cfg["num_classes"]
    keys = iter(jax.random.split(key, 32))

    def conv_bn(c_in, c_out, k):
        w = jax.random.normal(next(keys), (c_out, c_in, k), jnp.float32) \
            / math.sqrt(c_in * k)
        gamma = 1.0 + 0.1 * jax.random.normal(next(keys), (c_out,), jnp.float32)
        beta = 0.1 * jax.random.normal(next(keys), (c_out,), jnp.float32)
        mean = 0.1 * jax.random.normal(next(keys), (c_out,), jnp.float32)
        var = 1.0 + 0.1 * jax.random.uniform(next(keys), (c_out,), jnp.float32)
        return {"w": w, "bn": (gamma, beta, mean, var)}

    def linear(in_f):
        W = jax.random.normal(next(keys), (M, in_f), jnp.float32) / math.sqrt(in_f)
        b = 0.1 * jax.random.normal(next(keys), (M,), jnp.float32)
        return (W, b)

    return {
        "conv1": conv_bn(C_in, mid, K1),
        "conv2": conv_bn(mid, 2 * mid, 8),
        "conv3": conv_bn(2 * mid, final, 8),
        "lin_low": linear(F * mid),
        "lin_mid": linear(F * 2 * mid),
        "lin_top": linear(F * final),
    }


def reference_forward(x_ncl, params, cfg):
    """Pure-JAX (non-Pallas) reference mirroring the PyTorch module in eval mode."""
    K1 = cfg["kernel_size"]; F = cfg["features_len"]
    HI = jax.lax.Precision.HIGHEST

    def block(x, p, pad):
        gamma, beta, mean, var = p["bn"]
        y = jax.lax.conv_general_dilated(
            x, p["w"], window_strides=(1,), padding=[(pad, pad)],
            dimension_numbers=("NCH", "OIH", "NCH"), precision=HI)
        scale = gamma / jnp.sqrt(var + BN_EPS)
        y = y * scale[None, :, None] + (beta - mean * scale)[None, :, None]
        y = jnp.maximum(y, 0.0)
        return jax.lax.reduce_window(
            y, -jnp.inf, jax.lax.max,
            window_dimensions=(1, 1, 2), window_strides=(1, 1, 2),
            padding=[(0, 0), (0, 0), (1, 1)])

    def apool_flat(h):
        P = jnp.asarray(adaptive_pool_matrix(h.shape[2], F))
        pooled = jnp.einsum("ncl,fl->ncf", h, P, precision=HI)  # (N, C, F)
        return pooled.reshape(h.shape[0], -1)

    h1 = block(x_ncl, params["conv1"], K1 // 2)
    e_l = apool_flat(h1)
    h2 = block(h1, params["conv2"], 4)
    e_m = apool_flat(h2)
    h3 = block(h2, params["conv3"], 4)
    x_flat = apool_flat(h3)

    Wl, bl = params["lin_low"]; Wm, bm = params["lin_mid"]; Wt, bt = params["lin_top"]
    return (jnp.dot(e_l, Wl.T, precision=HI) + bl,
            jnp.dot(e_m, Wm.T, precision=HI) + bm,
            jnp.dot(x_flat, Wt.T, precision=HI) + bt,
            x_flat)


# ---------------------------------------------------------------------------
if __name__ == "__main__":
    cfg = dict(input_channels=4, mid_channels=8, final_out_channels=32,
               kernel_size=7, stride=1, features_len=4, num_classes=5,
               dropout=0.35)   # dropout unused (eval-mode no-op)
    N, L = 2, 16

    key = jax.random.PRNGKey(0)
    kx, kp = jax.random.split(key)
    x = jax.random.normal(kx, (N, cfg["input_channels"], L), jnp.float32)
    params = init_params(kp, cfg)

    fwd = jax.jit(lambda xv, pv: cnn_mul_exit_forward(xv, pv, cfg))
    outs = jax.block_until_ready(fwd(x, params))

    refs = reference_forward(x, params, cfg)
    names = ["exit_l_logits", "exit_m_logits", "exit_top_logits", "x_flat"]
    exp_shapes = [(N, cfg["num_classes"])] * 3 + \
                 [(N, cfg["features_len"] * cfg["final_out_channels"])]
    for o, r, nm, sh in zip(outs, refs, names, exp_shapes):
        assert o.shape == sh, (nm, o.shape, sh)
        assert bool(jnp.all(jnp.isfinite(o))), nm
        err = float(jnp.max(jnp.abs(o - r)))
        assert err < 5e-2, (nm, err)

    print("KERNEL_OK")
</pallas_src>

<mosaic_0001>
module attributes {stable_mosaic.version = 11 : i64} {
  func.func @kernel(%arg0: i32, %arg1: memref<2x16x4xf32, #tpu.memory_space<vmem>>, %arg2: memref<28x8xf32, #tpu.memory_space<vmem>>, %arg3: memref<2x8xf32, #tpu.memory_space<vmem>>, %arg4: memref<64x16xf32, #tpu.memory_space<vmem>>, %arg5: memref<2x16xf32, #tpu.memory_space<vmem>>, %arg6: memref<128x32xf32, #tpu.memory_space<vmem>>, %arg7: memref<2x32xf32, #tpu.memory_space<vmem>>, %arg8: memref<8x18xf32, #tpu.memory_space<vmem>>, %arg9: memref<8x12xf32, #tpu.memory_space<vmem>>, %arg10: memref<8x8xf32, #tpu.memory_space<vmem>>, %arg11: memref<4x8x5xf32, #tpu.memory_space<vmem>>, %arg12: memref<4x16x5xf32, #tpu.memory_space<vmem>>, %arg13: memref<4x32x128xf32, #tpu.memory_space<vmem>>, %arg14: memref<128x5xf32, #tpu.memory_space<vmem>>, %arg15: memref<3x5xf32, #tpu.memory_space<vmem>>, %arg16: memref<2x5xf32, #tpu.memory_space<vmem>>, %arg17: memref<2x5xf32, #tpu.memory_space<vmem>>, %arg18: memref<2x5xf32, #tpu.memory_space<vmem>>, %arg19: memref<2x128xf32, #tpu.memory_space<vmem>>) attributes {dimension_semantics = [#tpu.dimension_semantics<parallel>], iteration_bounds = array<i64: 1>, scalar_prefetch = 0 : i64, scratch_operands = 0 : i64, tpu.core_type = #tpu.core_type<tc>, window_params = [{transform_indices = @transform_0, window_bounds = array<i64: 2, 16, 4>}, {pipeline_mode = #tpu.pipeline_mode<synchronous>, transform_indices = @transform_1, window_bounds = array<i64: 28, 8>}, {pipeline_mode = #tpu.pipeline_mode<synchronous>, transform_indices = @transform_2, window_bounds = array<i64: 2, 8>}, {pipeline_mode = #tpu.pipeline_mode<synchronous>, transform_indices = @transform_3, window_bounds = array<i64: 64, 16>}, {pipeline_mode = #tpu.pipeline_mode<synchronous>, transform_indices = @transform_4, window_bounds = array<i64: 2, 16>}, {pipeline_mode = #tpu.pipeline_mode<synchronous>, transform_indices = @transform_5, window_bounds = array<i64: 128, 32>}, {pipeline_mode = #tpu.pipeline_mode<synchronous>, transform_indices = @transform_6, window_bounds = array<i64: 2, 32>}, {pipeline_mode = #tpu.pipeline_mode<synchronous>, transform_indices = @transform_7, window_bounds = array<i64: 8, 18>}, {pipeline_mode = #tpu.pipeline_mode<synchronous>, transform_indices = @transform_8, window_bounds = array<i64: 8, 12>}, {pipeline_mode = #tpu.pipeline_mode<synchronous>, transform_indices = @transform_9, window_bounds = array<i64: 8, 8>}, {pipeline_mode = #tpu.pipeline_mode<synchronous>, transform_indices = @transform_10, window_bounds = array<i64: 4, 8, 5>}, {pipeline_mode = #tpu.pipeline_mode<synchronous>, transform_indices = @transform_11, window_bounds = array<i64: 4, 16, 5>}, {pipeline_mode = #tpu.pipeline_mode<synchronous>, transform_indices = @transform_12, window_bounds = array<i64: 4, 32, 128>}, {pipeline_mode = #tpu.pipeline_mode<synchronous>, transform_indices = @transform_13, window_bounds = array<i64: 128, 5>}, {pipeline_mode = #tpu.pipeline_mode<synchronous>, transform_indices = @transform_14, window_bounds = array<i64: 3, 5>}, {transform_indices = @transform_15, window_bounds = array<i64: 2, 5>}, {transform_indices = @transform_16, window_bounds = array<i64: 2, 5>}, {transform_indices = @transform_17, window_bounds = array<i64: 2, 5>}, {transform_indices = @transform_18, window_bounds = array<i64: 2, 128>}]} {
    %c0 = arith.constant 0 : index
    %c0_0 = arith.constant 0 : index
    %c0_1 = arith.constant 0 : index
    %0 = vector.load %arg1[%c0, %c0_0, %c0_1] : memref<2x16x4xf32, #tpu.memory_space<vmem>>, vector<1x16x4xf32>
    %1 = vector.shape_cast %0 : vector<1x16x4xf32> to vector<16x4xf32>
    %c1 = arith.constant 1 : index
    %c0_2 = arith.constant 0 : index
    %c0_3 = arith.constant 0 : index
    %2 = vector.load %arg1[%c1, %c0_2, %c0_3] : memref<2x16x4xf32, #tpu.memory_space<vmem>>, vector<1x16x4xf32>
    %3 = vector.shape_cast %2 : vector<1x16x4xf32> to vector<16x4xf32>
    %c0_4 = arith.constant 0 : index
    %c0_5 = arith.constant 0 : index
    %4 = vector.load %arg2[%c0_4, %c0_5] : memref<28x8xf32, #tpu.memory_space<vmem>>, vector<28x8xf32>
    %c0_6 = arith.constant 0 : index
    %c0_7 = arith.constant 0 : index
    %5 = vector.load %arg3[%c0_6, %c0_7] : memref<2x8xf32, #tpu.memory_space<vmem>>, vector<2x8xf32>
    %6 = vector.extract_strided_slice %5 {offsets = [0, 0], sizes = [1, 8], strides = [1, 1]} : vector<2x8xf32> to vector<1x8xf32>
    %7 = vector.extract_strided_slice %5 {offsets = [1, 0], sizes = [1, 8], strides = [1, 1]} : vector<2x8xf32> to vector<1x8xf32>
    %cst = arith.constant 0.000000e+00 : f32
    %8 = vector.broadcast %cst : f32 to vector<3x4xf32>
    %9 = tpu.concatenate %8, %1, %8 in 0 : vector<3x4xf32>, vector<16x4xf32>, vector<3x4xf32> -> vector<22x4xf32>
    %10 = vector.extract_strided_slice %9 {offsets = [0, 0], sizes = [16, 4], strides = [1, 1]} : vector<22x4xf32> to vector<16x4xf32>
    %11 = vector.extract_strided_slice %9 {offsets = [1, 0], sizes = [16, 4], strides = [1, 1]} : vector<22x4xf32> to vector<16x4xf32>
    %12 = vector.extract_strided_slice %9 {offsets = [2, 0], sizes = [16, 4], strides = [1, 1]} : vector<22x4xf32> to vector<16x4xf32>
    %13 = vector.extract_strided_slice %9 {offsets = [3, 0], sizes = [16, 4], strides = [1, 1]} : vector<22x4xf32> to vector<16x4xf32>
    %14 = vector.extract_strided_slice %9 {offsets = [4, 0], sizes = [16, 4], strides = [1, 1]} : vector<22x4xf32> to vector<16x4xf32>
    %15 = vector.extract_strided_slice %9 {offsets = [5, 0], sizes = [16, 4], strides = [1, 1]} : vector<22x4xf32> to vector<16x4xf32>
    %16 = vector.extract_strided_slice %9 {offsets = [6, 0], sizes = [16, 4], strides = [1, 1]} : vector<22x4xf32> to vector<16x4xf32>
    %17 = tpu.concatenate %10, %11, %12, %13, %14, %15, %16 in 1 : vector<16x4xf32>, vector<16x4xf32>, vector<16x4xf32>, vector<16x4xf32>, vector<16x4xf32>, vector<16x4xf32>, vector<16x4xf32> -> vector<16x28xf32>
    %cst_8 = arith.constant 0.000000e+00 : f32
    %18 = vector.broadcast %cst_8 : f32 to vector<3x4xf32>
    %19 = tpu.concatenate %18, %3, %18 in 0 : vector<3x4xf32>, vector<16x4xf32>, vector<3x4xf32> -> vector<22x4xf32>
    %20 = vector.extract_strided_slice %19 {offsets = [0, 0], sizes = [16, 4], strides = [1, 1]} : vector<22x4xf32> to vector<16x4xf32>
    %21 = vector.extract_strided_slice %19 {offsets = [1, 0], sizes = [16, 4], strides = [1, 1]} : vector<22x4xf32> to vector<16x4xf32>
    %22 = vector.extract_strided_slice %19 {offsets = [2, 0], sizes = [16, 4], strides = [1, 1]} : vector<22x4xf32> to vector<16x4xf32>
    %23 = vector.extract_strided_slice %19 {offsets = [3, 0], sizes = [16, 4], strides = [1, 1]} : vector<22x4xf32> to vector<16x4xf32>
    %24 = vector.extract_strided_slice %19 {offsets = [4, 0], sizes = [16, 4], strides = [1, 1]} : vector<22x4xf32> to vector<16x4xf32>
    %25 = vector.extract_strided_slice %19 {offsets = [5, 0], sizes = [16, 4], strides = [1, 1]} : vector<22x4xf32> to vector<16x4xf32>
    %26 = vector.extract_strided_slice %19 {offsets = [6, 0], sizes = [16, 4], strides = [1, 1]} : vector<22x4xf32> to vector<16x4xf32>
    %27 = tpu.concatenate %20, %21, %22, %23, %24, %25, %26 in 1 : vector<16x4xf32>, vector<16x4xf32>, vector<16x4xf32>, vector<16x4xf32>, vector<16x4xf32>, vector<16x4xf32>, vector<16x4xf32> -> vector<16x28xf32>
    %28 = tpu.concatenate %17, %27 in 0 : vector<16x28xf32>, vector<16x28xf32> -> vector<32x28xf32>
    %cst_9 = arith.constant dense<0.000000e+00> : vector<32x8xf32>
    %29 = tpu.matmul %28, %4, %cst_9 {dimension_numbers = #tpu.dot_dimension_numbers<[1], [0], [0], [1], [0, 0, 1, 1], [], []>} : vector<32x28xf32>, vector<28x8xf32>, vector<32x8xf32> -> vector<32x8xf32>
    %30 = vector.broadcast %6 : vector<1x8xf32> to vector<32x8xf32>
    %31 = arith.mulf %29, %30 : vector<32x8xf32>
    %32 = vector.broadcast %7 : vector<1x8xf32> to vector<32x8xf32>
    %33 = arith.addf %31, %32 : vector<32x8xf32>
    %cst_10 = arith.constant 0.000000e+00 : f32
    %34 = vector.broadcast %cst_10 : f32 to vector<32x8xf32>
    %35 = arith.maximumf %33, %34 : vector<32x8xf32>
    %36 = vector.extract_strided_slice %35 {offsets = [0, 0], sizes = [1, 8], strides = [1, 1]} : vector<32x8xf32> to vector<1x8xf32>
    %37 = vector.extract_strided_slice %35 {offsets = [1, 0], sizes = [1, 8], strides = [1, 1]} : vector<32x8xf32> to vector<1x8xf32>
    %38 = vector.extract_strided_slice %35 {offsets = [2, 0], sizes = [1, 8], strides = [1, 1]} : vector<32x8xf32> to vector<1x8xf32>
    %39 = arith.maximumf %37, %38 : vector<1x8xf32>
    %40 = vector.extract_strided_slice %35 {offsets = [3, 0], sizes = [1, 8], strides = [1, 1]} : vector<32x8xf32> to vector<1x8xf32>
    %41 = vector.extract_strided_slice %35 {offsets = [4, 0], sizes = [1, 8], strides = [1, 1]} : vector<32x8xf32> to vector<1x8xf32>
    %42 = arith.maximumf %40, %41 : vector<1x8xf32>
    %43 = vector.extract_strided_slice %35 {offsets = [5, 0], sizes = [1, 8], strides = [1, 1]} : vector<32x8xf32> to vector<1x8xf32>
    %44 = vector.extract_strided_slice %35 {offsets = [6, 0], sizes = [1, 8], strides = [1, 1]} : vector<32x8xf32> to vector<1x8xf32>
    %45 = arith.maximumf %43, %44 : vector<1x8xf32>
    %46 = vector.extract_strided_slice %35 {offsets = [7, 0], sizes = [1, 8], strides = [1, 1]} : vector<32x8xf32> to vector<1x8xf32>
    %47 = vector.extract_strided_slice %35 {offsets = [8, 0], sizes = [1, 8], strides = [1, 1]} : vector<32x8xf32> to vector<1x8xf32>
    %48 = arith.maximumf %46, %47 : vector<1x8xf32>
    %49 = vector.extract_strided_slice %35 {offsets = [9, 0], sizes = [1, 8], strides = [1, 1]} : vector<32x8xf32> to vector<1x8xf32>
    %50 = vector.extract_strided_slice %35 {offsets = [10, 0], sizes = [1, 8], strides = [1, 1]} : vector<32x8xf32> to vector<1x8xf32>
    %51 = arith.maximumf %49, %50 : vector<1x8xf32>
    %52 = vector.extract_strided_slice %35 {offsets = [11, 0], sizes = [1, 8], strides = [1, 1]} : vector<32x8xf32> to vector<1x8xf32>
    %53 = vector.extract_strided_slice %35 {offsets = [12, 0], sizes = [1, 8], strides = [1, 1]} : vector<32x8xf32> to vector<1x8xf32>
    %54 = arith.maximumf %52, %53 : vector<1x8xf32>
    %55 = vector.extract_strided_slice %35 {offsets = [13, 0], sizes = [1, 8], strides = [1, 1]} : vector<32x8xf32> to vector<1x8xf32>
    %56 = vector.extract_strided_slice %35 {offsets = [14, 0], sizes = [1, 8], strides = [1, 1]} : vector<32x8xf32> to vector<1x8xf32>
    %57 = arith.maximumf %55, %56 : vector<1x8xf32>
    %58 = vector.extract_strided_slice %35 {offsets = [15, 0], sizes = [1, 8], strides = [1, 1]} : vector<32x8xf32> to vector<1x8xf32>
    %59 = vector.extract_strided_slice %35 {offsets = [16, 0], sizes = [1, 8], strides = [1, 1]} : vector<32x8xf32> to vector<1x8xf32>
    %60 = vector.extract_strided_slice %35 {offsets = [17, 0], sizes = [1, 8], strides = [1, 1]} : vector<32x8xf32> to vector<1x8xf32>
    %61 = vector.extract_strided_slice %35 {offsets = [18, 0], sizes = [1, 8], strides = [1, 1]} : vector<32x8xf32> to vector<1x8xf32>
    %62 = arith.maximumf %60, %61 : vector<1x8xf32>
    %63 = vector.extract_strided_slice %35 {offsets = [19, 0], sizes = [1, 8], strides = [1, 1]} : vector<32x8xf32> to vector<1x8xf32>
    %64 = vector.extract_strided_slice %35 {offsets = [20, 0], sizes = [1, 8], strides = [1, 1]} : vector<32x8xf32> to vector<1x8xf32>
    %65 = arith.maximumf %63, %64 : vector<1x8xf32>
    %66 = vector.extract_strided_slice %35 {offsets = [21, 0], sizes = [1, 8], strides = [1, 1]} : vector<32x8xf32> to vector<1x8xf32>
    %67 = vector.extract_strided_slice %35 {offsets = [22, 0], sizes = [1, 8], strides = [1, 1]} : vector<32x8xf32> to vector<1x8xf32>
    %68 = arith.maximumf %66, %67 : vector<1x8xf32>
    %69 = vector.extract_strided_slice %35 {offsets = [23, 0], sizes = [1, 8], strides = [1, 1]} : vector<32x8xf32> to vector<1x8xf32>
    %70 = vector.extract_strided_slice %35 {offsets = [24, 0], sizes = [1, 8], strides = [1, 1]} : vector<32x8xf32> to vector<1x8xf32>
    %71 = arith.maximumf %69, %70 : vector<1x8xf32>
    %72 = vector.extract_strided_slice %35 {offsets = [25, 0], sizes = [1, 8], strides = [1, 1]} : vector<32x8xf32> to vector<1x8xf32>
    %73 = vector.extract_strided_slice %35 {offsets = [26, 0], sizes = [1, 8], strides = [1, 1]} : vector<32x8xf32> to vector<1x8xf32>
    %74 = arith.maximumf %72, %73 : vector<1x8xf32>
    %75 = vector.extract_strided_slice %35 {offsets = [27, 0], sizes = [1, 8], strides = [1, 1]} : vector<32x8xf32> to vector<1x8xf32>
    %76 = vector.extract_strided_slice %35 {offsets = [28, 0], sizes = [1, 8], strides = [1, 1]} : vector<32x8xf32> to vector<1x8xf32>
    %77 = arith.maximumf %75, %76 : vector<1x8xf32>
    %78 = vector.extract_strided_slice %35 {offsets = [29, 0], sizes = [1, 8], strides = [1, 1]} : vector<32x8xf32> to vector<1x8xf32>
    %79 = vector.extract_strided_slice %35 {offsets = [30, 0], sizes = [1, 8], strides = [1, 1]} : vector<32x8xf32> to vector<1x8xf32>
    %80 = arith.maximumf %78, %79 : vector<1x8xf32>
    %81 = vector.extract_strided_slice %35 {offsets = [31, 0], sizes = [1, 8], strides = [1, 1]} : vector<32x8xf32> to vector<1x8xf32>
    %82 = tpu.concatenate %36, %39, %42, %45, %48, %51, %54, %57, %58, %59, %62, %65, %68, %71, %74, %77 in 0 : vector<1x8xf32>, vector<1x8xf32>, vector<1x8xf32>, vector<1x8xf32>, vector<1x8xf32>, vector<1x8xf32>, vector<1x8xf32>, vector<1x8xf32>, vector<1x8xf32>, vector<1x8xf32>, vector<1x8xf32>, vector<1x8xf32>, vector<1x8xf32>, vector<1x8xf32>, vector<1x8xf32>, vector<1x8xf32> -> vector<16x8xf32>
    %83 = tpu.concatenate %80, %81 in 0 : vector<1x8xf32>, vector<1x8xf32> -> vector<2x8xf32>
    %84 = tpu.concatenate %82, %83 in 0 : vector<16x8xf32>, vector<2x8xf32> -> vector<18x8xf32>
    %c0_11 = arith.constant 0 : index
    %c0_12 = arith.constant 0 : index
    %85 = vector.load %arg8[%c0_11, %c0_12] : memref<8x18xf32, #tpu.memory_space<vmem>>, vector<8x18xf32>
    %cst_13 = arith.constant dense<0.000000e+00> : vector<8x8xf32>
    %86 = tpu.matmul %85, %84, %cst_13 {dimension_numbers = #tpu.dot_dimension_numbers<[1], [0], [0], [1], [0, 0, 1, 1], [], []>} : vector<8x18xf32>, vector<18x8xf32>, vector<8x8xf32> -> vector<8x8xf32>
    %c0_14 = arith.constant 0 : index
    %c0_15 = arith.constant 0 : index
    %87 = vector.load %arg15[%c0_14, %c0_15] : memref<3x5xf32, #tpu.memory_space<vmem>>, vector<1x5xf32>
    %88 = vector.extract_strided_slice %86 {offsets = [0, 0], sizes = [2, 8], strides = [1, 1]} : vector<8x8xf32> to vector<2x8xf32>
    %c0_16 = arith.constant 0 : index
    %c0_17 = arith.constant 0 : index
    %c0_18 = arith.constant 0 : index
    %89 = vector.load %arg11[%c0_16, %c0_17, %c0_18] : memref<4x8x5xf32, #tpu.memory_space<vmem>>, vector<1x8x5xf32>
    %90 = vector.shape_cast %89 : vector<1x8x5xf32> to vector<8x5xf32>
    %cst_19 = arith.constant dense<0.000000e+00> : vector<2x5xf32>
    %91 = tpu.matmul %88, %90, %cst_19 {dimension_numbers = #tpu.dot_dimension_numbers<[1], [0], [0], [1], [0, 0, 1, 1], [], []>} : vector<2x8xf32>, vector<8x5xf32>, vector<2x5xf32> -> vector<2x5xf32>
    %92 = vector.broadcast %87 : vector<1x5xf32> to vector<2x5xf32>
    %93 = arith.addf %92, %91 : vector<2x5xf32>
    %94 = vector.extract_strided_slice %86 {offsets = [2, 0], sizes = [2, 8], strides = [1, 1]} : vector<8x8xf32> to vector<2x8xf32>
    %c1_20 = arith.constant 1 : index
    %c0_21 = arith.constant 0 : index
    %c0_22 = arith.constant 0 : index
    %95 = vector.load %arg11[%c1_20, %c0_21, %c0_22] : memref<4x8x5xf32, #tpu.memory_space<vmem>>, vector<1x8x5xf32>
    %96 = vector.shape_cast %95 : vector<1x8x5xf32> to vector<8x5xf32>
    %cst_23 = arith.constant dense<0.000000e+00> : vector<2x5xf32>
    %97 = tpu.matmul %94, %96, %cst_23 {dimension_numbers = #tpu.dot_dimension_numbers<[1], [0], [0], [1], [0, 0, 1, 1], [], []>} : vector<2x8xf32>, vector<8x5xf32>, vector<2x5xf32> -> vector<2x5xf32>
    %98 = arith.addf %93, %97 : vector<2x5xf32>
    %99 = vector.extract_strided_slice %86 {offsets = [4, 0], sizes = [2, 8], strides = [1, 1]} : vector<8x8xf32> to vector<2x8xf32>
    %c2 = arith.constant 2 : index
    %c0_24 = arith.constant 0 : index
    %c0_25 = arith.constant 0 : index
    %100 = vector.load %arg11[%c2, %c0_24, %c0_25] : memref<4x8x5xf32, #tpu.memory_space<vmem>>, vector<1x8x5xf32>
    %101 = vector.shape_cast %100 : vector<1x8x5xf32> to vector<8x5xf32>
    %cst_26 = arith.constant dense<0.000000e+00> : vector<2x5xf32>
    %102 = tpu.matmul %99, %101, %cst_26 {dimension_numbers = #tpu.dot_dimension_numbers<[1], [0], [0], [1], [0, 0, 1, 1], [], []>} : vector<2x8xf32>, vector<8x5xf32>, vector<2x5xf32> -> vector<2x5xf32>
    %103 = arith.addf %98, %102 : vector<2x5xf32>
    %104 = vector.extract_strided_slice %86 {offsets = [6, 0], sizes = [2, 8], strides = [1, 1]} : vector<8x8xf32> to vector<2x8xf32>
    %c3 = arith.constant 3 : index
    %c0_27 = arith.constant 0 : index
    %c0_28 = arith.constant 0 : index
    %105 = vector.load %arg11[%c3, %c0_27, %c0_28] : memref<4x8x5xf32, #tpu.memory_space<vmem>>, vector<1x8x5xf32>
    %106 = vector.shape_cast %105 : vector<1x8x5xf32> to vector<8x5xf32>
    %cst_29 = arith.constant dense<0.000000e+00> : vector<2x5xf32>
    %107 = tpu.matmul %104, %106, %cst_29 {dimension_numbers = #tpu.dot_dimension_numbers<[1], [0], [0], [1], [0, 0, 1, 1], [], []>} : vector<2x8xf32>, vector<8x5xf32>, vector<2x5xf32> -> vector<2x5xf32>
    %108 = arith.addf %103, %107 : vector<2x5xf32>
    %c0_30 = arith.constant 0 : index
    %c0_31 = arith.constant 0 : index
    %109 = vector.load %arg16[%c0_30, %c0_31] : memref<2x5xf32, #tpu.memory_space<vmem>>, vector<2x5xf32>
    tpu.vector_store %arg16[%c0_30, %c0_31], %108 {strides = array<i32>} : memref<2x5xf32, #tpu.memory_space<vmem>>, vector<2x5xf32>,
    %110 = vector.extract_strided_slice %84 {offsets = [0, 0], sizes = [9, 8], strides = [1, 1]} : vector<18x8xf32> to vector<9x8xf32>
    %111 = vector.extract_strided_slice %84 {offsets = [9, 0], sizes = [9, 8], strides = [1, 1]} : vector<18x8xf32> to vector<9x8xf32>
    %c0_32 = arith.constant 0 : index
    %c0_33 = arith.constant 0 : index
    %112 = vector.load %arg4[%c0_32, %c0_33] : memref<64x16xf32, #tpu.memory_space<vmem>>, vector<64x16xf32>
    %c0_34 = arith.constant 0 : index
    %c0_35 = arith.constant 0 : index
    %113 = vector.load %arg5[%c0_34, %c0_35] : memref<2x16xf32, #tpu.memory_space<vmem>>, vector<2x16xf32>
    %114 = vector.extract_strided_slice %113 {offsets = [0, 0], sizes = [1, 16], strides = [1, 1]} : vector<2x16xf32> to vector<1x16xf32>
    %115 = vector.extract_strided_slice %113 {offsets = [1, 0], sizes = [1, 16], strides = [1, 1]} : vector<2x16xf32> to vector<1x16xf32>
    %cst_36 = arith.constant 0.000000e+00 : f32
    %116 = vector.broadcast %cst_36 : f32 to vector<4x8xf32>
    %117 = tpu.concatenate %116, %110, %116 in 0 : vector<4x8xf32>, vector<9x8xf32>, vector<4x8xf32> -> vector<17x8xf32>
    %118 = vector.extract_strided_slice %117 {offsets = [0, 0], sizes = [10, 8], strides = [1, 1]} : vector<17x8xf32> to vector<10x8xf32>
    %119 = vector.extract_strided_slice %117 {offsets = [1, 0], sizes = [10, 8], strides = [1, 1]} : vector<17x8xf32> to vector<10x8xf32>
    %120 = vector.extract_strided_slice %117 {offsets = [2, 0], sizes = [10, 8], strides = [1, 1]} : vector<17x8xf32> to vector<10x8xf32>
    %121 = vector.extract_strided_slice %117 {offsets = [3, 0], sizes = [10, 8], strides = [1, 1]} : vector<17x8xf32> to vector<10x8xf32>
    %122 = vector.extract_strided_slice %117 {offsets = [4, 0], sizes = [10, 8], strides = [1, 1]} : vector<17x8xf32> to vector<10x8xf32>
    %123 = vector.extract_strided_slice %117 {offsets = [5, 0], sizes = [10, 8], strides = [1, 1]} : vector<17x8xf32> to vector<10x8xf32>
    %124 = vector.extract_strided_slice %117 {offsets = [6, 0], sizes = [10, 8], strides = [1, 1]} : vector<17x8xf32> to vector<10x8xf32>
    %125 = vector.extract_strided_slice %117 {offsets = [7, 0], sizes = [10, 8], strides = [1, 1]} : vector<17x8xf32> to vector<10x8xf32>
    %126 = tpu.concatenate %118, %119, %120, %121, %122, %123, %124, %125 in 1 : vector<10x8xf32>, vector<10x8xf32>, vector<10x8xf32>, vector<10x8xf32>, vector<10x8xf32>, vector<10x8xf32>, vector<10x8xf32>, vector<10x8xf32> -> vector<10x64xf32>
    %cst_37 = arith.constant 0.000000e+00 : f32
    %127 = vector.broadcast %cst_37 : f32 to vector<4x8xf32>
    %128 = tpu.concatenate %127, %111, %127 in 0 : vector<4x8xf32>, vector<9x8xf32>, vector<4x8xf32> -> vector<17x8xf32>
    %129 = vector.extract_strided_slice %128 {offsets = [0, 0], sizes = [10, 8], strides = [1, 1]} : vector<17x8xf32> to vector<10x8xf32>
    %130 = vector.extract_strided_slice %128 {offsets = [1, 0], sizes = [10, 8], strides = [1, 1]} : vector<17x8xf32> to vector<10x8xf32>
    %131 = vector.extract_strided_slice %128 {offsets = [2, 0], sizes = [10, 8], strides = [1, 1]} : vector<17x8xf32> to vector<10x8xf32>
    %132 = vector.extract_strided_slice %128 {offsets = [3, 0], sizes = [10, 8], strides = [1, 1]} : vector<17x8xf32> to vector<10x8xf32>
    %133 = vector.extract_strided_slice %128 {offsets = [4, 0], sizes = [10, 8], strides = [1, 1]} : vector<17x8xf32> to vector<10x8xf32>
    %134 = vector.extract_strided_slice %128 {offsets = [5, 0], sizes = [10, 8], strides = [1, 1]} : vector<17x8xf32> to vector<10x8xf32>
    %135 = vector.extract_strided_slice %128 {offsets = [6, 0], sizes = [10, 8], strides = [1, 1]} : vector<17x8xf32> to vector<10x8xf32>
    %136 = vector.extract_strided_slice %128 {offsets = [7, 0], sizes = [10, 8], strides = [1, 1]} : vector<17x8xf32> to vector<10x8xf32>
    %137 = tpu.concatenate %129, %130, %131, %132, %133, %134, %135, %136 in 1 : vector<10x8xf32>, vector<10x8xf32>, vector<10x8xf32>, vector<10x8xf32>, vector<10x8xf32>, vector<10x8xf32>, vector<10x8xf32>, vector<10x8xf32> -> vector<10x64xf32>
    %138 = tpu.concatenate %126, %137 in 0 : vector<10x64xf32>, vector<10x64xf32> -> vector<20x64xf32>
    %cst_38 = arith.constant dense<0.000000e+00> : vector<20x16xf32>
    %139 = tpu.matmul %138, %112, %cst_38 {dimension_numbers = #tpu.dot_dimension_numbers<[1], [0], [0], [1], [0, 0, 1, 1], [], []>} : vector<20x64xf32>, vector<64x16xf32>, vector<20x16xf32> -> vector<20x16xf32>
    %140 = vector.broadcast %114 : vector<1x16xf32> to vector<20x16xf32>
    %141 = arith.mulf %139, %140 : vector<20x16xf32>
    %142 = vector.broadcast %115 : vector<1x16xf32> to vector<20x16xf32>
    %143 = arith.addf %141, %142 : vector<20x16xf32>
    %cst_39 = arith.constant 0.000000e+00 : f32
    %144 = vector.broadcast %cst_39 : f32 to vector<20x16xf32>
    %145 = arith.maximumf %143, %144 : vector<20x16xf32>
    %146 = vector.extract_strided_slice %145 {offsets = [0, 0], sizes = [1, 16], strides = [1, 1]} : vector<20x16xf32> to vector<1x16xf32>
    %147 = vector.extract_strided_slice %145 {offsets = [1, 0], sizes = [1, 16], strides = [1, 1]} : vector<20x16xf32> to vector<1x16xf32>
    %148 = vector.extract_strided_slice %145 {offsets = [2, 0], sizes = [1, 16], strides = [1, 1]} : vector<20x16xf32> to vector<1x16xf32>
    %149 = arith.maximumf %147, %148 : vector<1x16xf32>
    %150 = vector.extract_strided_slice %145 {offsets = [3, 0], sizes = [1, 16], strides = [1, 1]} : vector<20x16xf32> to vector<1x16xf32>
    %151 = vector.extract_strided_slice %145 {offsets = [4, 0], sizes = [1, 16], strides = [1, 1]} : vector<20x16xf32> to vector<1x16xf32>
    %152 = arith.maximumf %150, %151 : vector<1x16xf32>
    %153 = vector.extract_strided_slice %145 {offsets = [5, 0], sizes = [1, 16], strides = [1, 1]} : vector<20x16xf32> to vector<1x16xf32>
    %154 = vector.extract_strided_slice %145 {offsets = [6, 0], sizes = [1, 16], strides = [1, 1]} : vector<20x16xf32> to vector<1x16xf32>
    %155 = arith.maximumf %153, %154 : vector<1x16xf32>
    %156 = vector.extract_strided_slice %145 {offsets = [7, 0], sizes = [1, 16], strides = [1, 1]} : vector<20x16xf32> to vector<1x16xf32>
    %157 = vector.extract_strided_slice %145 {offsets = [8, 0], sizes = [1, 16], strides = [1, 1]} : vector<20x16xf32> to vector<1x16xf32>
    %158 = arith.maximumf %156, %157 : vector<1x16xf32>
    %159 = vector.extract_strided_slice %145 {offsets = [9, 0], sizes = [1, 16], strides = [1, 1]} : vector<20x16xf32> to vector<1x16xf32>
    %160 = vector.extract_strided_slice %145 {offsets = [10, 0], sizes = [1, 16], strides = [1, 1]} : vector<20x16xf32> to vector<1x16xf32>
    %161 = vector.extract_strided_slice %145 {offsets = [11, 0], sizes = [1, 16], strides = [1, 1]} : vector<20x16xf32> to vector<1x16xf32>
    %162 = vector.extract_strided_slice %145 {offsets = [12, 0], sizes = [1, 16], strides = [1, 1]} : vector<20x16xf32> to vector<1x16xf32>
    %163 = arith.maximumf %161, %162 : vector<1x16xf32>
    %164 = vector.extract_strided_slice %145 {offsets = [13, 0], sizes = [1, 16], strides = [1, 1]} : vector<20x16xf32> to vector<1x16xf32>
    %165 = vector.extract_strided_slice %145 {offsets = [14, 0], sizes = [1, 16], strides = [1, 1]} : vector<20x16xf32> to vector<1x16xf32>
    %166 = arith.maximumf %164, %165 : vector<1x16xf32>
    %167 = vector.extract_strided_slice %145 {offsets = [15, 0], sizes = [1, 16], strides = [1, 1]} : vector<20x16xf32> to vector<1x16xf32>
    %168 = vector.extract_strided_slice %145 {offsets = [16, 0], sizes = [1, 16], strides = [1, 1]} : vector<20x16xf32> to vector<1x16xf32>
    %169 = arith.maximumf %167, %168 : vector<1x16xf32>
    %170 = vector.extract_strided_slice %145 {offsets = [17, 0], sizes = [1, 16], strides = [1, 1]} : vector<20x16xf32> to vector<1x16xf32>
    %171 = vector.extract_strided_slice %145 {offsets = [18, 0], sizes = [1, 16], strides = [1, 1]} : vector<20x16xf32> to vector<1x16xf32>
    %172 = arith.maximumf %170, %171 : vector<1x16xf32>
    %173 = vector.extract_strided_slice %145 {offsets = [19, 0], sizes = [1, 16], strides = [1, 1]} : vector<20x16xf32> to vector<1x16xf32>
    %174 = tpu.concatenate %146, %149, %152, %155, %158, %159, %160, %163, %166, %169, %172, %173 in 0 : vector<1x16xf32>, vector<1x16xf32>, vector<1x16xf32>, vector<1x16xf32>, vector<1x16xf32>, vector<1x16xf32>, vector<1x16xf32>, vector<1x16xf32>, vector<1x16xf32>, vector<1x16xf32>, vector<1x16xf32>, vector<1x16xf32> -> vector<12x16xf32>
    %c0_40 = arith.constant 0 : index
    %c0_41 = arith.constant 0 : index
    %175 = vector.load %arg9[%c0_40, %c0_41] : memref<8x12xf32, #tpu.memory_space<vmem>>, vector<8x12xf32>
    %cst_42 = arith.constant dense<0.000000e+00> : vector<8x16xf32>
    %176 = tpu.matmul %175, %174, %cst_42 {dimension_numbers = #tpu.dot_dimension_numbers<[1], [0], [0], [1], [0, 0, 1, 1], [], []>} : vector<8x12xf32>, vector<12x16xf32>, vector<8x16xf32> -> vector<8x16xf32>
    %c1_43 = arith.constant 1 : index
    %c0_44 = arith.constant 0 : index
    %177 = vector.load %arg15[%c1_43, %c0_44] : memref<3x5xf32, #tpu.memory_space<vmem>>, vector<1x5xf32>
    %178 = vector.extract_strided_slice %176 {offsets = [0, 0], sizes = [2, 16], strides = [1, 1]} : vector<8x16xf32> to vector<2x16xf32>
    %c0_45 = arith.constant 0 : index
    %c0_46 = arith.constant 0 : index
    %c0_47 = arith.constant 0 : index
    %179 = vector.load %arg12[%c0_45, %c0_46, %c0_47] : memref<4x16x5xf32, #tpu.memory_space<vmem>>, vector<1x16x5xf32>
    %180 = vector.shape_cast %179 : vector<1x16x5xf32> to vector<16x5xf32>
    %cst_48 = arith.constant dense<0.000000e+00> : vector<2x5xf32>
    %181 = tpu.matmul %178, %180, %cst_48 {dimension_numbers = #tpu.dot_dimension_numbers<[1], [0], [0], [1], [0, 0, 1, 1], [], []>} : vector<2x16xf32>, vector<16x5xf32>, vector<2x5xf32> -> vector<2x5xf32>
    %182 = vector.broadcast %177 : vector<1x5xf32> to vector<2x5xf32>
    %183 = arith.addf %182, %181 : vector<2x5xf32>
    %184 = vector.extract_strided_slice %176 {offsets = [2, 0], sizes = [2, 16], strides = [1, 1]} : vector<8x16xf32> to vector<2x16xf32>
    %c1_49 = arith.constant 1 : index
    %c0_50 = arith.constant 0 : index
    %c0_51 = arith.constant 0 : index
    %185 = vector.load %arg12[%c1_49, %c0_50, %c0_51] : memref<4x16x5xf32, #tpu.memory_space<vmem>>, vector<1x16x5xf32>
    %186 = vector.shape_cast %185 : vector<1x16x5xf32> to vector<16x5xf32>
    %cst_52 = arith.constant dense<0.000000e+00> : vector<2x5xf32>
    %187 = tpu.matmul %184, %186, %cst_52 {dimension_numbers = #tpu.dot_dimension_numbers<[1], [0], [0], [1], [0, 0, 1, 1], [], []>} : vector<2x16xf32>, vector<16x5xf32>, vector<2x5xf32> -> vector<2x5xf32>
    %188 = arith.addf %183, %187 : vector<2x5xf32>
    %189 = vector.extract_strided_slice %176 {offsets = [4, 0], sizes = [2, 16], strides = [1, 1]} : vector<8x16xf32> to vector<2x16xf32>
    %c2_53 = arith.constant 2 : index
    %c0_54 = arith.constant 0 : index
    %c0_55 = arith.constant 0 : index
    %190 = vector.load %arg12[%c2_53, %c0_54, %c0_55] : memref<4x16x5xf32, #tpu.memory_space<vmem>>, vector<1x16x5xf32>
    %191 = vector.shape_cast %190 : vector<1x16x5xf32> to vector<16x5xf32>
    %cst_56 = arith.constant dense<0.000000e+00> : vector<2x5xf32>
    %192 = tpu.matmul %189, %191, %cst_56 {dimension_numbers = #tpu.dot_dimension_numbers<[1], [0], [0], [1], [0, 0, 1, 1], [], []>} : vector<2x16xf32>, vector<16x5xf32>, vector<2x5xf32> -> vector<2x5xf32>
    %193 = arith.addf %188, %192 : vector<2x5xf32>
    %194 = vector.extract_strided_slice %176 {offsets = [6, 0], sizes = [2, 16], strides = [1, 1]} : vector<8x16xf32> to vector<2x16xf32>
    %c3_57 = arith.constant 3 : index
    %c0_58 = arith.constant 0 : index
    %c0_59 = arith.constant 0 : index
    %195 = vector.load %arg12[%c3_57, %c0_58, %c0_59] : memref<4x16x5xf32, #tpu.memory_space<vmem>>, vector<1x16x5xf32>
    %196 = vector.shape_cast %195 : vector<1x16x5xf32> to vector<16x5xf32>
    %cst_60 = arith.constant dense<0.000000e+00> : vector<2x5xf32>
    %197 = tpu.matmul %194, %196, %cst_60 {dimension_numbers = #tpu.dot_dimension_numbers<[1], [0], [0], [1], [0, 0, 1, 1], [], []>} : vector<2x16xf32>, vector<16x5xf32>, vector<2x5xf32> -> vector<2x5xf32>
    %198 = arith.addf %193, %197 : vector<2x5xf32>
    %c0_61 = arith.constant 0 : index
    %c0_62 = arith.constant 0 : index
    %199 = vector.load %arg17[%c0_61, %c0_62] : memref<2x5xf32, #tpu.memory_space<vmem>>, vector<2x5xf32>
    tpu.vector_store %arg17[%c0_61, %c0_62], %198 {strides = array<i32>} : memref<2x5xf32, #tpu.memory_space<vmem>>, vector<2x5xf32>,
    %200 = vector.extract_strided_slice %174 {offsets = [0, 0], sizes = [6, 16], strides = [1, 1]} : vector<12x16xf32> to vector<6x16xf32>
    %201 = vector.extract_strided_slice %174 {offsets = [6, 0], sizes = [6, 16], strides = [1, 1]} : vector<12x16xf32> to vector<6x16xf32>
    %c0_63 = arith.constant 0 : index
    %c0_64 = arith.constant 0 : index
    %202 = vector.load %arg6[%c0_63, %c0_64] : memref<128x32xf32, #tpu.memory_space<vmem>>, vector<128x32xf32>
    %c0_65 = arith.constant 0 : index
    %c0_66 = arith.constant 0 : index
    %203 = vector.load %arg7[%c0_65, %c0_66] : memref<2x32xf32, #tpu.memory_space<vmem>>, vector<2x32xf32>
    %204 = vector.extract_strided_slice %203 {offsets = [0, 0], sizes = [1, 32], strides = [1, 1]} : vector<2x32xf32> to vector<1x32xf32>
    %205 = vector.extract_strided_slice %203 {offsets = [1, 0], sizes = [1, 32], strides = [1, 1]} : vector<2x32xf32> to vector<1x32xf32>
    %cst_67 = arith.constant 0.000000e+00 : f32
    %206 = vector.broadcast %cst_67 : f32 to vector<4x16xf32>
    %207 = tpu.concatenate %206, %200, %206 in 0 : vector<4x16xf32>, vector<6x16xf32>, vector<4x16xf32> -> vector<14x16xf32>
    %208 = vector.extract_strided_slice %207 {offsets = [0, 0], sizes = [7, 16], strides = [1, 1]} : vector<14x16xf32> to vector<7x16xf32>
    %209 = vector.extract_strided_slice %207 {offsets = [1, 0], sizes = [7, 16], strides = [1, 1]} : vector<14x16xf32> to vector<7x16xf32>
    %210 = vector.extract_strided_slice %207 {offsets = [2, 0], sizes = [7, 16], strides = [1, 1]} : vector<14x16xf32> to vector<7x16xf32>
    %211 = vector.extract_strided_slice %207 {offsets = [3, 0], sizes = [7, 16], strides = [1, 1]} : vector<14x16xf32> to vector<7x16xf32>
    %212 = vector.extract_strided_slice %207 {offsets = [4, 0], sizes = [7, 16], strides = [1, 1]} : vector<14x16xf32> to vector<7x16xf32>
    %213 = vector.extract_strided_slice %207 {offsets = [5, 0], sizes = [7, 16], strides = [1, 1]} : vector<14x16xf32> to vector<7x16xf32>
    %214 = vector.extract_strided_slice %207 {offsets = [6, 0], sizes = [7, 16], strides = [1, 1]} : vector<14x16xf32> to vector<7x16xf32>
    %215 = vector.extract_strided_slice %207 {offsets = [7, 0], sizes = [7, 16], strides = [1, 1]} : vector<14x16xf32> to vector<7x16xf32>
    %216 = tpu.concatenate %208, %209, %210, %211, %212, %213, %214, %215 in 1 : vector<7x16xf32>, vector<7x16xf32>, vector<7x16xf32>, vector<7x16xf32>, vector<7x16xf32>, vector<7x16xf32>, vector<7x16xf32>, vector<7x16xf32> -> vector<7x128xf32>
    %cst_68 = arith.constant 0.000000e+00 : f32
    %217 = vector.broadcast %cst_68 : f32 to vector<4x16xf32>
    %218 = tpu.concatenate %217, %201, %217 in 0 : vector<4x16xf32>, vector<6x16xf32>, vector<4x16xf32> -> vector<14x16xf32>
    %219 = vector.extract_strided_slice %218 {offsets = [0, 0], sizes = [7, 16], strides = [1, 1]} : vector<14x16xf32> to vector<7x16xf32>
    %220 = vector.extract_strided_slice %218 {offsets = [1, 0], sizes = [7, 16], strides = [1, 1]} : vector<14x16xf32> to vector<7x16xf32>
    %221 = vector.extract_strided_slice %218 {offsets = [2, 0], sizes = [7, 16], strides = [1, 1]} : vector<14x16xf32> to vector<7x16xf32>
    %222 = vector.extract_strided_slice %218 {offsets = [3, 0], sizes = [7, 16], strides = [1, 1]} : vector<14x16xf32> to vector<7x16xf32>
    %223 = vector.extract_strided_slice %218 {offsets = [4, 0], sizes = [7, 16], strides = [1, 1]} : vector<14x16xf32> to vector<7x16xf32>
    %224 = vector.extract_strided_slice %218 {offsets = [5, 0], sizes = [7, 16], strides = [1, 1]} : vector<14x16xf32> to vector<7x16xf32>
    %225 = vector.extract_strided_slice %218 {offsets = [6, 0], sizes = [7, 16], strides = [1, 1]} : vector<14x16xf32> to vector<7x16xf32>
    %226 = vector.extract_strided_slice %218 {offsets = [7, 0], sizes = [7, 16], strides = [1, 1]} : vector<14x16xf32> to vector<7x16xf32>
    %227 = tpu.concatenate %219, %220, %221, %222, %223, %224, %225, %226 in 1 : vector<7x16xf32>, vector<7x16xf32>, vector<7x16xf32>, vector<7x16xf32>, vector<7x16xf32>, vector<7x16xf32>, vector<7x16xf32>, vector<7x16xf32> -> vector<7x128xf32>
    %228 = tpu.concatenate %216, %227 in 0 : vector<7x128xf32>, vector<7x128xf32> -> vector<14x128xf32>
    %cst_69 = arith.constant dense<0.000000e+00> : vector<14x32xf32>
    %229 = tpu.matmul %228, %202, %cst_69 {dimension_numbers = #tpu.dot_dimension_numbers<[1], [0], [0], [1], [0, 0, 1, 1], [], []>} : vector<14x128xf32>, vector<128x32xf32>, vector<14x32xf32> -> vector<14x32xf32>
    %230 = vector.broadcast %204 : vector<1x32xf32> to vector<14x32xf32>
    %231 = arith.mulf %229, %230 : vector<14x32xf32>
    %232 = vector.broadcast %205 : vector<1x32xf32> to vector<14x32xf32>
    %233 = arith.addf %231, %232 : vector<14x32xf32>
    %cst_70 = arith.constant 0.000000e+00 : f32
    %234 = vector.broadcast %cst_70 : f32 to vector<14x32xf32>
    %235 = arith.maximumf %233, %234 : vector<14x32xf32>
    %236 = vector.extract_strided_slice %235 {offsets = [0, 0], sizes = [1, 32], strides = [1, 1]} : vector<14x32xf32> to vector<1x32xf32>
    %237 = vector.extract_strided_slice %235 {offsets = [1, 0], sizes = [1, 32], strides = [1, 1]} : vector<14x32xf32> to vector<1x32xf32>
    %238 = vector.extract_strided_slice %235 {offsets = [2, 0], sizes = [1, 32], strides = [1, 1]} : vector<14x32xf32> to vector<1x32xf32>
    %239 = arith.maximumf %237, %238 : vector<1x32xf32>
    %240 = vector.extract_strided_slice %235 {offsets = [3, 0], sizes = [1, 32], strides = [1, 1]} : vector<14x32xf32> to vector<1x32xf32>
    %241 = vector.extract_strided_slice %235 {offsets = [4, 0], sizes = [1, 32], strides = [1, 1]} : vector<14x32xf32> to vector<1x32xf32>
    %242 = arith.maximumf %240, %241 : vector<1x32xf32>
    %243 = vector.extract_strided_slice %235 {offsets = [5, 0], sizes = [1, 32], strides = [1, 1]} : vector<14x32xf32> to vector<1x32xf32>
    %244 = vector.extract_strided_slice %235 {offsets = [6, 0], sizes = [1, 32], strides = [1, 1]} : vector<14x32xf32> to vector<1x32xf32>
    %245 = arith.maximumf %243, %244 : vector<1x32xf32>
    %246 = vector.extract_strided_slice %235 {offsets = [7, 0], sizes = [1, 32], strides = [1, 1]} : vector<14x32xf32> to vector<1x32xf32>
    %247 = vector.extract_strided_slice %235 {offsets = [8, 0], sizes = [1, 32], strides = [1, 1]} : vector<14x32xf32> to vector<1x32xf32>
    %248 = vector.extract_strided_slice %235 {offsets = [9, 0], sizes = [1, 32], strides = [1, 1]} : vector<14x32xf32> to vector<1x32xf32>
    %249 = arith.maximumf %247, %248 : vector<1x32xf32>
    %250 = vector.extract_strided_slice %235 {offsets = [10, 0], sizes = [1, 32], strides = [1, 1]} : vector<14x32xf32> to vector<1x32xf32>
    %251 = vector.extract_strided_slice %235 {offsets = [11, 0], sizes = [1, 32], strides = [1, 1]} : vector<14x32xf32> to vector<1x32xf32>
    %252 = arith.maximumf %250, %251 : vector<1x32xf32>
    %253 = vector.extract_strided_slice %235 {offsets = [12, 0], sizes = [1, 32], strides = [1, 1]} : vector<14x32xf32> to vector<1x32xf32>
    %254 = vector.extract_strided_slice %235 {offsets = [13, 0], sizes = [1, 32], strides = [1, 1]} : vector<14x32xf32> to vector<1x32xf32>
    %255 = arith.maximumf %253, %254 : vector<1x32xf32>
    %256 = tpu.concatenate %236, %239, %242, %245, %246, %249, %252, %255 in 0 : vector<1x32xf32>, vector<1x32xf32>, vector<1x32xf32>, vector<1x32xf32>, vector<1x32xf32>, vector<1x32xf32>, vector<1x32xf32>, vector<1x32xf32> -> vector<8x32xf32>
    %c0_71 = arith.constant 0 : index
    %c0_72 = arith.constant 0 : index
    %257 = vector.load %arg10[%c0_71, %c0_72] : memref<8x8xf32, #tpu.memory_space<vmem>>, vector<8x8xf32>
    %cst_73 = arith.constant dense<0.000000e+00> : vector<8x32xf32>
    %258 = tpu.matmul %257, %256, %cst_73 {dimension_numbers = #tpu.dot_dimension_numbers<[1], [0], [0], [1], [0, 0, 1, 1], [], []>} : vector<8x8xf32>, vector<8x32xf32>, vector<8x32xf32> -> vector<8x32xf32>
    %259 = vector.extract_strided_slice %258 {offsets = [0, 0], sizes = [2, 32], strides = [1, 1]} : vector<8x32xf32> to vector<2x32xf32>
    %c0_74 = arith.constant 0 : index
    %c0_75 = arith.constant 0 : index
    %c0_76 = arith.constant 0 : index
    %260 = vector.load %arg13[%c0_74, %c0_75, %c0_76] : memref<4x32x128xf32, #tpu.memory_space<vmem>>, vector<1x32x128xf32>
    %261 = vector.shape_cast %260 : vector<1x32x128xf32> to vector<32x128xf32>
    %cst_77 = arith.constant dense<0.000000e+00> : vector<2x128xf32>
    %262 = tpu.matmul %259, %261, %cst_77 {dimension_numbers = #tpu.dot_dimension_numbers<[1], [0], [0], [1], [0, 0, 1, 1], [], []>} : vector<2x32xf32>, vector<32x128xf32>, vector<2x128xf32> -> vector<2x128xf32>
    %263 = vector.extract_strided_slice %258 {offsets = [2, 0], sizes = [2, 32], strides = [1, 1]} : vector<8x32xf32> to vector<2x32xf32>
    %c1_78 = arith.constant 1 : index
    %c0_79 = arith.constant 0 : index
    %c0_80 = arith.constant 0 : index
    %264 = vector.load %arg13[%c1_78, %c0_79, %c0_80] : memref<4x32x128xf32, #tpu.memory_space<vmem>>, vector<1x32x128xf32>
    %265 = vector.shape_cast %264 : vector<1x32x128xf32> to vector<32x128xf32>
    %cst_81 = arith.constant dense<0.000000e+00> : vector<2x128xf32>
    %266 = tpu.matmul %263, %265, %cst_81 {dimension_numbers = #tpu.dot_dimension_numbers<[1], [0], [0], [1], [0, 0, 1, 1], [], []>} : vector<2x32xf32>, vector<32x128xf32>, vector<2x128xf32> -> vector<2x128xf32>
    %267 = arith.addf %262, %266 : vector<2x128xf32>
    %268 = vector.extract_strided_slice %258 {offsets = [4, 0], sizes = [2, 32], strides = [1, 1]} : vector<8x32xf32> to vector<2x32xf32>
    %c2_82 = arith.constant 2 : index
    %c0_83 = arith.constant 0 : index
    %c0_84 = arith.constant 0 : index
    %269 = vector.load %arg13[%c2_82, %c0_83, %c0_84] : memref<4x32x128xf32, #tpu.memory_space<vmem>>, vector<1x32x128xf32>
    %270 = vector.shape_cast %269 : vector<1x32x128xf32> to vector<32x128xf32>
    %cst_85 = arith.constant dense<0.000000e+00> : vector<2x128xf32>
    %271 = tpu.matmul %268, %270, %cst_85 {dimension_numbers = #tpu.dot_dimension_numbers<[1], [0], [0], [1], [0, 0, 1, 1], [], []>} : vector<2x32xf32>, vector<32x128xf32>, vector<2x128xf32> -> vector<2x128xf32>
    %272 = arith.addf %267, %271 : vector<2x128xf32>
    %273 = vector.extract_strided_slice %258 {offsets = [6, 0], sizes = [2, 32], strides = [1, 1]} : vector<8x32xf32> to vector<2x32xf32>
    %c3_86 = arith.constant 3 : index
    %c0_87 = arith.constant 0 : index
    %c0_88 = arith.constant 0 : index
    %274 = vector.load %arg13[%c3_86, %c0_87, %c0_88] : memref<4x32x128xf32, #tpu.memory_space<vmem>>, vector<1x32x128xf32>
    %275 = vector.shape_cast %274 : vector<1x32x128xf32> to vector<32x128xf32>
    %cst_89 = arith.constant dense<0.000000e+00> : vector<2x128xf32>
    %276 = tpu.matmul %273, %275, %cst_89 {dimension_numbers = #tpu.dot_dimension_numbers<[1], [0], [0], [1], [0, 0, 1, 1], [], []>} : vector<2x32xf32>, vector<32x128xf32>, vector<2x128xf32> -> vector<2x128xf32>
    %277 = arith.addf %272, %276 : vector<2x128xf32>
    %c0_90 = arith.constant 0 : index
    %c0_91 = arith.constant 0 : index
    %278 = vector.load %arg19[%c0_90, %c0_91] : memref<2x128xf32, #tpu.memory_space<vmem>>, vector<2x128xf32>
    tpu.vector_store %arg19[%c0_90, %c0_91], %277 {strides = array<i32>} : memref<2x128xf32, #tpu.memory_space<vmem>>, vector<2x128xf32>,
    %c0_92 = arith.constant 0 : index
    %c0_93 = arith.constant 0 : index
    %279 = vector.load %arg14[%c0_92, %c0_93] : memref<128x5xf32, #tpu.memory_space<vmem>>, vector<128x5xf32>
    %cst_94 = arith.constant dense<0.000000e+00> : vector<2x5xf32>
    %280 = tpu.matmul %277, %279, %cst_94 {dimension_numbers = #tpu.dot_dimension_numbers<[1], [0], [0], [1], [0, 0, 1, 1], [], []>} : vector<2x128xf32>, vector<128x5xf32>, vector<2x5xf32> -> vector<2x5xf32>
    %c2_95 = arith.constant 2 : index
    %c0_96 = arith.constant 0 : index
    %281 = vector.load %arg15[%c2_95, %c0_96] : memref<3x5xf32, #tpu.memory_space<vmem>>, vector<1x5xf32>
    %282 = vector.broadcast %281 : vector<1x5xf32> to vector<2x5xf32>
    %283 = arith.addf %280, %282 : vector<2x5xf32>
    %c0_97 = arith.constant 0 : index
    %c0_98 = arith.constant 0 : index
    %284 = vector.load %arg18[%c0_97, %c0_98] : memref<2x5xf32, #tpu.memory_space<vmem>>, vector<2x5xf32>
    tpu.vector_store %arg18[%c0_97, %c0_98], %283 {strides = array<i32>} : memref<2x5xf32, #tpu.memory_space<vmem>>, vector<2x5xf32>,
    return
  }
  func.func @transform_0(%arg0: i32) -> (i32, i32, i32) {
    %c0_i32 = arith.constant 0 : i32
    %c0_i32_0 = arith.constant 0 : i32
    %c0_i32_1 = arith.constant 0 : i32
    return %arg0, %c0_i32, %c0_i32_0 : i32, i32, i32
  }
  func.func @transform_1(%arg0: i32) -> (i32, i32) {
    %c0_i32 = arith.constant 0 : i32
    %c0_i32_0 = arith.constant 0 : i32
    %c0_i32_1 = arith.constant 0 : i32
    return %c0_i32, %c0_i32_0 : i32, i32
  }
  func.func @transform_2(%arg0: i32) -> (i32, i32) {
    %c0_i32 = arith.constant 0 : i32
    %c0_i32_0 = arith.constant 0 : i32
    %c0_i32_1 = arith.constant 0 : i32
    return %c0_i32, %c0_i32_0 : i32, i32
  }
  func.func @transform_3(%arg0: i32) -> (i32, i32) {
    %c0_i32 = arith.constant 0 : i32
    %c0_i32_0 = arith.constant 0 : i32
    %c0_i32_1 = arith.constant 0 : i32
    return %c0_i32, %c0_i32_0 : i32, i32
  }
  func.func @transform_4(%arg0: i32) -> (i32, i32) {
    %c0_i32 = arith.constant 0 : i32
    %c0_i32_0 = arith.constant 0 : i32
    %c0_i32_1 = arith.constant 0 : i32
    return %c0_i32, %c0_i32_0 : i32, i32
  }
  func.func @transform_5(%arg0: i32) -> (i32, i32) {
    %c0_i32 = arith.constant 0 : i32
    %c0_i32_0 = arith.constant 0 : i32
    %c0_i32_1 = arith.constant 0 : i32
    return %c0_i32, %c0_i32_0 : i32, i32
  }
  func.func @transform_6(%arg0: i32) -> (i32, i32) {
    %c0_i32 = arith.constant 0 : i32
    %c0_i32_0 = arith.constant 0 : i32
    %c0_i32_1 = arith.constant 0 : i32
    return %c0_i32, %c0_i32_0 : i32, i32
  }
  func.func @transform_7(%arg0: i32) -> (i32, i32) {
    %c0_i32 = arith.constant 0 : i32
    %c0_i32_0 = arith.constant 0 : i32
    %c0_i32_1 = arith.constant 0 : i32
    return %c0_i32, %c0_i32_0 : i32, i32
  }
  func.func @transform_8(%arg0: i32) -> (i32, i32) {
    %c0_i32 = arith.constant 0 : i32
    %c0_i32_0 = arith.constant 0 : i32
    %c0_i32_1 = arith.constant 0 : i32
    return %c0_i32, %c0_i32_0 : i32, i32
  }
  func.func @transform_9(%arg0: i32) -> (i32, i32) {
    %c0_i32 = arith.constant 0 : i32
    %c0_i32_0 = arith.constant 0 : i32
    %c0_i32_1 = arith.constant 0 : i32
    return %c0_i32, %c0_i32_0 : i32, i32
  }
  func.func @transform_10(%arg0: i32) -> (i32, i32, i32) {
    %c0_i32 = arith.constant 0 : i32
    %c0_i32_0 = arith.constant 0 : i32
    %c0_i32_1 = arith.constant 0 : i32
    %c0_i32_2 = arith.constant 0 : i32
    return %c0_i32, %c0_i32_0, %c0_i32_1 : i32, i32, i32
  }
  func.func @transform_11(%arg0: i32) -> (i32, i32, i32) {
    %c0_i32 = arith.constant 0 : i32
    %c0_i32_0 = arith.constant 0 : i32
    %c0_i32_1 = arith.constant 0 : i32
    %c0_i32_2 = arith.constant 0 : i32
    return %c0_i32, %c0_i32_0, %c0_i32_1 : i32, i32, i32
  }
  func.func @transform_12(%arg0: i32) -> (i32, i32, i32) {
    %c0_i32 = arith.constant 0 : i32
    %c0_i32_0 = arith.constant 0 : i32
    %c0_i32_1 = arith.constant 0 : i32
    %c0_i32_2 = arith.constant 0 : i32
    return %c0_i32, %c0_i32_0, %c0_i32_1 : i32, i32, i32
  }
  func.func @transform_13(%arg0: i32) -> (i32, i32) {
    %c0_i32 = arith.constant 0 : i32
    %c0_i32_0 = arith.constant 0 : i32
    %c0_i32_1 = arith.constant 0 : i32
    return %c0_i32, %c0_i32_0 : i32, i32
  }
  func.func @transform_14(%arg0: i32) -> (i32, i32) {
    %c0_i32 = arith.constant 0 : i32
    %c0_i32_0 = arith.constant 0 : i32
    %c0_i32_1 = arith.constant 0 : i32
    return %c0_i32, %c0_i32_0 : i32, i32
  }
  func.func @transform_15(%arg0: i32) -> (i32, i32) {
    %c0_i32 = arith.constant 0 : i32
    %c0_i32_0 = arith.constant 0 : i32
    return %arg0, %c0_i32 : i32, i32
  }
  func.func @transform_16(%arg0: i32) -> (i32, i32) {
    %c0_i32 = arith.constant 0 : i32
    %c0_i32_0 = arith.constant 0 : i32
    return %arg0, %c0_i32 : i32, i32
  }
  func.func @transform_17(%arg0: i32) -> (i32, i32) {
    %c0_i32 = arith.constant 0 : i32
    %c0_i32_0 = arith.constant 0 : i32
    return %arg0, %c0_i32 : i32, i32
  }
  func.func @transform_18(%arg0: i32) -> (i32, i32) {
    %c0_i32 = arith.constant 0 : i32
    %c0_i32_0 = arith.constant 0 : i32
    return %arg0, %c0_i32 : i32, i32
  }
}

</mosaic_0001>

<llo_original>
// kernel: _lambda_.1
$region0: #{_lambda_.1}
  #allocation0 [shape = 'u32[]', space=smem, size = 0x4, offset = 0x4, fixed_abs, tag = 'smem constant byte address 0x4 - core index']
  #allocation1 [shape = 'u32[144,128]{1,0:T(1,128)}', space=vmem, size = 0x12000, scoped, tag = 'internal scratch']
  %s0 = inlined_call_operand.vmem [shape: f32[2,16,4], index: 0, kind: input, shape index: {}]
  %s1 = inlined_call_operand.vmem [shape: f32[28,8], index: 1, kind: input, shape index: {}]
  %s2 = inlined_call_operand.vmem [shape: f32[2,8], index: 2, kind: input, shape index: {}]
  %s3 = inlined_call_operand.vmem [shape: f32[64,16], index: 3, kind: input, shape index: {}]
  %s4 = inlined_call_operand.vmem [shape: f32[2,16], index: 4, kind: input, shape index: {}]
  %s5 = inlined_call_operand.vmem [shape: f32[128,32], index: 5, kind: input, shape index: {}]
  %s6 = inlined_call_operand.vmem [shape: f32[2,32], index: 6, kind: input, shape index: {}]
  %s7 = inlined_call_operand.vmem [shape: f32[8,18], index: 7, kind: input, shape index: {}]
  %s8 = inlined_call_operand.vmem [shape: f32[8,12], index: 8, kind: input, shape index: {}]
  %s9 = inlined_call_operand.vmem [shape: f32[8,8], index: 9, kind: input, shape index: {}]
  %s10 = inlined_call_operand.vmem [shape: f32[4,8,5], index: 10, kind: input, shape index: {}]
  %s11 = inlined_call_operand.vmem [shape: f32[4,16,5], index: 11, kind: input, shape index: {}]
  %s12 = inlined_call_operand.vmem [shape: f32[4,32,128], index: 12, kind: input, shape index: {}]
  %s13 = inlined_call_operand.vmem [shape: f32[128,5], index: 13, kind: input, shape index: {}]
  %s14 = inlined_call_operand.vmem [shape: f32[3,5], index: 14, kind: input, shape index: {}]
  %s15 = inlined_call_operand.hbm [shape: f32[2,5], index: 15, kind: output, shape index: {0}]
  %s16 = inlined_call_operand.hbm [shape: f32[2,5], index: 16, kind: output, shape index: {1}]
  %s17 = inlined_call_operand.hbm [shape: f32[2,5], index: 17, kind: output, shape index: {2}]
  %s18 = inlined_call_operand.hbm [shape: f32[2,128], index: 18, kind: output, shape index: {3}]
  %19 = xla_tuple %s15, %s16, %s17, %s18
  %s20 = sld [smem:[#allocation0]]
  $region94: #{_lambda_.1} parent=0
    _
  %s22 = ssub.s32 1, %s20
  %s23 = scalar_select 0, %s22, %s20
  $region1: #{_lambda_.1} parent=0
    #allocation2 [shape = 'u8[1024]{0}', space=vmem, size = 0x400, scoped, tag = 'output window, operand 0, single buffered']
    #allocation3 [shape = 's32[1]{0}', space=sflag, size = 0x4, scoped, tag = 'scoped memory for _lambda_.1']
    #allocation4 [shape = 'u8[1024]{0}', space=vmem, size = 0x400, scoped, tag = 'output window, operand 1, single buffered']
    #allocation5 [shape = 's32[1]{0}', space=sflag, size = 0x4, scoped, tag = 'scoped memory for _lambda_.1']
    #allocation6 [shape = 'u8[1024]{0}', space=vmem, size = 0x400, scoped, tag = 'output window, operand 2, single buffered']
    #allocation7 [shape = 'u8[1024]{0}', space=vmem, size = 0x400, scoped, tag = 'output window, operand 3, single buffered']
    #allocation8 [shape = 's32[1]{0}', space=sflag, size = 0x4, scoped, tag = 'scoped memory for _lambda_.1']
    %24 = vsyncpa [#allocation3], 0
    %25 = vsyncpa [#allocation5], 0
    %26 = vsyncpa [#allocation8], 0
    // Predicated region
    $region2: #{_lambda_.1} parent=1 // pred_check
      _
    $region3: #{_lambda_.1} parent=1 // pred_check_branch
      %28 = sbr.rel (0) target = $region5
    $region4: #{_lambda_.1} parent=1 // pred_region
      _
    $region5: #{_lambda_.1} parent=1 // pred_fallthru
      _
    // Predicated region
    $region6: #{_lambda_.1} parent=1 // pred_check
      _
    $region7: #{_lambda_.1} parent=1 // pred_check_branch
      %30 = sbr.rel (0) target = $region9
    $region8: #{_lambda_.1} parent=1 // pred_region
      _
    $region9: #{_lambda_.1} parent=1 // pred_fallthru
      _
    // Predicated region
    $region10: #{_lambda_.1} parent=1 // pred_check
      _
    $region11: #{_lambda_.1} parent=1 // pred_check_branch
      %32 = sbr.rel (0) target = $region13
    $region12: #{_lambda_.1} parent=1 // pred_region
      _
    $region13: #{_lambda_.1} parent=1 // pred_fallthru
      _
    // Predicated region
    $region14: #{_lambda_.1} parent=1 // pred_check
      _
    $region15: #{_lambda_.1} parent=1 // pred_check_branch
      %34 = sbr.rel (0) target = $region17
    $region16: #{_lambda_.1} parent=1 // pred_region
      _
    $region17: #{_lambda_.1} parent=1 // pred_fallthru
      _
    // Predicated region
    $region18: #{_lambda_.1} parent=1 // pred_check
      _
    $region19: #{_lambda_.1} parent=1 // pred_check_branch
      %36 = sbr.rel (0) target = $region21
    $region20: #{_lambda_.1} parent=1 // pred_region
      _
    $region21: #{_lambda_.1} parent=1 // pred_fallthru
      _
    // Predicated region
    $region22: #{_lambda_.1} parent=1 // pred_check
      _
    $region23: #{_lambda_.1} parent=1 // pred_check_branch
      %38 = sbr.rel (0) target = $region25
    $region24: #{_lambda_.1} parent=1 // pred_region
      _
    $region25: #{_lambda_.1} parent=1 // pred_fallthru
      _
    // Predicated region
    $region26: #{_lambda_.1} parent=1 // pred_check
      _
    $region27: #{_lambda_.1} parent=1 // pred_check_branch
      %40 = sbr.rel (0) target = $region29
    $region28: #{_lambda_.1} parent=1 // pred_region
      _
    $region29: #{_lambda_.1} parent=1 // pred_fallthru
      _
    // Predicated region
    $region30: #{_lambda_.1} parent=1 // pred_check
      _
    $region31: #{_lambda_.1} parent=1 // pred_check_branch
      %42 = sbr.rel (0) target = $region33
    $region32: #{_lambda_.1} parent=1 // pred_region
      _
    $region33: #{_lambda_.1} parent=1 // pred_fallthru
      _
    // Predicated region
    $region34: #{_lambda_.1} parent=1 // pred_check
      _
    $region35: #{_lambda_.1} parent=1 // pred_check_branch
      %44 = sbr.rel (0) target = $region37
    $region36: #{_lambda_.1} parent=1 // pred_region
      _
    $region37: #{_lambda_.1} parent=1 // pred_fallthru
      _
    // Predicated region
    $region38: #{_lambda_.1} parent=1 // pred_check
      _
    $region39: #{_lambda_.1} parent=1 // pred_check_branch
      %46 = sbr.rel (0) target = $region41
    $region40: #{_lambda_.1} parent=1 // pred_region
      _
    $region41: #{_lambda_.1} parent=1 // pred_fallthru
      _
    // Predicated region
    $region42: #{_lambda_.1} parent=1 // pred_check
      _
    $region43: #{_lambda_.1} parent=1 // pred_check_branch
      %48 = sbr.rel (0) target = $region45
    $region44: #{_lambda_.1} parent=1 // pred_region
      _
    $region45: #{_lambda_.1} parent=1 // pred_fallthru
      _
    // Predicated region
    $region46: #{_lambda_.1} parent=1 // pred_check
      _
    $region47: #{_lambda_.1} parent=1 // pred_check_branch
      %50 = sbr.rel (0) target = $region49
    $region48: #{_lambda_.1} parent=1 // pred_region
      _
    $region49: #{_lambda_.1} parent=1 // pred_fallthru
      _
    // Predicated region
    $region50: #{_lambda_.1} parent=1 // pred_check
      _
    $region51: #{_lambda_.1} parent=1 // pred_check_branch
      %52 = sbr.rel (0) target = $region53
    $region52: #{_lambda_.1} parent=1 // pred_region
      _
    $region53: #{_lambda_.1} parent=1 // pred_fallthru
      _
    // Predicated region
    $region54: #{_lambda_.1} parent=1 // pred_check
      _
    $region55: #{_lambda_.1} parent=1 // pred_check_branch
      %54 = sbr.rel (0) target = $region57
    $region56: #{_lambda_.1} parent=1 // pred_region
      _
    $region57: #{_lambda_.1} parent=1 // pred_fallthru
      _
    // Predicated region
    $region58: #{_lambda_.1} parent=1 // pred_check
      _
    $region59: #{_lambda_.1} parent=1 // pred_check_branch
      %56 = sbr.rel (0) target = $region61
    $region60: #{_lambda_.1} parent=1 // pred_region
      _
    $region61: #{_lambda_.1} parent=1 // pred_fallthru
      _
    %v57 = vld [vmem:[%s0] sm:$0xff]
    %v58 = vld [vmem:[%s0 + $0x8] sm:$0xff]
    %s59 = scalar_lea.vmem %s0, 16
    %v60 = vld [vmem:[%s59] sm:$0xff]
    %v61 = vld [vmem:[%s59 + $0x8] sm:$0xff]
    %v62 = vld [vmem:[%s1] sm:$0xff]
    %v63 = vld [vmem:[%s1 + $0x8] sm:$0xff]
    %v64 = vld [vmem:[%s1 + $0x10] sm:$0xff]
    %v65 = vld [vmem:[%s1 + $0x18] sm:$0xf]
    %v66 = vld [vmem:[%s2] sm:$0x3]
    %vm69 = vcmask 1042432
    %v70 = vrot.slane %v57, 5
    %v71 = vrot.slane %v58, 5
    %v72 = vsel %vm69, %v70, %v71
    %v76 = vsel %vm69, 0.0, %v70
    %v77 = vsel %vm69, %v71, 0.0
    %vm80 = vcmask 1046528
    %v81 = vrot.slane %v76, 1
    %v82 = vrot.slane %v72, 1
    %v83 = vsel %vm80, %v81, %v82
    %v84 = vrot.slane %v77, 1
    %v85 = vsel %vm80, %v82, %v84
    %86 = vrot.lane.b32.xlu0 %v83, 4
    %v87 = vpop.permute.xlu0 %86
    %88 = vrot.lane.b32.xlu0 %v85, 4
    %v89 = vpop.permute.xlu0 %88
    %vm92 = vcmask 1045504
    %v93 = vrot.slane %v76, 2
    %v94 = vrot.slane %v72, 2
    %v95 = vsel %vm92, %v93, %v94
    %v96 = vrot.slane %v77, 2
    %v97 = vsel %vm92, %v94, %v96
    %98 = vrot.lane.b32.xlu0 %v95, 8
    %v99 = vpop.permute.xlu0 %98
    %100 = vrot.lane.b32.xlu0 %v97, 8
    %v101 = vpop.permute.xlu0 %100
    %vm104 = vcmask 1044480
    %v105 = vrot.slane %v76, 3
    %v106 = vrot.slane %v72, 3
    %v107 = vsel %vm104, %v105, %v106
    %v108 = vrot.slane %v77, 3
    %v109 = vsel %vm104, %v106, %v108
    %110 = vrot.lane.b32.xlu0 %v107, 12
    %v111 = vpop.permute.xlu0 %110
    %112 = vrot.lane.b32.xlu0 %v109, 12
    %v113 = vpop.permute.xlu0 %112
    %vm116 = vcmask 1043456
    %v117 = vrot.slane %v76, 4
    %v118 = vrot.slane %v72, 4
    %v119 = vsel %vm116, %v117, %v118
    %v120 = vrot.slane %v77, 4
    %v121 = vsel %vm116, %v118, %v120
    %122 = vrot.lane.b32.xlu0 %v119, 16
    %v123 = vpop.permute.xlu0 %122
    %124 = vrot.lane.b32.xlu0 %v121, 16
    %v125 = vpop.permute.xlu0 %124
    %v128 = vrot.slane %v76, 5
    %v129 = vrot.slane %v72, 5
    %v130 = vsel %vm69, %v128, %v129
    %v131 = vrot.slane %v77, 5
    %v132 = vsel %vm69, %v129, %v131
    %133 = vrot.lane.b32.xlu0 %v130, 20
    %v134 = vpop.permute.xlu0 %133
    %135 = vrot.lane.b32.xlu0 %v132, 20
    %v136 = vpop.permute.xlu0 %135
    %vm139 = vcmask 1041408
    %v140 = vrot.slane %v76, 6
    %v141 = vrot.slane %v72, 6
    %v142 = vsel %vm139, %v140, %v141
    %v143 = vrot.slane %v77, 6
    %v144 = vsel %vm139, %v141, %v143
    %145 = vrot.lane.b32.xlu0 %v142, 24
    %v146 = vpop.permute.xlu0 %145
    %147 = vrot.lane.b32.xlu0 %v144, 24
    %v148 = vpop.permute.xlu0 %147
    %vm151 = vcmask 31744
    %v152 = vsel %vm151, %v76, %v87
    %v153 = vsel %vm151, %v72, %v89
    %vm154 = vcmask 64512
    %v155 = vsel %vm154, %v152, %v99
    %v156 = vsel %vm154, %v153, %v101
    %vm157 = vcmask 97280
    %v158 = vsel %vm157, %v155, %v111
    %v159 = vsel %vm157, %v156, %v113
    %vm160 = vcmask 130048
    %v161 = vsel %vm160, %v158, %v123
    %v162 = vsel %vm160, %v159, %v125
    %vm163 = vcmask 162816
    %v164 = vsel %vm163, %v161, %v134
    %v165 = vsel %vm163, %v162, %v136
    %vm166 = vcmask 195584
    %v167 = vsel %vm166, %v164, %v146
    %v168 = vsel %vm166, %v165, %v148
    %v171 = vrot.slane %v60, 5
    %v172 = vrot.slane %v61, 5
    %v173 = vsel %vm69, %v171, %v172
    %v177 = vsel %vm69, 0.0, %v171
    %v178 = vsel %vm69, %v172, 0.0
    %v181 = vrot.slane %v177, 1
    %v182 = vrot.slane %v173, 1
    %v183 = vsel %vm80, %v181, %v182
    %v184 = vrot.slane %v178, 1
    %v185 = vsel %vm80, %v182, %v184
    %186 = vrot.lane.b32.xlu0 %v183, 4
    %v187 = vpop.permute.xlu0 %186
    %188 = vrot.lane.b32.xlu0 %v185, 4
    %v189 = vpop.permute.xlu0 %188
    %v192 = vrot.slane %v177, 2
    %v193 = vrot.slane %v173, 2
    %v194 = vsel %vm92, %v192, %v193
    %v195 = vrot.slane %v178, 2
    %v196 = vsel %vm92, %v193, %v195
    %197 = vrot.lane.b32.xlu0 %v194, 8
    %v198 = vpop.permute.xlu0 %197
    %199 = vrot.lane.b32.xlu0 %v196, 8
    %v200 = vpop.permute.xlu0 %199
    %v203 = vrot.slane %v177, 3
    %v204 = vrot.slane %v173, 3
    %v205 = vsel %vm104, %v203, %v204
    %v206 = vrot.slane %v178, 3
    %v207 = vsel %vm104, %v204, %v206
    %208 = vrot.lane.b32.xlu0 %v205, 12
    %v209 = vpop.permute.xlu0 %208
    %210 = vrot.lane.b32.xlu0 %v207, 12
    %v211 = vpop.permute.xlu0 %210
    %v214 = vrot.slane %v177, 4
    %v215 = vrot.slane %v173, 4
    %v216 = vsel %vm116, %v214, %v215
    %v217 = vrot.slane %v178, 4
    %v218 = vsel %vm116, %v215, %v217
    %219 = vrot.lane.b32.xlu0 %v216, 16
    %v220 = vpop.permute.xlu0 %219
    %221 = vrot.lane.b32.xlu0 %v218, 16
    %v222 = vpop.permute.xlu0 %221
    %v225 = vrot.slane %v177, 5
    %v226 = vrot.slane %v173, 5
    %v227 = vsel %vm69, %v225, %v226
    %v228 = vrot.slane %v178, 5
    %v229 = vsel %vm69, %v226, %v228
    %230 = vrot.lane.b32.xlu0 %v227, 20
    %v231 = vpop.permute.xlu0 %230
    %232 = vrot.lane.b32.xlu0 %v229, 20
    %v233 = vpop.permute.xlu0 %232
    %v236 = vrot.slane %v177, 6
    %v237 = vrot.slane %v173, 6
    %v238 = vsel %vm139, %v236, %v237
    %v239 = vrot.slane %v178, 6
    %v240 = vsel %vm139, %v237, %v239
    %241 = vrot.lane.b32.xlu0 %v238, 24
    %v242 = vpop.permute.xlu0 %241
    %243 = vrot.lane.b32.xlu0 %v240, 24
    %v244 = vpop.permute.xlu0 %243
    %v247 = vsel %vm151, %v177, %v187
    %v248 = vsel %vm151, %v173, %v189
    %v249 = vsel %vm154, %v247, %v198
    %v250 = vsel %vm154, %v248, %v200
    %v251 = vsel %vm157, %v249, %v209
    %v252 = vsel %vm157, %v250, %v211
    %v253 = vsel %vm160, %v251, %v220
    %v254 = vsel %vm160, %v252, %v222
    %v255 = vsel %vm163, %v253, %v231
    %v256 = vsel %vm163, %v254, %v233
    %v257 = vsel %vm166, %v255, %v242
    %v258 = vsel %vm166, %v256, %v244
    %vm259 = vcmask 228352
    %v261 = vsel %vm259, %v167, 0
    %v264 = vsel %vm259, %v168, 0
    %v267 = vsel %vm259, %v257, 0
    %v270 = vsel %vm259, %v258, 0
    %v273 = vsel %vm116, %v65, 0
    %275 = vmatprep.subr.mxu0 0.0
    %276 = vmatpush1.msra.mxu0 %v62
    %277 = vmatprep.subr.mxu0 0.0
    %278 = vmatpush1.msra.mxu0 %v63
    %279 = vmatprep.subr.mxu0 0.0
    %280 = vmatpush1.msra.mxu0 %v64
    %281 = vmatprep.subr.mxu0 0.0
    %282 = vmatpush1.msra.mxu0 %v273
    %283 = vmatprep.subr.mxu0 0.0
    %284 = vmatpush1.msra.mxu0 0.0
    %285 = vmatprep.subr.mxu0 0.0
    %286 = vmatpush1.msra.mxu0 0.0
    %287 = vmatprep.subr.mxu0 0.0
    %288 = vmatpush1.msra.mxu0 0.0
    %289 = vmatprep.subr.mxu0 0.0
    %290 = vmatpush1.msra.mxu0 0.0
    %291 = vmatprep.subr.mxu0 0.0
    %292 = vmatpush1.msra.mxu0 0.0
    %293 = vmatprep.subr.mxu0 0.0
    %294 = vmatpush1.msra.mxu0 0.0
    %295 = vmatprep.subr.mxu0 0.0
    %296 = vmatpush1.msra.mxu0 0.0
    %297 = vmatprep.subr.mxu0 0.0
    %298 = vmatpush1.msra.mxu0 0.0
    %299 = vmatprep.subr.mxu0 0.0
    %300 = vmatpush1.msra.mxu0 0.0
    %301 = vmatprep.subr.mxu0 0.0
    %302 = vmatpush1.msra.mxu0 0.0
    %303 = vmatprep.subr.mxu0 0.0
    %304 = vmatpush1.msra.mxu0 0.0
    %305 = vmatprep.subr.mxu0 0.0
    %306 = vmatpush1.msra.mxu0 0.0
    %307 = vmatprep.subr.mxu0 0.0
    %308 = vmatpush1.msra.mxu0 0.0
    %309 = vmatprep.subr.mxu0 0.0
    %310 = vmatpush1.msra.mxu0 0.0
    %311 = vmatprep.subr.mxu0 0.0
    %312 = vmatpush1.msra.mxu0 0.0
    %313 = vmatprep.subr.mxu0 0.0
    %314 = vmatpush1.msra.mxu0 0.0
    %315 = vmatprep.subr.mxu0 0.0
    %316 = vmatpush1.msra.mxu0 0.0
    %317 = vmatprep.subr.mxu0 0.0
    %318 = vmatpush1.msra.mxu0 0.0
    %319 = vmatprep.subr.mxu0 0.0
    %320 = vmatpush1.msra.mxu0 0.0
    %321 = vmatprep.subr.mxu0 0.0
    %322 = vmatpush1.msra.mxu0 0.0
    %323 = vmatprep.subr.mxu0 0.0
    %324 = vmatpush1.msra.mxu0 0.0
    %325 = vmatprep.subr.mxu0 0.0
    %326 = vmatpush1.msra.mxu0 0.0
    %327 = vmatprep.subr.mxu0 0.0
    %328 = vmatpush1.msra.mxu0 0.0
    %329 = vmatprep.subr.mxu0 0.0
    %330 = vmatpush1.msra.mxu0 0.0
    %331 = vmatprep.subr.mxu0 0.0
    %332 = vmatpush1.msra.mxu0 0.0
    %333 = vmatprep.subr.mxu0 0.0
    %334 = vmatpush1.msra.mxu0 0.0
    %335 = vmatprep.subr.mxu0 0.0
    %336 = vmatpush1.msra.mxu0 0.0
    %337 = vmatprep.subr.mxu0 0.0
    %338 = vmatpush1.msra.mxu0 0.0
    %339 = vmatprep.mubr.f32.mxu0 0.0
    %340 = vmatmul.mubr.f32.gmra.mrb[0].mxu0 %v261
    %v341 = vpop.f32.mrb[0].mxu0
    %v342 = vadd.f32 0.0, %v341
    %v343 = vpop.f32.mrb[0].mxu0
    %344 = vmatprep.mubr.f32.mxu0 0.0
    %345 = vmatmul.mubr.f32.gmra.mrb[0].mxu0 %v264
    %v346 = vpop.f32.mrb[0].mxu0
    %v347 = vadd.f32 0.0, %v346
    %v348 = vpop.f32.mrb[0].mxu0
    %349 = vmatprep.mubr.f32.mxu0 0.0
    %350 = vmatmul.mubr.f32.gmra.mrb[0].mxu0 %v267
    %v351 = vpop.f32.mrb[0].mxu0
    %v352 = vadd.f32 0.0, %v351
    %v353 = vpop.f32.mrb[0].mxu0
    %354 = vmatprep.mubr.f32.mxu0 0.0
    %355 = vmatmul.mubr.f32.gmra.mrb[0].mxu0 %v270
    %v356 = vpop.f32.mrb[0].mxu0
    %v357 = vadd.f32 0.0, %v356
    %v358 = vpop.f32.mrb[0].mxu0
    %359 = vdwg.mxu0
    %v360 = vlaneseq
    %v361 = vshrl.u32 %v360, 7
    %v362 = vsub.s32 0, %v361
    %v363 = vrot.slane %v66, %v362
    %v364 = vmul.f32 %v342, %v363
    %v365 = vmul.f32 %v347, %v363
    %v366 = vmul.f32 %v352, %v363
    %v367 = vmul.f32 %v357, %v363
    %v368 = vlaneseq
    %v369 = vshrl.u32 %v368, 7
    %v370 = vsub.s32 1, %v369
    %v371 = vrot.slane %v66, %v370
    %v372 = vadd.f32 %v364, %v371
    %v373 = vadd.f32 %v365, %v371
    %v374 = vadd.f32 %v366, %v371
    %v375 = vadd.f32 %v367, %v371
    %v376 = vmax.f32 %v372, 0.0
    %v377 = vmax.f32 %v373, 0.0
    %v378 = vmax.f32 %v374, 0.0
    %v379 = vmax.f32 %v375, 0.0
    %v381 = vrot.slane %v376, 1
    %v383 = vmax.f32 %v376, %v381
    %v385 = vrot.slane %v377, 1
    %v387 = vmax.f32 %v376, %v385
    %v388 = vmax.f32 %v377, %v385
    %v390 = vrot.slane %v378, 1
    %v392 = vmax.f32 %v378, %v390
    %v394 = vrot.slane %v379, 1
    %v396 = vmax.f32 %v378, %v394
    %v397 = vmax.f32 %v379, %v394
    %v399 = vrot.slane %v383, 1
    %v401 = vrot.slane %v383, 2
    %v404 = vrot.slane %v387, 3
    %v407 = vrot.slane %v388, 4
    %v409 = vrot.slane %v388, 5
    %v411 = vrot.slane %v388, 6
    %v413 = vrot.slane %v377, 7
    %v415 = vrot.slane %v378, 7
    %v418 = vrot.slane %v392, 7
    %v420 = vrot.slane %v392, 1
    %v423 = vrot.slane %v396, 2
    %v426 = vrot.slane %v397, 3
    %v428 = vrot.slane %v397, 4
    %vm430 = vcmask 1040384
    %v431 = vsel %vm430, %v376, %v383
    %v432 = vsel %vm139, %v431, %v399
    %v433 = vsel %vm69, %v432, %v401
    %v434 = vsel %vm116, %v433, %v404
    %v435 = vsel %vm104, %v434, %v407
    %v436 = vsel %vm92, %v435, %v409
    %v437 = vsel %vm80, %v436, %v411
    %v438 = vsel %vm430, %v413, %v415
    %v439 = vsel %vm139, %v438, %v418
    %v440 = vsel %vm69, %v439, %v392
    %v441 = vsel %vm116, %v440, %v420
    %v442 = vsel %vm104, %v441, %v423
    %v443 = vsel %vm92, %v442, %v426
    %v444 = vsel %vm80, %v443, %v428
    %v445 = vrot.slane %v397, 5
    %v447 = vrot.slane %v379, 6
    %v449 = vsel %vm430, %v445, %v447
    %v450 = vld [vmem:[%s7] sm:$0xff]
    %vm451 = vcmask 146432
    %v453 = vsel %vm451, %v450, 0
    %v456 = vsel %vm139, %v449, 0
    %458 = vmatprep.subr.mxu0 0.0
    %459 = vmatpush1.msra.mxu0 %v437
    %460 = vmatprep.subr.mxu0 0.0
    %461 = vmatpush1.msra.mxu0 %v444
    %462 = vmatprep.subr.mxu0 0.0
    %463 = vmatpush1.msra.mxu0 %v456
    %464 = vmatprep.subr.mxu0 0.0
    %465 = vmatpush1.msra.mxu0 0.0
    %466 = vmatprep.subr.mxu0 0.0
    %467 = vmatpush1.msra.mxu0 0.0
    %468 = vmatprep.subr.mxu0 0.0
    %469 = vmatpush1.msra.mxu0 0.0
    %470 = vmatprep.subr.mxu0 0.0
    %471 = vmatpush1.msra.mxu0 0.0
    %472 = vmatprep.subr.mxu0 0.0
    %473 = vmatpush1.msra.mxu0 0.0
    %474 = vmatprep.subr.mxu0 0.0
    %475 = vmatpush1.msra.mxu0 0.0
    %476 = vmatprep.subr.mxu0 0.0
    %477 = vmatpush1.msra.mxu0 0.0
    %478 = vmatprep.subr.mxu0 0.0
    %479 = vmatpush1.msra.mxu0 0.0
    %480 = vmatprep.subr.mxu0 0.0
    %481 = vmatpush1.msra.mxu0 0.0
    %482 = vmatprep.subr.mxu0 0.0
    %483 = vmatpush1.msra.mxu0 0.0
    %484 = vmatprep.subr.mxu0 0.0
    %485 = vmatpush1.msra.mxu0 0.0
    %486 = vmatprep.subr.mxu0 0.0
    %487 = vmatpush1.msra.mxu0 0.0
    %488 = vmatprep.subr.mxu0 0.0
    %489 = vmatpush1.msra.mxu0 0.0
    %490 = vmatprep.subr.mxu0 0.0
    %491 = vmatpush1.msra.mxu0 0.0
    %492 = vmatprep.subr.mxu0 0.0
    %493 = vmatpush1.msra.mxu0 0.0
    %494 = vmatprep.subr.mxu0 0.0
    %495 = vmatpush1.msra.mxu0 0.0
    %496 = vmatprep.subr.mxu0 0.0
    %497 = vmatpush1.msra.mxu0 0.0
    %498 = vmatprep.subr.mxu0 0.0
    %499 = vmatpush1.msra.mxu0 0.0
    %500 = vmatprep.subr.mxu0 0.0
    %501 = vmatpush1.msra.mxu0 0.0
    %502 = vmatprep.subr.mxu0 0.0
    %503 = vmatpush1.msra.mxu0 0.0
    %504 = vmatprep.subr.mxu0 0.0
    %505 = vmatpush1.msra.mxu0 0.0
    %506 = vmatprep.subr.mxu0 0.0
    %507 = vmatpush1.msra.mxu0 0.0
    %508 = vmatprep.subr.mxu0 0.0
    %509 = vmatpush1.msra.mxu0 0.0
    %510 = vmatprep.subr.mxu0 0.0
    %511 = vmatpush1.msra.mxu0 0.0
    %512 = vmatprep.subr.mxu0 0.0
    %513 = vmatpush1.msra.mxu0 0.0
    %514 = vmatprep.subr.mxu0 0.0
    %515 = vmatpush1.msra.mxu0 0.0
    %516 = vmatprep.subr.mxu0 0.0
    %517 = vmatpush1.msra.mxu0 0.0
    %518 = vmatprep.subr.mxu0 0.0
    %519 = vmatpush1.msra.mxu0 0.0
    %520 = vmatprep.subr.mxu0 0.0
    %521 = vmatpush1.msra.mxu0 0.0
    %522 = vmatprep.mubr.f32.mxu0 0.0
    %523 = vmatmul.mubr.f32.gmra.mrb[0].mxu0 %v453
    %v524 = vpop.f32.mrb[0].mxu0
    %v525 = vadd.f32 0.0, %v524
    %v526 = vpop.f32.mrb[0].mxu0
    %527 = vdwg.mxu0
    %v528 = vld [vmem:[%s14] sm:$0x1]
    %v529 = vld [vmem:[%s10] sm:$0xff]
    %v531 = vsel %vm154, %v525, 0
    %533 = vmatprep.subr.mxu0 0.0
    %534 = vmatpush1.msra.mxu0 %v529
    %535 = vmatprep.subr.mxu0 0.0
    %536 = vmatpush1.msra.mxu0 0.0
    %537 = vmatprep.subr.mxu0 0.0
    %538 = vmatpush1.msra.mxu0 0.0
    %539 = vmatprep.subr.mxu0 0.0
    %540 = vmatpush1.msra.mxu0 0.0
    %541 = vmatprep.subr.mxu0 0.0
    %542 = vmatpush1.msra.mxu0 0.0
    %543 = vmatprep.subr.mxu0 0.0
    %544 = vmatpush1.msra.mxu0 0.0
    %545 = vmatprep.subr.mxu0 0.0
    %546 = vmatpush1.msra.mxu0 0.0
    %547 = vmatprep.subr.mxu0 0.0
    %548 = vmatpush1.msra.mxu0 0.0
    %549 = vmatprep.subr.mxu0 0.0
    %550 = vmatpush1.msra.mxu0 0.0
    %551 = vmatprep.subr.mxu0 0.0
    %552 = vmatpush1.msra.mxu0 0.0
    %553 = vmatprep.subr.mxu0 0.0
    %554 = vmatpush1.msra.mxu0 0.0
    %555 = vmatprep.subr.mxu0 0.0
    %556 = vmatpush1.msra.mxu0 0.0
    %557 = vmatprep.subr.mxu0 0.0
    %558 = vmatpush1.msra.mxu0 0.0
    %559 = vmatprep.subr.mxu0 0.0
    %560 = vmatpush1.msra.mxu0 0.0
    %561 = vmatprep.subr.mxu0 0.0
    %562 = vmatpush1.msra.mxu0 0.0
    %563 = vmatprep.subr.mxu0 0.0
    %564 = vmatpush1.msra.mxu0 0.0
    %565 = vmatprep.subr.mxu0 0.0
    %566 = vmatpush1.msra.mxu0 0.0
    %567 = vmatprep.subr.mxu0 0.0
    %568 = vmatpush1.msra.mxu0 0.0
    %569 = vmatprep.subr.mxu0 0.0
    %570 = vmatpush1.msra.mxu0 0.0
    %571 = vmatprep.subr.mxu0 0.0
    %572 = vmatpush1.msra.mxu0 0.0
    %573 = vmatprep.subr.mxu0 0.0
    %574 = vmatpush1.msra.mxu0 0.0
    %575 = vmatprep.subr.mxu0 0.0
    %576 = vmatpush1.msra.mxu0 0.0
    %577 = vmatprep.subr.mxu0 0.0
    %578 = vmatpush1.msra.mxu0 0.0
    %579 = vmatprep.subr.mxu0 0.0
    %580 = vmatpush1.msra.mxu0 0.0
    %581 = vmatprep.subr.mxu0 0.0
    %582 = vmatpush1.msra.mxu0 0.0
    %583 = vmatprep.subr.mxu0 0.0
    %584 = vmatpush1.msra.mxu0 0.0
    %585 = vmatprep.subr.mxu0 0.0
    %586 = vmatpush1.msra.mxu0 0.0
    %587 = vmatprep.subr.mxu0 0.0
    %588 = vmatpush1.msra.mxu0 0.0
    %589 = vmatprep.subr.mxu0 0.0
    %590 = vmatpush1.msra.mxu0 0.0
    %591 = vmatprep.subr.mxu0 0.0
    %592 = vmatpush1.msra.mxu0 0.0
    %593 = vmatprep.subr.mxu0 0.0
    %594 = vmatpush1.msra.mxu0 0.0
    %595 = vmatprep.subr.mxu0 0.0
    %596 = vmatpush1.msra.mxu0 0.0
    %597 = vmatprep.mubr.f32.mxu0 0.0
    %598 = vmatmul.mubr.f32.gmra.mrb[0].mxu0 %v531
    %v599 = vpop.f32.mrb[0].mxu0
    %v600 = vadd.f32 0.0, %v599
    %v601 = vpop.f32.mrb[0].mxu0
    %602 = vdwg.mxu0
    %v603 = vlaneseq
    %v604 = vshrl.u32 %v603, 7
    %v605 = vsub.s32 0, %v604
    %v606 = vrot.slane %v528, %v605
    %v607 = vadd.f32 %v606, %v600
    %s608 = scalar_lea.vmem %s10, 8
    %v609 = vld [vmem:[%s608] sm:$0xff]
    %v610 = vrot.slane %v525, 2
    %v611 = vsel %vm154, %v610, 0
    %613 = vmatprep.subr.mxu0 0.0
    %614 = vmatpush1.msra.mxu0 %v609
    %615 = vmatprep.subr.mxu0 0.0
    %616 = vmatpush1.msra.mxu0 0.0
    %617 = vmatprep.subr.mxu0 0.0
    %618 = vmatpush1.msra.mxu0 0.0
    %619 = vmatprep.subr.mxu0 0.0
    %620 = vmatpush1.msra.mxu0 0.0
    %621 = vmatprep.subr.mxu0 0.0
    %622 = vmatpush1.msra.mxu0 0.0
    %623 = vmatprep.subr.mxu0 0.0
    %624 = vmatpush1.msra.mxu0 0.0
    %625 = vmatprep.subr.mxu0 0.0
    %626 = vmatpush1.msra.mxu0 0.0
    %627 = vmatprep.subr.mxu0 0.0
    %628 = vmatpush1.msra.mxu0 0.0
    %629 = vmatprep.subr.mxu0 0.0
    %630 = vmatpush1.msra.mxu0 0.0
    %631 = vmatprep.subr.mxu0 0.0
    %632 = vmatpush1.msra.mxu0 0.0
    %633 = vmatprep.subr.mxu0 0.0
    %634 = vmatpush1.msra.mxu0 0.0
    %635 = vmatprep.subr.mxu0 0.0
    %636 = vmatpush1.msra.mxu0 0.0
    %637 = vmatprep.subr.mxu0 0.0
    %638 = vmatpush1.msra.mxu0 0.0
    %639 = vmatprep.subr.mxu0 0.0
    %640 = vmatpush1.msra.mxu0 0.0
    %641 = vmatprep.subr.mxu0 0.0
    %642 = vmatpush1.msra.mxu0 0.0
    %643 = vmatprep.subr.mxu0 0.0
    %644 = vmatpush1.msra.mxu0 0.0
    %645 = vmatprep.subr.mxu0 0.0
    %646 = vmatpush1.msra.mxu0 0.0
    %647 = vmatprep.subr.mxu0 0.0
    %648 = vmatpush1.msra.mxu0 0.0
    %649 = vmatprep.subr.mxu0 0.0
    %650 = vmatpush1.msra.mxu0 0.0
    %651 = vmatprep.subr.mxu0 0.0
    %652 = vmatpush1.msra.mxu0 0.0
    %653 = vmatprep.subr.mxu0 0.0
    %654 = vmatpush1.msra.mxu0 0.0
    %655 = vmatprep.subr.mxu0 0.0
    %656 = vmatpush1.msra.mxu0 0.0
    %657 = vmatprep.subr.mxu0 0.0
    %658 = vmatpush1.msra.mxu0 0.0
    %659 = vmatprep.subr.mxu0 0.0
    %660 = vmatpush1.msra.mxu0 0.0
    %661 = vmatprep.subr.mxu0 0.0
    %662 = vmatpush1.msra.mxu0 0.0
    %663 = vmatprep.subr.mxu0 0.0
    %664 = vmatpush1.msra.mxu0 0.0
    %665 = vmatprep.subr.mxu0 0.0
    %666 = vmatpush1.msra.mxu0 0.0
    %667 = vmatprep.subr.mxu0 0.0
    %668 = vmatpush1.msra.mxu0 0.0
    %669 = vmatprep.subr.mxu0 0.0
    %670 = vmatpush1.msra.mxu0 0.0
    %671 = vmatprep.subr.mxu0 0.0
    %672 = vmatpush1.msra.mxu0 0.0
    %673 = vmatprep.subr.mxu0 0.0
    %674 = vmatpush1.msra.mxu0 0.0
    %675 = vmatprep.subr.mxu0 0.0
    %676 = vmatpush1.msra.mxu0 0.0
    %677 = vmatprep.mubr.f32.mxu0 0.0
    %678 = vmatmul.mubr.f32.gmra.mrb[0].mxu0 %v611
    %v679 = vpop.f32.mrb[0].mxu0
    %v680 = vadd.f32 0.0, %v679
    %v681 = vpop.f32.mrb[0].mxu0
    %682 = vdwg.mxu0
    %v683 = vadd.f32 %v607, %v680
    %s684 = scalar_lea.vmem %s10, 16
    %v685 = vld [vmem:[%s684] sm:$0xff]
    %v686 = vrot.slane %v525, 4
    %v687 = vsel %vm154, %v686, 0
    %689 = vmatprep.subr.mxu0 0.0
    %690 = vmatpush1.msra.mxu0 %v685
    %691 = vmatprep.subr.mxu0 0.0
    %692 = vmatpush1.msra.mxu0 0.0
    %693 = vmatprep.subr.mxu0 0.0
    %694 = vmatpush1.msra.mxu0 0.0
    %695 = vmatprep.subr.mxu0 0.0
    %696 = vmatpush1.msra.mxu0 0.0
    %697 = vmatprep.subr.mxu0 0.0
    %698 = vmatpush1.msra.mxu0 0.0
    %699 = vmatprep.subr.mxu0 0.0
    %700 = vmatpush1.msra.mxu0 0.0
    %701 = vmatprep.subr.mxu0 0.0
    %702 = vmatpush1.msra.mxu0 0.0
    %703 = vmatprep.subr.mxu0 0.0
    %704 = vmatpush1.msra.mxu0 0.0
    %705 = vmatprep.subr.mxu0 0.0
    %706 = vmatpush1.msra.mxu0 0.0
    %707 = vmatprep.subr.mxu0 0.0
    %708 = vmatpush1.msra.mxu0 0.0
    %709 = vmatprep.subr.mxu0 0.0
    %710 = vmatpush1.msra.mxu0 0.0
    %711 = vmatprep.subr.mxu0 0.0
    %712 = vmatpush1.msra.mxu0 0.0
    %713 = vmatprep.subr.mxu0 0.0
    %714 = vmatpush1.msra.mxu0 0.0
    %715 = vmatprep.subr.mxu0 0.0
    %716 = vmatpush1.msra.mxu0 0.0
    %717 = vmatprep.subr.mxu0 0.0
    %718 = vmatpush1.msra.mxu0 0.0
    %719 = vmatprep.subr.mxu0 0.0
    %720 = vmatpush1.msra.mxu0 0.0
    %721 = vmatprep.subr.mxu0 0.0
    %722 = vmatpush1.msra.mxu0 0.0
    %723 = vmatprep.subr.mxu0 0.0
    %724 = vmatpush1.msra.mxu0 0.0
    %725 = vmatprep.subr.mxu0 0.0
    %726 = vmatpush1.msra.mxu0 0.0
    %727 = vmatprep.subr.mxu0 0.0
    %728 = vmatpush1.msra.mxu0 0.0
    %729 = vmatprep.subr.mxu0 0.0
    %730 = vmatpush1.msra.mxu0 0.0
    %731 = vmatprep.subr.mxu0 0.0
    %732 = vmatpush1.msra.mxu0 0.0
    %733 = vmatprep.subr.mxu0 0.0
    %734 = vmatpush1.msra.mxu0 0.0
    %735 = vmatprep.subr.mxu0 0.0
    %736 = vmatpush1.msra.mxu0 0.0
    %737 = vmatprep.subr.mxu0 0.0
    %738 = vmatpush1.msra.mxu0 0.0
    %739 = vmatprep.subr.mxu0 0.0
    %740 = vmatpush1.msra.mxu0 0.0
    %741 = vmatprep.subr.mxu0 0.0
    %742 = vmatpush1.msra.mxu0 0.0
    %743 = vmatprep.subr.mxu0 0.0
    %744 = vmatpush1.msra.mxu0 0.0
    %745 = vmatprep.subr.mxu0 0.0
    %746 = vmatpush1.msra.mxu0 0.0
    %747 = vmatprep.subr.mxu0 0.0
    %748 = vmatpush1.msra.mxu0 0.0
    %749 = vmatprep.subr.mxu0 0.0
    %750 = vmatpush1.msra.mxu0 0.0
    %751 = vmatprep.subr.mxu0 0.0
    %752 = vmatpush1.msra.mxu0 0.0
    %753 = vmatprep.mubr.f32.mxu0 0.0
    %754 = vmatmul.mubr.f32.gmra.mrb[0].mxu0 %v687
    %v755 = vpop.f32.mrb[0].mxu0
    %v756 = vadd.f32 0.0, %v755
    %v757 = vpop.f32.mrb[0].mxu0
    %758 = vdwg.mxu0
    %v759 = vadd.f32 %v683, %v756
    %s760 = scalar_lea.vmem %s10, 24
    %v761 = vld [vmem:[%s760] sm:$0xff]
    %v762 = vrot.slane %v525, 6
    %v763 = vsel %vm154, %v762, 0
    %765 = vmatprep.subr.mxu0 0.0
    %766 = vmatpush1.msra.mxu0 %v761
    %767 = vmatprep.subr.mxu0 0.0
    %768 = vmatpush1.msra.mxu0 0.0
    %769 = vmatprep.subr.mxu0 0.0
    %770 = vmatpush1.msra.mxu0 0.0
    %771 = vmatprep.subr.mxu0 0.0
    %772 = vmatpush1.msra.mxu0 0.0
    %773 = vmatprep.subr.mxu0 0.0
    %774 = vmatpush1.msra.mxu0 0.0
    %775 = vmatprep.subr.mxu0 0.0
    %776 = vmatpush1.msra.mxu0 0.0
    %777 = vmatprep.subr.mxu0 0.0
    %778 = vmatpush1.msra.mxu0 0.0
    %779 = vmatprep.subr.mxu0 0.0
    %780 = vmatpush1.msra.mxu0 0.0
    %781 = vmatprep.subr.mxu0 0.0
    %782 = vmatpush1.msra.mxu0 0.0
    %783 = vmatprep.subr.mxu0 0.0
    %784 = vmatpush1.msra.mxu0 0.0
    %785 = vmatprep.subr.mxu0 0.0
    %786 = vmatpush1.msra.mxu0 0.0
    %787 = vmatprep.subr.mxu0 0.0
    %788 = vmatpush1.msra.mxu0 0.0
    %789 = vmatprep.subr.mxu0 0.0
    %790 = vmatpush1.msra.mxu0 0.0
    %791 = vmatprep.subr.mxu0 0.0
    %792 = vmatpush1.msra.mxu0 0.0
    %793 = vmatprep.subr.mxu0 0.0
    %794 = vmatpush1.msra.mxu0 0.0
    %795 = vmatprep.subr.mxu0 0.0
    %796 = vmatpush1.msra.mxu0 0.0
    %797 = vmatprep.subr.mxu0 0.0
    %798 = vmatpush1.msra.mxu0 0.0
    %799 = vmatprep.subr.mxu0 0.0
    %800 = vmatpush1.msra.mxu0 0.0
    %801 = vmatprep.subr.mxu0 0.0
    %802 = vmatpush1.msra.mxu0 0.0
    %803 = vmatprep.subr.mxu0 0.0
    %804 = vmatpush1.msra.mxu0 0.0
    %805 = vmatprep.subr.mxu0 0.0
    %806 = vmatpush1.msra.mxu0 0.0
    %807 = vmatprep.subr.mxu0 0.0
    %808 = vmatpush1.msra.mxu0 0.0
    %809 = vmatprep.subr.mxu0 0.0
    %810 = vmatpush1.msra.mxu0 0.0
    %811 = vmatprep.subr.mxu0 0.0
    %812 = vmatpush1.msra.mxu0 0.0
    %813 = vmatprep.subr.mxu0 0.0
    %814 = vmatpush1.msra.mxu0 0.0
    %815 = vmatprep.subr.mxu0 0.0
    %816 = vmatpush1.msra.mxu0 0.0
    %817 = vmatprep.subr.mxu0 0.0
    %818 = vmatpush1.msra.mxu0 0.0
    %819 = vmatprep.subr.mxu0 0.0
    %820 = vmatpush1.msra.mxu0 0.0
    %821 = vmatprep.subr.mxu0 0.0
    %822 = vmatpush1.msra.mxu0 0.0
    %823 = vmatprep.subr.mxu0 0.0
    %824 = vmatpush1.msra.mxu0 0.0
    %825 = vmatprep.subr.mxu0 0.0
    %826 = vmatpush1.msra.mxu0 0.0
    %827 = vmatprep.subr.mxu0 0.0
    %828 = vmatpush1.msra.mxu0 0.0
    %829 = vmatprep.mubr.f32.mxu0 0.0
    %830 = vmatmul.mubr.f32.gmra.mrb[0].mxu0 %v763
    %v831 = vpop.f32.mrb[0].mxu0
    %v832 = vadd.f32 0.0, %v831
    %v833 = vpop.f32.mrb[0].mxu0
    %834 = vdwg.mxu0
    %v835 = vadd.f32 %v759, %v832
    %vm836 = vcmask 33792
    %837 = vst.msk [vmem:[#allocation2] sm:$0x3] %vm836, %v835
    %v838 = vld [vmem:[%s3] sm:$0xff]
    %v839 = vld [vmem:[%s3 + $0x8] sm:$0xff]
    %v840 = vld [vmem:[%s3 + $0x10] sm:$0xff]
    %v841 = vld [vmem:[%s3 + $0x18] sm:$0xff]
    %v842 = vld [vmem:[%s3 + $0x20] sm:$0xff]
    %v843 = vld [vmem:[%s3 + $0x28] sm:$0xff]
    %v844 = vld [vmem:[%s3 + $0x30] sm:$0xff]
    %v845 = vld [vmem:[%s3 + $0x38] sm:$0xff]
    %v846 = vld [vmem:[%s4] sm:$0x3]
    %v849 = vrot.slane %v437, 4
    %v850 = vrot.slane %v444, 4
    %v851 = vsel %vm116, %v849, %v850
    %v854 = vsel %vm116, 0.0, %v849
    %v855 = vsel %vm104, %v851, 0.0
    %v858 = vrot.slane %v854, 1
    %v859 = vrot.slane %v855, 1
    %v860 = vsel %vm80, %v858, %v859
    %861 = vrot.lane.b32.xlu0 %v860, 8
    %v862 = vpop.permute.xlu0 %861
    %863 = vrot.lane.b32.xlu0 %v859, 8
    %v864 = vpop.permute.xlu0 %863
    %v867 = vrot.slane %v854, 2
    %v868 = vrot.slane %v855, 2
    %v869 = vsel %vm92, %v867, %v868
    %870 = vrot.lane.b32.xlu0 %v869, 16
    %v871 = vpop.permute.xlu0 %870
    %872 = vrot.lane.b32.xlu0 %v868, 16
    %v873 = vpop.permute.xlu0 %872
    %v876 = vrot.slane %v854, 3
    %v877 = vrot.slane %v855, 3
    %v878 = vsel %vm104, %v876, %v877
    %879 = vrot.lane.b32.xlu0 %v878, 24
    %v880 = vpop.permute.xlu0 %879
    %881 = vrot.lane.b32.xlu0 %v877, 24
    %v882 = vpop.permute.xlu0 %881
    %v885 = vrot.slane %v854, 4
    %v886 = vrot.slane %v855, 4
    %v887 = vsel %vm116, %v885, %v886
    %888 = vrot.lane.b32.xlu0 %v887, 32
    %v889 = vpop.permute.xlu0 %888
    %890 = vrot.lane.b32.xlu0 %v886, 32
    %v891 = vpop.permute.xlu0 %890
    %v894 = vrot.slane %v854, 5
    %v895 = vrot.slane %v855, 5
    %v896 = vsel %vm69, %v894, %v895
    %897 = vrot.lane.b32.xlu0 %v896, 40
    %v898 = vpop.permute.xlu0 %897
    %899 = vrot.lane.b32.xlu0 %v895, 40
    %v900 = vpop.permute.xlu0 %899
    %v903 = vrot.slane %v854, 6
    %v904 = vrot.slane %v855, 6
    %v905 = vsel %vm139, %v903, %v904
    %906 = vrot.lane.b32.xlu0 %v905, 48
    %v907 = vpop.permute.xlu0 %906
    %908 = vrot.lane.b32.xlu0 %v904, 48
    %v909 = vpop.permute.xlu0 %908
    %v913 = vrot.slane %v854, 7
    %v914 = vrot.slane %v855, 7
    %v915 = vsel %vm430, %v913, %v914
    %v916 = vrot.slane 0.0, 7
    %v917 = vsel %vm430, %v914, %v916
    %918 = vrot.lane.b32.xlu0 %v915, 56
    %v919 = vpop.permute.xlu0 %918
    %920 = vrot.lane.b32.xlu0 %v917, 56
    %v921 = vpop.permute.xlu0 %920
    %v924 = vsel %vm154, %v854, %v862
    %v925 = vsel %vm154, %v855, %v864
    %v926 = vsel %vm160, %v924, %v871
    %v927 = vsel %vm160, %v925, %v873
    %v928 = vsel %vm166, %v926, %v880
    %v929 = vsel %vm166, %v927, %v882
    %vm930 = vcmask 261120
    %v931 = vsel %vm930, %v928, %v889
    %v932 = vsel %vm930, %v929, %v891
    %vm933 = vcmask 326656
    %v934 = vsel %vm933, %v931, %v898
    %v935 = vsel %vm933, %v932, %v900
    %vm936 = vcmask 392192
    %v937 = vsel %vm936, %v934, %v907
    %v938 = vsel %vm936, %v935, %v909
    %vm939 = vcmask 457728
    %v940 = vsel %vm939, %v937, %v919
    %v941 = vsel %vm939, %v938, %v921
    %v942 = vrot.slane %v444, 5
    %v943 = vrot.slane %v449, 5
    %v944 = vsel %vm69, %v942, %v943
    %v947 = vsel %vm116, 0.0, %v942
    %v948 = vsel %vm104, %v944, 0.0
    %v951 = vrot.slane %v947, 1
    %v952 = vrot.slane %v948, 1
    %v953 = vsel %vm80, %v951, %v952
    %954 = vrot.lane.b32.xlu0 %v953, 8
    %v955 = vpop.permute.xlu0 %954
    %956 = vrot.lane.b32.xlu0 %v952, 8
    %v957 = vpop.permute.xlu0 %956
    %v960 = vrot.slane %v947, 2
    %v961 = vrot.slane %v948, 2
    %v962 = vsel %vm92, %v960, %v961
    %963 = vrot.lane.b32.xlu0 %v962, 16
    %v964 = vpop.permute.xlu0 %963
    %965 = vrot.lane.b32.xlu0 %v961, 16
    %v966 = vpop.permute.xlu0 %965
    %v969 = vrot.slane %v947, 3
    %v970 = vrot.slane %v948, 3
    %v971 = vsel %vm104, %v969, %v970
    %972 = vrot.lane.b32.xlu0 %v971, 24
    %v973 = vpop.permute.xlu0 %972
    %974 = vrot.lane.b32.xlu0 %v970, 24
    %v975 = vpop.permute.xlu0 %974
    %v978 = vrot.slane %v947, 4
    %v979 = vrot.slane %v948, 4
    %v980 = vsel %vm116, %v978, %v979
    %981 = vrot.lane.b32.xlu0 %v980, 32
    %v982 = vpop.permute.xlu0 %981
    %983 = vrot.lane.b32.xlu0 %v979, 32
    %v984 = vpop.permute.xlu0 %983
    %v987 = vrot.slane %v947, 5
    %v988 = vrot.slane %v948, 5
    %v989 = vsel %vm69, %v987, %v988
    %990 = vrot.lane.b32.xlu0 %v989, 40
    %v991 = vpop.permute.xlu0 %990
    %992 = vrot.lane.b32.xlu0 %v988, 40
    %v993 = vpop.permute.xlu0 %992
    %v996 = vrot.slane %v947, 6
    %v997 = vrot.slane %v948, 6
    %v998 = vsel %vm139, %v996, %v997
    %999 = vrot.lane.b32.xlu0 %v998, 48
    %v1000 = vpop.permute.xlu0 %999
    %1001 = vrot.lane.b32.xlu0 %v997, 48
    %v1002 = vpop.permute.xlu0 %1001
    %v1005 = vrot.slane %v947, 7
    %v1006 = vrot.slane %v948, 7
    %v1007 = vsel %vm430, %v1005, %v1006
    %v1008 = vsel %vm430, %v1006, %v916
    %1009 = vrot.lane.b32.xlu0 %v1007, 56
    %v1010 = vpop.permute.xlu0 %1009
    %1011 = vrot.lane.b32.xlu0 %v1008, 56
    %v1012 = vpop.permute.xlu0 %1011
    %v1015 = vsel %vm154, %v947, %v955
    %v1016 = vsel %vm154, %v948, %v957
    %v1017 = vsel %vm160, %v1015, %v964
    %v1018 = vsel %vm160, %v1016, %v966
    %v1019 = vsel %vm166, %v1017, %v973
    %v1020 = vsel %vm166, %v1018, %v975
    %v1021 = vsel %vm930, %v1019, %v982
    %v1022 = vsel %vm930, %v1020, %v984
    %v1023 = vsel %vm933, %v1021, %v991
    %v1024 = vsel %vm933, %v1022, %v993
    %v1025 = vsel %vm936, %v1023, %v1000
    %v1026 = vsel %vm936, %v1024, %v1002
    %v1027 = vsel %vm939, %v1025, %v1010
    %v1028 = vsel %vm939, %v1026, %v1012
    %v1031 = vrot.slane %v1027, 6
    %v1032 = vrot.slane %v1028, 6
    %v1033 = vsel %vm139, %v1031, %v1032
    %v1035 = vsel %vm139, %v941, %v1031
    %vm1036 = vcmask 523264
    %v1038 = vsel %vm1036, %v940, 0
    %v1041 = vsel %vm1036, %v1035, 0
    %v1043 = vsel %vm1036, %v1033, 0
    %1045 = vmatprep.subr.mxu0 0.0
    %1046 = vmatpush1.msra.mxu0 %v838
    %1047 = vmatprep.subr.mxu0 0.0
    %1048 = vmatpush1.msra.mxu0 %v839
    %1049 = vmatprep.subr.mxu0 0.0
    %1050 = vmatpush1.msra.mxu0 %v840
    %1051 = vmatprep.subr.mxu0 0.0
    %1052 = vmatpush1.msra.mxu0 %v841
    %1053 = vmatprep.subr.mxu0 0.0
    %1054 = vmatpush1.msra.mxu0 %v842
    %1055 = vmatprep.subr.mxu0 0.0
    %1056 = vmatpush1.msra.mxu0 %v843
    %1057 = vmatprep.subr.mxu0 0.0
    %1058 = vmatpush1.msra.mxu0 %v844
    %1059 = vmatprep.subr.mxu0 0.0
    %1060 = vmatpush1.msra.mxu0 %v845
    %1061 = vmatprep.subr.mxu0 0.0
    %1062 = vmatpush1.msra.mxu0 0.0
    %1063 = vmatprep.subr.mxu0 0.0
    %1064 = vmatpush1.msra.mxu0 0.0
    %1065 = vmatprep.subr.mxu0 0.0
    %1066 = vmatpush1.msra.mxu0 0.0
    %1067 = vmatprep.subr.mxu0 0.0
    %1068 = vmatpush1.msra.mxu0 0.0
    %1069 = vmatprep.subr.mxu0 0.0
    %1070 = vmatpush1.msra.mxu0 0.0
    %1071 = vmatprep.subr.mxu0 0.0
    %1072 = vmatpush1.msra.mxu0 0.0
    %1073 = vmatprep.subr.mxu0 0.0
    %1074 = vmatpush1.msra.mxu0 0.0
    %1075 = vmatprep.subr.mxu0 0.0
    %1076 = vmatpush1.msra.mxu0 0.0
    %1077 = vmatprep.subr.mxu0 0.0
    %1078 = vmatpush1.msra.mxu0 0.0
    %1079 = vmatprep.subr.mxu0 0.0
    %1080 = vmatpush1.msra.mxu0 0.0
    %1081 = vmatprep.subr.mxu0 0.0
    %1082 = vmatpush1.msra.mxu0 0.0
    %1083 = vmatprep.subr.mxu0 0.0
    %1084 = vmatpush1.msra.mxu0 0.0
    %1085 = vmatprep.subr.mxu0 0.0
    %1086 = vmatpush1.msra.mxu0 0.0
    %1087 = vmatprep.subr.mxu0 0.0
    %1088 = vmatpush1.msra.mxu0 0.0
    %1089 = vmatprep.subr.mxu0 0.0
    %1090 = vmatpush1.msra.mxu0 0.0
    %1091 = vmatprep.subr.mxu0 0.0
    %1092 = vmatpush1.msra.mxu0 0.0
    %1093 = vmatprep.subr.mxu0 0.0
    %1094 = vmatpush1.msra.mxu0 0.0
    %1095 = vmatprep.subr.mxu0 0.0
    %1096 = vmatpush1.msra.mxu0 0.0
    %1097 = vmatprep.subr.mxu0 0.0
    %1098 = vmatpush1.msra.mxu0 0.0
    %1099 = vmatprep.subr.mxu0 0.0
    %1100 = vmatpush1.msra.mxu0 0.0
    %1101 = vmatprep.subr.mxu0 0.0
    %1102 = vmatpush1.msra.mxu0 0.0
    %1103 = vmatprep.subr.mxu0 0.0
    %1104 = vmatpush1.msra.mxu0 0.0
    %1105 = vmatprep.subr.mxu0 0.0
    %1106 = vmatpush1.msra.mxu0 0.0
    %1107 = vmatprep.subr.mxu0 0.0
    %1108 = vmatpush1.msra.mxu0 0.0
    %1109 = vmatprep.mubr.f32.mxu0 0.0
    %1110 = vmatmul.mubr.f32.gmra.mrb[0].mxu0 %v1038
    %v1111 = vpop.f32.mrb[0].mxu0
    %v1112 = vadd.f32 0.0, %v1111
    %v1113 = vpop.f32.mrb[0].mxu0
    %1114 = vmatprep.mubr.f32.mxu0 0.0
    %1115 = vmatmul.mubr.f32.gmra.mrb[0].mxu0 %v1041
    %v1116 = vpop.f32.mrb[0].mxu0
    %v1117 = vadd.f32 0.0, %v1116
    %v1118 = vpop.f32.mrb[0].mxu0
    %1119 = vmatprep.mubr.f32.mxu0 0.0
    %1120 = vmatmul.mubr.f32.gmra.mrb[0].mxu0 %v1043
    %v1121 = vpop.f32.mrb[0].mxu0
    %v1122 = vadd.f32 0.0, %v1121
    %v1123 = vpop.f32.mrb[0].mxu0
    %1124 = vdwg.mxu0
    %v1125 = vlaneseq
    %v1126 = vshrl.u32 %v1125, 7
    %v1127 = vsub.s32 0, %v1126
    %v1128 = vrot.slane %v846, %v1127
    %v1129 = vmul.f32 %v1112, %v1128
    %v1130 = vmul.f32 %v1117, %v1128
    %v1131 = vmul.f32 %v1122, %v1128
    %v1132 = vlaneseq
    %v1133 = vshrl.u32 %v1132, 7
    %v1134 = vsub.s32 1, %v1133
    %v1135 = vrot.slane %v846, %v1134
    %v1136 = vadd.f32 %v1129, %v1135
    %v1137 = vadd.f32 %v1130, %v1135
    %v1138 = vadd.f32 %v1131, %v1135
    %v1139 = vmax.f32 %v1136, 0.0
    %v1140 = vmax.f32 %v1137, 0.0
    %v1141 = vmax.f32 %v1138, 0.0
    %v1143 = vrot.slane %v1139, 1
    %v1145 = vmax.f32 %v1139, %v1143
    %v1147 = vrot.slane %v1140, 1
    %v1149 = vmax.f32 %v1139, %v1147
    %v1150 = vmax.f32 %v1140, %v1147
    %v1152 = vrot.slane %v1141, 1
    %v1154 = vmax.f32 %v1140, %v1152
    %v1155 = vmax.f32 %v1141, %v1152
    %v1157 = vrot.slane %v1145, 1
    %v1159 = vrot.slane %v1145, 2
    %v1162 = vrot.slane %v1149, 3
    %v1164 = vrot.slane %v1140, 4
    %v1167 = vrot.slane %v1150, 4
    %v1169 = vrot.slane %v1150, 5
    %v1172 = vrot.slane %v1154, 6
    %v1175 = vrot.slane %v1155, 7
    %v1177 = vsel %vm430, %v1139, %v1145
    %v1178 = vsel %vm139, %v1177, %v1157
    %v1179 = vsel %vm69, %v1178, %v1159
    %v1180 = vsel %vm116, %v1179, %v1162
    %v1181 = vsel %vm104, %v1180, %v1164
    %v1182 = vsel %vm92, %v1181, %v1164
    %v1183 = vsel %vm80, %v1182, %v1167
    %v1184 = vsel %vm430, %v1169, %v1172
    %v1185 = vsel %vm139, %v1184, %v1175
    %v1186 = vsel %vm69, %v1185, %v1141
    %v1187 = vld [vmem:[%s8] sm:$0xff]
    %v1189 = vsel %vm157, %v1187, 0
    %v1192 = vsel %vm116, %v1186, 0
    %1194 = vmatprep.subr.mxu0 0.0
    %1195 = vmatpush1.msra.mxu0 %v1183
    %1196 = vmatprep.subr.mxu0 0.0
    %1197 = vmatpush1.msra.mxu0 %v1192
    %1198 = vmatprep.subr.mxu0 0.0
    %1199 = vmatpush1.msra.mxu0 0.0
    %1200 = vmatprep.subr.mxu0 0.0
    %1201 = vmatpush1.msra.mxu0 0.0
    %1202 = vmatprep.subr.mxu0 0.0
    %1203 = vmatpush1.msra.mxu0 0.0
    %1204 = vmatprep.subr.mxu0 0.0
    %1205 = vmatpush1.msra.mxu0 0.0
    %1206 = vmatprep.subr.mxu0 0.0
    %1207 = vmatpush1.msra.mxu0 0.0
    %1208 = vmatprep.subr.mxu0 0.0
    %1209 = vmatpush1.msra.mxu0 0.0
    %1210 = vmatprep.subr.mxu0 0.0
    %1211 = vmatpush1.msra.mxu0 0.0
    %1212 = vmatprep.subr.mxu0 0.0
    %1213 = vmatpush1.msra.mxu0 0.0
    %1214 = vmatprep.subr.mxu0 0.0
    %1215 = vmatpush1.msra.mxu0 0.0
    %1216 = vmatprep.subr.mxu0 0.0
    %1217 = vmatpush1.msra.mxu0 0.0
    %1218 = vmatprep.subr.mxu0 0.0
    %1219 = vmatpush1.msra.mxu0 0.0
    %1220 = vmatprep.subr.mxu0 0.0
    %1221 = vmatpush1.msra.mxu0 0.0
    %1222 = vmatprep.subr.mxu0 0.0
    %1223 = vmatpush1.msra.mxu0 0.0
    %1224 = vmatprep.subr.mxu0 0.0
    %1225 = vmatpush1.msra.mxu0 0.0
    %1226 = vmatprep.subr.mxu0 0.0
    %1227 = vmatpush1.msra.mxu0 0.0
    %1228 = vmatprep.subr.mxu0 0.0
    %1229 = vmatpush1.msra.mxu0 0.0
    %1230 = vmatprep.subr.mxu0 0.0
    %1231 = vmatpush1.msra.mxu0 0.0
    %1232 = vmatprep.subr.mxu0 0.0
    %1233 = vmatpush1.msra.mxu0 0.0
    %1234 = vmatprep.subr.mxu0 0.0
    %1235 = vmatpush1.msra.mxu0 0.0
    %1236 = vmatprep.subr.mxu0 0.0
    %1237 = vmatpush1.msra.mxu0 0.0
    %1238 = vmatprep.subr.mxu0 0.0
    %1239 = vmatpush1.msra.mxu0 0.0
    %1240 = vmatprep.subr.mxu0 0.0
    %1241 = vmatpush1.msra.mxu0 0.0
    %1242 = vmatprep.subr.mxu0 0.0
    %1243 = vmatpush1.msra.mxu0 0.0
    %1244 = vmatprep.subr.mxu0 0.0
    %1245 = vmatpush1.msra.mxu0 0.0
    %1246 = vmatprep.subr.mxu0 0.0
    %1247 = vmatpush1.msra.mxu0 0.0
    %1248 = vmatprep.subr.mxu0 0.0
    %1249 = vmatpush1.msra.mxu0 0.0
    %1250 = vmatprep.subr.mxu0 0.0
    %1251 = vmatpush1.msra.mxu0 0.0
    %1252 = vmatprep.subr.mxu0 0.0
    %1253 = vmatpush1.msra.mxu0 0.0
    %1254 = vmatprep.subr.mxu0 0.0
    %1255 = vmatpush1.msra.mxu0 0.0
    %1256 = vmatprep.subr.mxu0 0.0
    %1257 = vmatpush1.msra.mxu0 0.0
    %1258 = vmatprep.mubr.f32.mxu0 0.0
    %1259 = vmatmul.mubr.f32.gmra.mrb[0].mxu0 %v1189
    %v1260 = vpop.f32.mrb[0].mxu0
    %v1261 = vadd.f32 0.0, %v1260
    %v1262 = vpop.f32.mrb[0].mxu0
    %1263 = vdwg.mxu0
    %v1264 = vld [vmem:[%s14 + $0x1] sm:$0x1]
    %v1265 = vld [vmem:[%s11] sm:$0xff]
    %v1266 = vld [vmem:[%s11 + $0x8] sm:$0xff]
    %v1268 = vsel %vm160, %v1261, 0
    %1270 = vmatprep.subr.mxu0 0.0
    %1271 = vmatpush1.msra.mxu0 %v1265
    %1272 = vmatprep.subr.mxu0 0.0
    %1273 = vmatpush1.msra.mxu0 %v1266
    %1274 = vmatprep.subr.mxu0 0.0
    %1275 = vmatpush1.msra.mxu0 0.0
    %1276 = vmatprep.subr.mxu0 0.0
    %1277 = vmatpush1.msra.mxu0 0.0
    %1278 = vmatprep.subr.mxu0 0.0
    %1279 = vmatpush1.msra.mxu0 0.0
    %1280 = vmatprep.subr.mxu0 0.0
    %1281 = vmatpush1.msra.mxu0 0.0
    %1282 = vmatprep.subr.mxu0 0.0
    %1283 = vmatpush1.msra.mxu0 0.0
    %1284 = vmatprep.subr.mxu0 0.0
    %1285 = vmatpush1.msra.mxu0 0.0
    %1286 = vmatprep.subr.mxu0 0.0
    %1287 = vmatpush1.msra.mxu0 0.0
    %1288 = vmatprep.subr.mxu0 0.0
    %1289 = vmatpush1.msra.mxu0 0.0
    %1290 = vmatprep.subr.mxu0 0.0
    %1291 = vmatpush1.msra.mxu0 0.0
    %1292 = vmatprep.subr.mxu0 0.0
    %1293 = vmatpush1.msra.mxu0 0.0
    %1294 = vmatprep.subr.mxu0 0.0
    %1295 = vmatpush1.msra.mxu0 0.0
    %1296 = vmatprep.subr.mxu0 0.0
    %1297 = vmatpush1.msra.mxu0 0.0
    %1298 = vmatprep.subr.mxu0 0.0
    %1299 = vmatpush1.msra.mxu0 0.0
    %1300 = vmatprep.subr.mxu0 0.0
    %1301 = vmatpush1.msra.mxu0 0.0
    %1302 = vmatprep.subr.mxu0 0.0
    %1303 = vmatpush1.msra.mxu0 0.0
    %1304 = vmatprep.subr.mxu0 0.0
    %1305 = vmatpush1.msra.mxu0 0.0
    %1306 = vmatprep.subr.mxu0 0.0
    %1307 = vmatpush1.msra.mxu0 0.0
    %1308 = vmatprep.subr.mxu0 0.0
    %1309 = vmatpush1.msra.mxu0 0.0
    %1310 = vmatprep.subr.mxu0 0.0
    %1311 = vmatpush1.msra.mxu0 0.0
    %1312 = vmatprep.subr.mxu0 0.0
    %1313 = vmatpush1.msra.mxu0 0.0
    %1314 = vmatprep.subr.mxu0 0.0
    %1315 = vmatpush1.msra.mxu0 0.0
    %1316 = vmatprep.subr.mxu0 0.0
    %1317 = vmatpush1.msra.mxu0 0.0
    %1318 = vmatprep.subr.mxu0 0.0
    %1319 = vmatpush1.msra.mxu0 0.0
    %1320 = vmatprep.subr.mxu0 0.0
    %1321 = vmatpush1.msra.mxu0 0.0
    %1322 = vmatprep.subr.mxu0 0.0
    %1323 = vmatpush1.msra.mxu0 0.0
    %1324 = vmatprep.subr.mxu0 0.0
    %1325 = vmatpush1.msra.mxu0 0.0
    %1326 = vmatprep.subr.mxu0 0.0
    %1327 = vmatpush1.msra.mxu0 0.0
    %1328 = vmatprep.subr.mxu0 0.0
    %1329 = vmatpush1.msra.mxu0 0.0
    %1330 = vmatprep.subr.mxu0 0.0
    %1331 = vmatpush1.msra.mxu0 0.0
    %1332 = vmatprep.subr.mxu0 0.0
    %1333 = vmatpush1.msra.mxu0 0.0
    %1334 = vmatprep.mubr.f32.mxu0 0.0
    %1335 = vmatmul.mubr.f32.gmra.mrb[0].mxu0 %v1268
    %v1336 = vpop.f32.mrb[0].mxu0
    %v1337 = vadd.f32 0.0, %v1336
    %v1338 = vpop.f32.mrb[0].mxu0
    %1339 = vdwg.mxu0
    %v1340 = vlaneseq
    %v1341 = vshrl.u32 %v1340, 7
    %v1342 = vsub.s32 0, %v1341
    %v1343 = vrot.slane %v1264, %v1342
    %v1344 = vadd.f32 %v1343, %v1337
    %s1345 = scalar_lea.vmem %s11, 16
    %v1346 = vld [vmem:[%s1345] sm:$0xff]
    %v1347 = vld [vmem:[%s1345 + $0x8] sm:$0xff]
    %v1348 = vrot.slane %v1261, 2
    %v1349 = vsel %vm160, %v1348, 0
    %1351 = vmatprep.subr.mxu0 0.0
    %1352 = vmatpush1.msra.mxu0 %v1346
    %1353 = vmatprep.subr.mxu0 0.0
    %1354 = vmatpush1.msra.mxu0 %v1347
    %1355 = vmatprep.subr.mxu0 0.0
    %1356 = vmatpush1.msra.mxu0 0.0
    %1357 = vmatprep.subr.mxu0 0.0
    %1358 = vmatpush1.msra.mxu0 0.0
    %1359 = vmatprep.subr.mxu0 0.0
    %1360 = vmatpush1.msra.mxu0 0.0
    %1361 = vmatprep.subr.mxu0 0.0
    %1362 = vmatpush1.msra.mxu0 0.0
    %1363 = vmatprep.subr.mxu0 0.0
    %1364 = vmatpush1.msra.mxu0 0.0
    %1365 = vmatprep.subr.mxu0 0.0
    %1366 = vmatpush1.msra.mxu0 0.0
    %1367 = vmatprep.subr.mxu0 0.0
    %1368 = vmatpush1.msra.mxu0 0.0
    %1369 = vmatprep.subr.mxu0 0.0
    %1370 = vmatpush1.msra.mxu0 0.0
    %1371 = vmatprep.subr.mxu0 0.0
    %1372 = vmatpush1.msra.mxu0 0.0
    %1373 = vmatprep.subr.mxu0 0.0
    %1374 = vmatpush1.msra.mxu0 0.0
    %1375 = vmatprep.subr.mxu0 0.0
    %1376 = vmatpush1.msra.mxu0 0.0
    %1377 = vmatprep.subr.mxu0 0.0
    %1378 = vmatpush1.msra.mxu0 0.0
    %1379 = vmatprep.subr.mxu0 0.0
    %1380 = vmatpush1.msra.mxu0 0.0
    %1381 = vmatprep.subr.mxu0 0.0
    %1382 = vmatpush1.msra.mxu0 0.0
    %1383 = vmatprep.subr.mxu0 0.0
    %1384 = vmatpush1.msra.mxu0 0.0
    %1385 = vmatprep.subr.mxu0 0.0
    %1386 = vmatpush1.msra.mxu0 0.0
    %1387 = vmatprep.subr.mxu0 0.0
    %1388 = vmatpush1.msra.mxu0 0.0
    %1389 = vmatprep.subr.mxu0 0.0
    %1390 = vmatpush1.msra.mxu0 0.0
    %1391 = vmatprep.subr.mxu0 0.0
    %1392 = vmatpush1.msra.mxu0 0.0
    %1393 = vmatprep.subr.mxu0 0.0
    %1394 = vmatpush1.msra.mxu0 0.0
    %1395 = vmatprep.subr.mxu0 0.0
    %1396 = vmatpush1.msra.mxu0 0.0
    %1397 = vmatprep.subr.mxu0 0.0
    %1398 = vmatpush1.msra.mxu0 0.0
    %1399 = vmatprep.subr.mxu0 0.0
    %1400 = vmatpush1.msra.mxu0 0.0
    %1401 = vmatprep.subr.mxu0 0.0
    %1402 = vmatpush1.msra.mxu0 0.0
    %1403 = vmatprep.subr.mxu0 0.0
    %1404 = vmatpush1.msra.mxu0 0.0
    %1405 = vmatprep.subr.mxu0 0.0
    %1406 = vmatpush1.msra.mxu0 0.0
    %1407 = vmatprep.subr.mxu0 0.0
    %1408 = vmatpush1.msra.mxu0 0.0
    %1409 = vmatprep.subr.mxu0 0.0
    %1410 = vmatpush1.msra.mxu0 0.0
    %1411 = vmatprep.subr.mxu0 0.0
    %1412 = vmatpush1.msra.mxu0 0.0
    %1413 = vmatprep.subr.mxu0 0.0
    %1414 = vmatpush1.msra.mxu0 0.0
    %1415 = vmatprep.mubr.f32.mxu0 0.0
    %1416 = vmatmul.mubr.f32.gmra.mrb[0].mxu0 %v1349
    %v1417 = vpop.f32.mrb[0].mxu0
    %v1418 = vadd.f32 0.0, %v1417
    %v1419 = vpop.f32.mrb[0].mxu0
    %1420 = vdwg.mxu0
    %v1421 = vadd.f32 %v1344, %v1418
    %s1422 = scalar_lea.vmem %s11, 32
    %v1423 = vld [vmem:[%s1422] sm:$0xff]
    %v1424 = vld [vmem:[%s1422 + $0x8] sm:$0xff]
    %v1425 = vrot.slane %v1261, 4
    %v1426 = vsel %vm160, %v1425, 0
    %1428 = vmatprep.subr.mxu0 0.0
    %1429 = vmatpush1.msra.mxu0 %v1423
    %1430 = vmatprep.subr.mxu0 0.0
    %1431 = vmatpush1.msra.mxu0 %v1424
    %1432 = vmatprep.subr.mxu0 0.0
    %1433 = vmatpush1.msra.mxu0 0.0
    %1434 = vmatprep.subr.mxu0 0.0
    %1435 = vmatpush1.msra.mxu0 0.0
    %1436 = vmatprep.subr.mxu0 0.0
    %1437 = vmatpush1.msra.mxu0 0.0
    %1438 = vmatprep.subr.mxu0 0.0
    %1439 = vmatpush1.msra.mxu0 0.0
    %1440 = vmatprep.subr.mxu0 0.0
    %1441 = vmatpush1.msra.mxu0 0.0
    %1442 = vmatprep.subr.mxu0 0.0
    %1443 = vmatpush1.msra.mxu0 0.0
    %1444 = vmatprep.subr.mxu0 0.0
    %1445 = vmatpush1.msra.mxu0 0.0
    %1446 = vmatprep.subr.mxu0 0.0
    %1447 = vmatpush1.msra.mxu0 0.0
    %1448 = vmatprep.subr.mxu0 0.0
    %1449 = vmatpush1.msra.mxu0 0.0
    %1450 = vmatprep.subr.mxu0 0.0
    %1451 = vmatpush1.msra.mxu0 0.0
    %1452 = vmatprep.subr.mxu0 0.0
    %1453 = vmatpush1.msra.mxu0 0.0
    %1454 = vmatprep.subr.mxu0 0.0
    %1455 = vmatpush1.msra.mxu0 0.0
    %1456 = vmatprep.subr.mxu0 0.0
    %1457 = vmatpush1.msra.mxu0 0.0
    %1458 = vmatprep.subr.mxu0 0.0
    %1459 = vmatpush1.msra.mxu0 0.0
    %1460 = vmatprep.subr.mxu0 0.0
    %1461 = vmatpush1.msra.mxu0 0.0
    %1462 = vmatprep.subr.mxu0 0.0
    %1463 = vmatpush1.msra.mxu0 0.0
    %1464 = vmatprep.subr.mxu0 0.0
    %1465 = vmatpush1.msra.mxu0 0.0
    %1466 = vmatprep.subr.mxu0 0.0
    %1467 = vmatpush1.msra.mxu0 0.0
    %1468 = vmatprep.subr.mxu0 0.0
    %1469 = vmatpush1.msra.mxu0 0.0
    %1470 = vmatprep.subr.mxu0 0.0
    %1471 = vmatpush1.msra.mxu0 0.0
    %1472 = vmatprep.subr.mxu0 0.0
    %1473 = vmatpush1.msra.mxu0 0.0
    %1474 = vmatprep.subr.mxu0 0.0
    %1475 = vmatpush1.msra.mxu0 0.0
    %1476 = vmatprep.subr.mxu0 0.0
    %1477 = vmatpush1.msra.mxu0 0.0
    %1478 = vmatprep.subr.mxu0 0.0
    %1479 = vmatpush1.msra.mxu0 0.0
    %1480 = vmatprep.subr.mxu0 0.0
    %1481 = vmatpush1.msra.mxu0 0.0
    %1482 = vmatprep.subr.mxu0 0.0
    %1483 = vmatpush1.msra.mxu0 0.0
    %1484 = vmatprep.subr.mxu0 0.0
    %1485 = vmatpush1.msra.mxu0 0.0
    %1486 = vmatprep.subr.mxu0 0.0
    %1487 = vmatpush1.msra.mxu0 0.0
    %1488 = vmatprep.subr.mxu0 0.0
    %1489 = vmatpush1.msra.mxu0 0.0
    %1490 = vmatprep.subr.mxu0 0.0
    %1491 = vmatpush1.msra.mxu0 0.0
    %1492 = vmatprep.mubr.f32.mxu0 0.0
    %1493 = vmatmul.mubr.f32.gmra.mrb[0].mxu0 %v1426
    %v1494 = vpop.f32.mrb[0].mxu0
    %v1495 = vadd.f32 0.0, %v1494
    %v1496 = vpop.f32.mrb[0].mxu0
    %1497 = vdwg.mxu0
    %v1498 = vadd.f32 %v1421, %v1495
    %s1499 = scalar_lea.vmem %s11, 48
    %v1500 = vld [vmem:[%s1499] sm:$0xff]
    %v1501 = vld [vmem:[%s1499 + $0x8] sm:$0xff]
    %v1502 = vrot.slane %v1261, 6
    %v1503 = vsel %vm160, %v1502, 0
    %1505 = vmatprep.subr.mxu0 0.0
    %1506 = vmatpush1.msra.mxu0 %v1500
    %1507 = vmatprep.subr.mxu0 0.0
    %1508 = vmatpush1.msra.mxu0 %v1501
    %1509 = vmatprep.subr.mxu0 0.0
    %1510 = vmatpush1.msra.mxu0 0.0
    %1511 = vmatprep.subr.mxu0 0.0
    %1512 = vmatpush1.msra.mxu0 0.0
    %1513 = vmatprep.subr.mxu0 0.0
    %1514 = vmatpush1.msra.mxu0 0.0
    %1515 = vmatprep.subr.mxu0 0.0
    %1516 = vmatpush1.msra.mxu0 0.0
    %1517 = vmatprep.subr.mxu0 0.0
    %1518 = vmatpush1.msra.mxu0 0.0
    %1519 = vmatprep.subr.mxu0 0.0
    %1520 = vmatpush1.msra.mxu0 0.0
    %1521 = vmatprep.subr.mxu0 0.0
    %1522 = vmatpush1.msra.mxu0 0.0
    %1523 = vmatprep.subr.mxu0 0.0
    %1524 = vmatpush1.msra.mxu0 0.0
    %1525 = vmatprep.subr.mxu0 0.0
    %1526 = vmatpush1.msra.mxu0 0.0
    %1527 = vmatprep.subr.mxu0 0.0
    %1528 = vmatpush1.msra.mxu0 0.0
    %1529 = vmatprep.subr.mxu0 0.0
    %1530 = vmatpush1.msra.mxu0 0.0
    %1531 = vmatprep.subr.mxu0 0.0
    %1532 = vmatpush1.msra.mxu0 0.0
    %1533 = vmatprep.subr.mxu0 0.0
    %1534 = vmatpush1.msra.mxu0 0.0
    %1535 = vmatprep.subr.mxu0 0.0
    %1536 = vmatpush1.msra.mxu0 0.0
    %1537 = vmatprep.subr.mxu0 0.0
    %1538 = vmatpush1.msra.mxu0 0.0
    %1539 = vmatprep.subr.mxu0 0.0
    %1540 = vmatpush1.msra.mxu0 0.0
    %1541 = vmatprep.subr.mxu0 0.0
    %1542 = vmatpush1.msra.mxu0 0.0
    %1543 = vmatprep.subr.mxu0 0.0
    %1544 = vmatpush1.msra.mxu0 0.0
    %1545 = vmatprep.subr.mxu0 0.0
    %1546 = vmatpush1.msra.mxu0 0.0
    %1547 = vmatprep.subr.mxu0 0.0
    %1548 = vmatpush1.msra.mxu0 0.0
    %1549 = vmatprep.subr.mxu0 0.0
    %1550 = vmatpush1.msra.mxu0 0.0
    %1551 = vmatprep.subr.mxu0 0.0
    %1552 = vmatpush1.msra.mxu0 0.0
    %1553 = vmatprep.subr.mxu0 0.0
    %1554 = vmatpush1.msra.mxu0 0.0
    %1555 = vmatprep.subr.mxu0 0.0
    %1556 = vmatpush1.msra.mxu0 0.0
    %1557 = vmatprep.subr.mxu0 0.0
    %1558 = vmatpush1.msra.mxu0 0.0
    %1559 = vmatprep.subr.mxu0 0.0
    %1560 = vmatpush1.msra.mxu0 0.0
    %1561 = vmatprep.subr.mxu0 0.0
    %1562 = vmatpush1.msra.mxu0 0.0
    %1563 = vmatprep.subr.mxu0 0.0
    %1564 = vmatpush1.msra.mxu0 0.0
    %1565 = vmatprep.subr.mxu0 0.0
    %1566 = vmatpush1.msra.mxu0 0.0
    %1567 = vmatprep.subr.mxu0 0.0
    %1568 = vmatpush1.msra.mxu0 0.0
    %1569 = vmatprep.mubr.f32.mxu0 0.0
    %1570 = vmatmul.mubr.f32.gmra.mrb[0].mxu0 %v1503
    %v1571 = vpop.f32.mrb[0].mxu0
    %v1572 = vadd.f32 0.0, %v1571
    %v1573 = vpop.f32.mrb[0].mxu0
    %1574 = vdwg.mxu0
    %v1575 = vadd.f32 %v1498, %v1572
    %1576 = vst.msk [vmem:[#allocation4] sm:$0x3] %vm836, %v1575
    %v1577 = vld [vmem:[%s5] sm:$0xff]
    %v1578 = vld [vmem:[%s5 + $0x8] sm:$0xff]
    %v1579 = vld [vmem:[%s5 + $0x10] sm:$0xff]
    %v1580 = vld [vmem:[%s5 + $0x18] sm:$0xff]
    %v1581 = vld [vmem:[%s5 + $0x20] sm:$0xff]
    %v1582 = vld [vmem:[%s5 + $0x28] sm:$0xff]
    %v1583 = vld [vmem:[%s5 + $0x30] sm:$0xff]
    %v1584 = vld [vmem:[%s5 + $0x38] sm:$0xff]
    %v1585 = vld [vmem:[%s5 + $0x40] sm:$0xff]
    %v1586 = vld [vmem:[%s5 + $0x48] sm:$0xff]
    %v1587 = vld [vmem:[%s5 + $0x50] sm:$0xff]
    %v1588 = vld [vmem:[%s5 + $0x58] sm:$0xff]
    %v1589 = vld [vmem:[%s5 + $0x60] sm:$0xff]
    %v1590 = vld [vmem:[%s5 + $0x68] sm:$0xff]
    %v1591 = vld [vmem:[%s5 + $0x70] sm:$0xff]
    %v1592 = vld [vmem:[%s5 + $0x78] sm:$0xff]
    %v1593 = vld [vmem:[%s6] sm:$0x3]
    %v1595 = vrot.slane %v1183, 4
    %v1597 = vsel %vm116, 0.0, %v1595
    %v1598 = vsel %vm139, %v1595, 0.0
    %v1600 = vrot.slane %v1597, 1
    %1601 = vrot.lane.b32.xlu0 %v1600, 16
    %v1602 = vpop.permute.xlu0 %1601
    %v1605 = vrot.slane %v1597, 2
    %v1606 = vrot.slane %v1598, 2
    %v1607 = vsel %vm92, %v1605, %v1606
    %1608 = vrot.lane.b32.xlu0 %v1607, 32
    %v1609 = vpop.permute.xlu0 %1608
    %v1611 = vrot.slane %v1597, 3
    %v1612 = vrot.slane %v1598, 3
    %v1613 = vsel %vm104, %v1611, %v1612
    %1614 = vrot.lane.b32.xlu0 %v1613, 48
    %v1615 = vpop.permute.xlu0 %1614
    %v1617 = vrot.slane %v1597, 4
    %v1618 = vrot.slane %v1598, 4
    %v1619 = vsel %vm116, %v1617, %v1618
    %1620 = vrot.lane.b32.xlu0 %v1619, 64
    %v1621 = vpop.permute.xlu0 %1620
    %v1623 = vrot.slane %v1597, 5
    %v1624 = vrot.slane %v1598, 5
    %v1625 = vsel %vm69, %v1623, %v1624
    %1626 = vrot.lane.b32.xlu0 %v1625, 80
    %v1627 = vpop.permute.xlu0 %1626
    %v1629 = vrot.slane %v1597, 6
    %v1630 = vrot.slane %v1598, 6
    %v1631 = vsel %vm139, %v1629, %v1630
    %1632 = vrot.lane.b32.xlu0 %v1631, 96
    %v1633 = vpop.permute.xlu0 %1632
    %v1635 = vrot.slane %v1597, 7
    %v1636 = vrot.slane %v1598, 7
    %v1637 = vsel %vm430, %v1635, %v1636
    %1638 = vrot.lane.b32.xlu0 %v1637, 112
    %v1639 = vpop.permute.xlu0 %1638
    %v1641 = vsel %vm160, %v1597, %v1602
    %v1642 = vsel %vm930, %v1641, %v1609
    %v1643 = vsel %vm936, %v1642, %v1615
    %v1644 = vsel %vm1036, %v1643, %v1621
    %vm1645 = vcmask 654336
    %v1646 = vsel %vm1645, %v1644, %v1627
    %vm1647 = vcmask 785408
    %v1648 = vsel %vm1647, %v1646, %v1633
    %vm1649 = vcmask 916480
    %v1650 = vsel %vm1649, %v1648, %v1639
    %v1651 = vrot.slane %v1183, 2
    %v1652 = vrot.slane %v1186, 2
    %v1653 = vsel %vm92, %v1651, %v1652
    %v1656 = vsel %vm116, 0.0, %v1653
    %v1657 = vsel %vm139, %v1652, 0.0
    %v1659 = vrot.slane %v1656, 1
    %1660 = vrot.lane.b32.xlu0 %v1659, 16
    %v1661 = vpop.permute.xlu0 %1660
    %v1664 = vrot.slane %v1656, 2
    %v1665 = vrot.slane %v1657, 2
    %v1666 = vsel %vm92, %v1664, %v1665
    %1667 = vrot.lane.b32.xlu0 %v1666, 32
    %v1668 = vpop.permute.xlu0 %1667
    %v1670 = vrot.slane %v1656, 3
    %v1671 = vrot.slane %v1657, 3
    %v1672 = vsel %vm104, %v1670, %v1671
    %1673 = vrot.lane.b32.xlu0 %v1672, 48
    %v1674 = vpop.permute.xlu0 %1673
    %v1676 = vrot.slane %v1656, 4
    %v1677 = vrot.slane %v1657, 4
    %v1678 = vsel %vm116, %v1676, %v1677
    %1679 = vrot.lane.b32.xlu0 %v1678, 64
    %v1680 = vpop.permute.xlu0 %1679
    %v1682 = vrot.slane %v1656, 5
    %v1683 = vrot.slane %v1657, 5
    %v1684 = vsel %vm69, %v1682, %v1683
    %1685 = vrot.lane.b32.xlu0 %v1684, 80
    %v1686 = vpop.permute.xlu0 %1685
    %v1688 = vrot.slane %v1656, 6
    %v1689 = vrot.slane %v1657, 6
    %v1690 = vsel %vm139, %v1688, %v1689
    %1691 = vrot.lane.b32.xlu0 %v1690, 96
    %v1692 = vpop.permute.xlu0 %1691
    %v1694 = vrot.slane %v1656, 7
    %v1695 = vrot.slane %v1657, 7
    %v1696 = vsel %vm430, %v1694, %v1695
    %1697 = vrot.lane.b32.xlu0 %v1696, 112
    %v1698 = vpop.permute.xlu0 %1697
    %v1700 = vsel %vm160, %v1656, %v1661
    %v1701 = vsel %vm930, %v1700, %v1668
    %v1702 = vsel %vm936, %v1701, %v1674
    %v1703 = vsel %vm1036, %v1702, %v1680
    %v1704 = vsel %vm1645, %v1703, %v1686
    %v1705 = vsel %vm1647, %v1704, %v1692
    %v1706 = vsel %vm1649, %v1705, %v1698
    %v1708 = vrot.slane %v1706, 1
    %v1710 = vsel %vm80, %v1650, %v1708
    %1711 = vmatprep.subr.mxu0 0.0
    %1712 = vmatpush1.msra.mxu0 %v1577
    %1713 = vmatprep.subr.mxu0 0.0
    %1714 = vmatpush1.msra.mxu0 %v1578
    %1715 = vmatprep.subr.mxu0 0.0
    %1716 = vmatpush1.msra.mxu0 %v1579
    %1717 = vmatprep.subr.mxu0 0.0
    %1718 = vmatpush1.msra.mxu0 %v1580
    %1719 = vmatprep.subr.mxu0 0.0
    %1720 = vmatpush1.msra.mxu0 %v1581
    %1721 = vmatprep.subr.mxu0 0.0
    %1722 = vmatpush1.msra.mxu0 %v1582
    %1723 = vmatprep.subr.mxu0 0.0
    %1724 = vmatpush1.msra.mxu0 %v1583
    %1725 = vmatprep.subr.mxu0 0.0
    %1726 = vmatpush1.msra.mxu0 %v1584
    %1727 = vmatprep.subr.mxu0 0.0
    %1728 = vmatpush1.msra.mxu0 %v1585
    %1729 = vmatprep.subr.mxu0 0.0
    %1730 = vmatpush1.msra.mxu0 %v1586
    %1731 = vmatprep.subr.mxu0 0.0
    %1732 = vmatpush1.msra.mxu0 %v1587
    %1733 = vmatprep.subr.mxu0 0.0
    %1734 = vmatpush1.msra.mxu0 %v1588
    %1735 = vmatprep.subr.mxu0 0.0
    %1736 = vmatpush1.msra.mxu0 %v1589
    %1737 = vmatprep.subr.mxu0 0.0
    %1738 = vmatpush1.msra.mxu0 %v1590
    %1739 = vmatprep.subr.mxu0 0.0
    %1740 = vmatpush1.msra.mxu0 %v1591
    %1741 = vmatprep.subr.mxu0 0.0
    %1742 = vmatpush1.msra.mxu0 %v1592
    %1743 = vmatprep.subr.mxu0 0.0
    %1744 = vmatpush1.msra.mxu0 0.0
    %1745 = vmatprep.subr.mxu0 0.0
    %1746 = vmatpush1.msra.mxu0 0.0
    %1747 = vmatprep.subr.mxu0 0.0
    %1748 = vmatpush1.msra.mxu0 0.0
    %1749 = vmatprep.subr.mxu0 0.0
    %1750 = vmatpush1.msra.mxu0 0.0
    %1751 = vmatprep.subr.mxu0 0.0
    %1752 = vmatpush1.msra.mxu0 0.0
    %1753 = vmatprep.subr.mxu0 0.0
    %1754 = vmatpush1.msra.mxu0 0.0
    %1755 = vmatprep.subr.mxu0 0.0
    %1756 = vmatpush1.msra.mxu0 0.0
    %1757 = vmatprep.subr.mxu0 0.0
    %1758 = vmatpush1.msra.mxu0 0.0
    %1759 = vmatprep.subr.mxu0 0.0
    %1760 = vmatpush1.msra.mxu0 0.0
    %1761 = vmatprep.subr.mxu0 0.0
    %1762 = vmatpush1.msra.mxu0 0.0
    %1763 = vmatprep.subr.mxu0 0.0
    %1764 = vmatpush1.msra.mxu0 0.0
    %1765 = vmatprep.subr.mxu0 0.0
    %1766 = vmatpush1.msra.mxu0 0.0
    %1767 = vmatprep.subr.mxu0 0.0
    %1768 = vmatpush1.msra.mxu0 0.0
    %1769 = vmatprep.subr.mxu0 0.0
    %1770 = vmatpush1.msra.mxu0 0.0
    %1771 = vmatprep.subr.mxu0 0.0
    %1772 = vmatpush1.msra.mxu0 0.0
    %1773 = vmatprep.subr.mxu0 0.0
    %1774 = vmatpush1.msra.mxu0 0.0
    %1775 = vmatprep.mubr.f32.mxu0 0.0
    %1776 = vmatmul.mubr.f32.gmra.mrb[0].mxu0 %v1710
    %v1777 = vpop.f32.mrb[0].mxu0
    %v1778 = vadd.f32 0.0, %v1777
    %v1779 = vpop.f32.mrb[0].mxu0
    %1780 = vmatprep.mubr.f32.mxu0 0.0
    %1781 = vmatmul.mubr.f32.gmra.mrb[0].mxu0 %v1708
    %v1782 = vpop.f32.mrb[0].mxu0
    %v1783 = vadd.f32 0.0, %v1782
    %v1784 = vpop.f32.mrb[0].mxu0
    %1785 = vdwg.mxu0
    %v1786 = vlaneseq
    %v1787 = vshrl.u32 %v1786, 7
    %v1788 = vsub.s32 0, %v1787
    %v1789 = vrot.slane %v1593, %v1788
    %v1790 = vmul.f32 %v1778, %v1789
    %v1791 = vmul.f32 %v1783, %v1789
    %v1792 = vlaneseq
    %v1793 = vshrl.u32 %v1792, 7
    %v1794 = vsub.s32 1, %v1793
    %v1795 = vrot.slane %v1593, %v1794
    %v1796 = vadd.f32 %v1790, %v1795
    %v1797 = vadd.f32 %v1791, %v1795
    %v1798 = vmax.f32 %v1796, 0.0
    %v1799 = vmax.f32 %v1797, 0.0
    %v1801 = vrot.slane %v1798, 1
    %v1803 = vmax.f32 %v1798, %v1801
    %v1805 = vrot.slane %v1799, 1
    %v1807 = vmax.f32 %v1799, %v1805
    %v1809 = vrot.slane %v1803, 1
    %v1811 = vrot.slane %v1803, 2
    %v1813 = vrot.slane %v1798, 3
    %v1816 = vrot.slane %v1807, 3
    %v1818 = vrot.slane %v1807, 4
    %v1820 = vrot.slane %v1807, 5
    %v1822 = vsel %vm430, %v1798, %v1803
    %v1823 = vsel %vm139, %v1822, %v1809
    %v1824 = vsel %vm69, %v1823, %v1811
    %v1825 = vsel %vm116, %v1824, %v1813
    %v1826 = vsel %vm104, %v1825, %v1816
    %v1827 = vsel %vm92, %v1826, %v1818
    %v1828 = vsel %vm80, %v1827, %v1820
    %v1829 = vld [vmem:[%s9] sm:$0xff]
    %v1831 = vsel %vm154, %v1829, 0
    %1833 = vmatprep.subr.mxu0 0.0
    %1834 = vmatpush1.msra.mxu0 %v1828
    %1835 = vmatprep.subr.mxu0 0.0
    %1836 = vmatpush1.msra.mxu0 0.0
    %1837 = vmatprep.subr.mxu0 0.0
    %1838 = vmatpush1.msra.mxu0 0.0
    %1839 = vmatprep.subr.mxu0 0.0
    %1840 = vmatpush1.msra.mxu0 0.0
    %1841 = vmatprep.subr.mxu0 0.0
    %1842 = vmatpush1.msra.mxu0 0.0
    %1843 = vmatprep.subr.mxu0 0.0
    %1844 = vmatpush1.msra.mxu0 0.0
    %1845 = vmatprep.subr.mxu0 0.0
    %1846 = vmatpush1.msra.mxu0 0.0
    %1847 = vmatprep.subr.mxu0 0.0
    %1848 = vmatpush1.msra.mxu0 0.0
    %1849 = vmatprep.subr.mxu0 0.0
    %1850 = vmatpush1.msra.mxu0 0.0
    %1851 = vmatprep.subr.mxu0 0.0
    %1852 = vmatpush1.msra.mxu0 0.0
    %1853 = vmatprep.subr.mxu0 0.0
    %1854 = vmatpush1.msra.mxu0 0.0
    %1855 = vmatprep.subr.mxu0 0.0
    %1856 = vmatpush1.msra.mxu0 0.0
    %1857 = vmatprep.subr.mxu0 0.0
    %1858 = vmatpush1.msra.mxu0 0.0
    %1859 = vmatprep.subr.mxu0 0.0
    %1860 = vmatpush1.msra.mxu0 0.0
    %1861 = vmatprep.subr.mxu0 0.0
    %1862 = vmatpush1.msra.mxu0 0.0
    %1863 = vmatprep.subr.mxu0 0.0
    %1864 = vmatpush1.msra.mxu0 0.0
    %1865 = vmatprep.subr.mxu0 0.0
    %1866 = vmatpush1.msra.mxu0 0.0
    %1867 = vmatprep.subr.mxu0 0.0
    %1868 = vmatpush1.msra.mxu0 0.0
    %1869 = vmatprep.subr.mxu0 0.0
    %1870 = vmatpush1.msra.mxu0 0.0
    %1871 = vmatprep.subr.mxu0 0.0
    %1872 = vmatpush1.msra.mxu0 0.0
    %1873 = vmatprep.subr.mxu0 0.0
    %1874 = vmatpush1.msra.mxu0 0.0
    %1875 = vmatprep.subr.mxu0 0.0
    %1876 = vmatpush1.msra.mxu0 0.0
    %1877 = vmatprep.subr.mxu0 0.0
    %1878 = vmatpush1.msra.mxu0 0.0
    %1879 = vmatprep.subr.mxu0 0.0
    %1880 = vmatpush1.msra.mxu0 0.0
    %1881 = vmatprep.subr.mxu0 0.0
    %1882 = vmatpush1.msra.mxu0 0.0
    %1883 = vmatprep.subr.mxu0 0.0
    %1884 = vmatpush1.msra.mxu0 0.0
    %1885 = vmatprep.subr.mxu0 0.0
    %1886 = vmatpush1.msra.mxu0 0.0
    %1887 = vmatprep.subr.mxu0 0.0
    %1888 = vmatpush1.msra.mxu0 0.0
    %1889 = vmatprep.subr.mxu0 0.0
    %1890 = vmatpush1.msra.mxu0 0.0
    %1891 = vmatprep.subr.mxu0 0.0
    %1892 = vmatpush1.msra.mxu0 0.0
    %1893 = vmatprep.subr.mxu0 0.0
    %1894 = vmatpush1.msra.mxu0 0.0
    %1895 = vmatprep.subr.mxu0 0.0
    %1896 = vmatpush1.msra.mxu0 0.0
    %1897 = vmatprep.mubr.f32.mxu0 0.0
    %1898 = vmatmul.mubr.f32.gmra.mrb[0].mxu0 %v1831
    %v1899 = vpop.f32.mrb[0].mxu0
    %v1900 = vadd.f32 0.0, %v1899
    %v1901 = vpop.f32.mrb[0].mxu0
    %1902 = vdwg.mxu0
    %v1903 = vld [vmem:[%s12] sm:$0xff]
    %v1904 = vld [vmem:[%s12 + $0x8] sm:$0xff]
    %v1905 = vld [vmem:[%s12 + $0x10] sm:$0xff]
    %v1906 = vld [vmem:[%s12 + $0x18] sm:$0xff]
    %s1907 = scalar_lea.vmem %s12, 32
    %v1908 = vld [vmem:[%s1907] sm:$0xff]
    %v1909 = vld [vmem:[%s1907 + $0x8] sm:$0xff]
    %v1910 = vld [vmem:[%s1907 + $0x10] sm:$0xff]
    %v1911 = vld [vmem:[%s1907 + $0x18] sm:$0xff]
    %v1913 = vrot.slane %v1900, 2
    %v1914 = vsel %vm930, %v1913, 0
    %1916 = vmatprep.subr.mxu0 0.0
    %1917 = vmatpush1.msra.mxu0 %v1908
    %1918 = vmatprep.subr.mxu0 0.0
    %1919 = vmatpush1.msra.mxu0 %v1909
    %1920 = vmatprep.subr.mxu0 0.0
    %1921 = vmatpush1.msra.mxu0 %v1910
    %1922 = vmatprep.subr.mxu0 0.0
    %1923 = vmatpush1.msra.mxu0 %v1911
    %1924 = vmatprep.subr.mxu0 0.0
    %1925 = vmatpush1.msra.mxu0 0.0
    %1926 = vmatprep.subr.mxu0 0.0
    %1927 = vmatpush1.msra.mxu0 0.0
    %1928 = vmatprep.subr.mxu0 0.0
    %1929 = vmatpush1.msra.mxu0 0.0
    %1930 = vmatprep.subr.mxu0 0.0
    %1931 = vmatpush1.msra.mxu0 0.0
    %1932 = vmatprep.subr.mxu0 0.0
    %1933 = vmatpush1.msra.mxu0 0.0
    %1934 = vmatprep.subr.mxu0 0.0
    %1935 = vmatpush1.msra.mxu0 0.0
    %1936 = vmatprep.subr.mxu0 0.0
    %1937 = vmatpush1.msra.mxu0 0.0
    %1938 = vmatprep.subr.mxu0 0.0
    %1939 = vmatpush1.msra.mxu0 0.0
    %1940 = vmatprep.subr.mxu0 0.0
    %1941 = vmatpush1.msra.mxu0 0.0
    %1942 = vmatprep.subr.mxu0 0.0
    %1943 = vmatpush1.msra.mxu0 0.0
    %1944 = vmatprep.subr.mxu0 0.0
    %1945 = vmatpush1.msra.mxu0 0.0
    %1946 = vmatprep.subr.mxu0 0.0
    %1947 = vmatpush1.msra.mxu0 0.0
    %1948 = vmatprep.subr.mxu0 0.0
    %1949 = vmatpush1.msra.mxu0 0.0
    %1950 = vmatprep.subr.mxu0 0.0
    %1951 = vmatpush1.msra.mxu0 0.0
    %1952 = vmatprep.subr.mxu0 0.0
    %1953 = vmatpush1.msra.mxu0 0.0
    %1954 = vmatprep.subr.mxu0 0.0
    %1955 = vmatpush1.msra.mxu0 0.0
    %1956 = vmatprep.subr.mxu0 0.0
    %1957 = vmatpush1.msra.mxu0 0.0
    %1958 = vmatprep.subr.mxu0 0.0
    %1959 = vmatpush1.msra.mxu0 0.0
    %1960 = vmatprep.subr.mxu0 0.0
    %1961 = vmatpush1.msra.mxu0 0.0
    %1962 = vmatprep.subr.mxu0 0.0
    %1963 = vmatpush1.msra.mxu0 0.0
    %1964 = vmatprep.subr.mxu0 0.0
    %1965 = vmatpush1.msra.mxu0 0.0
    %1966 = vmatprep.subr.mxu0 0.0
    %1967 = vmatpush1.msra.mxu0 0.0
    %1968 = vmatprep.subr.mxu0 0.0
    %1969 = vmatpush1.msra.mxu0 0.0
    %1970 = vmatprep.subr.mxu0 0.0
    %1971 = vmatpush1.msra.mxu0 0.0
    %1972 = vmatprep.subr.mxu0 0.0
    %1973 = vmatpush1.msra.mxu0 0.0
    %1974 = vmatprep.subr.mxu0 0.0
    %1975 = vmatpush1.msra.mxu0 0.0
    %1976 = vmatprep.subr.mxu0 0.0
    %1977 = vmatpush1.msra.mxu0 0.0
    %1978 = vmatprep.subr.mxu0 0.0
    %1979 = vmatpush1.msra.mxu0 0.0
    %1980 = vmatprep.mubr.f32.mxu0 0.0
    %1981 = vmatmul.mubr.f32.gmra.mrb[0].mxu0 %v1914
    %v1982 = vpop.f32.mrb[0].mxu0
    %v1983 = vadd.f32 0.0, %v1982
    %v1984 = vpop.f32.mrb[0].mxu0
    %1985 = vdwg.mxu0
    %v1986 = vsel %vm930, %v1900, 0
    %1988 = vmatprep.subr.mxu0 0.0
    %1989 = vmatpush1.msra.mxu0 %v1903
    %1990 = vmatprep.subr.mxu0 0.0
    %1991 = vmatpush1.msra.mxu0 %v1904
    %1992 = vmatprep.subr.mxu0 0.0
    %1993 = vmatpush1.msra.mxu0 %v1905
    %1994 = vmatprep.subr.mxu0 0.0
    %1995 = vmatpush1.msra.mxu0 %v1906
    %1996 = vmatprep.subr.mxu0 0.0
    %1997 = vmatpush1.msra.mxu0 0.0
    %1998 = vmatprep.subr.mxu0 0.0
    %1999 = vmatpush1.msra.mxu0 0.0
    %2000 = vmatprep.subr.mxu0 0.0
    %2001 = vmatpush1.msra.mxu0 0.0
    %2002 = vmatprep.subr.mxu0 0.0
    %2003 = vmatpush1.msra.mxu0 0.0
    %2004 = vmatprep.subr.mxu0 0.0
    %2005 = vmatpush1.msra.mxu0 0.0
    %2006 = vmatprep.subr.mxu0 0.0
    %2007 = vmatpush1.msra.mxu0 0.0
    %2008 = vmatprep.subr.mxu0 0.0
    %2009 = vmatpush1.msra.mxu0 0.0
    %2010 = vmatprep.subr.mxu0 0.0
    %2011 = vmatpush1.msra.mxu0 0.0
    %2012 = vmatprep.subr.mxu0 0.0
    %2013 = vmatpush1.msra.mxu0 0.0
    %2014 = vmatprep.subr.mxu0 0.0
    %2015 = vmatpush1.msra.mxu0 0.0
    %2016 = vmatprep.subr.mxu0 0.0
    %2017 = vmatpush1.msra.mxu0 0.0
    %2018 = vmatprep.subr.mxu0 0.0
    %2019 = vmatpush1.msra.mxu0 0.0
    %2020 = vmatprep.subr.mxu0 0.0
    %2021 = vmatpush1.msra.mxu0 0.0
    %2022 = vmatprep.subr.mxu0 0.0
    %2023 = vmatpush1.msra.mxu0 0.0
    %2024 = vmatprep.subr.mxu0 0.0
    %2025 = vmatpush1.msra.mxu0 0.0
    %2026 = vmatprep.subr.mxu0 0.0
    %2027 = vmatpush1.msra.mxu0 0.0
    %2028 = vmatprep.subr.mxu0 0.0
    %2029 = vmatpush1.msra.mxu0 0.0
    %2030 = vmatprep.subr.mxu0 0.0
    %2031 = vmatpush1.msra.mxu0 0.0
    %2032 = vmatprep.subr.mxu0 0.0
    %2033 = vmatpush1.msra.mxu0 0.0
    %2034 = vmatprep.subr.mxu0 0.0
    %2035 = vmatpush1.msra.mxu0 0.0
    %2036 = vmatprep.subr.mxu0 0.0
    %2037 = vmatpush1.msra.mxu0 0.0
    %2038 = vmatprep.subr.mxu0 0.0
    %2039 = vmatpush1.msra.mxu0 0.0
    %2040 = vmatprep.subr.mxu0 0.0
    %2041 = vmatpush1.msra.mxu0 0.0
    %2042 = vmatprep.subr.mxu0 0.0
    %2043 = vmatpush1.msra.mxu0 0.0
    %2044 = vmatprep.subr.mxu0 0.0
    %2045 = vmatpush1.msra.mxu0 0.0
    %2046 = vmatprep.subr.mxu0 0.0
    %2047 = vmatpush1.msra.mxu0 0.0
    %2048 = vmatprep.subr.mxu0 0.0
    %2049 = vmatpush1.msra.mxu0 0.0
    %2050 = vmatprep.subr.mxu0 0.0
    %2051 = vmatpush1.msra.mxu0 0.0
    %2052 = vmatprep.mubr.f32.mxu0 0.0
    %2053 = vmatmul.mubr.f32.gmra.mrb[0].mxu0 %v1986
    %v2054 = vpop.f32.mrb[0].mxu0
    %v2055 = vadd.f32 %v1983, %v2054
    %v2056 = vpop.f32.mrb[0].mxu0
    %2057 = vdwg.mxu0
    %s2058 = scalar_lea.vmem %s12, 64
    %v2059 = vld [vmem:[%s2058] sm:$0xff]
    %v2060 = vld [vmem:[%s2058 + $0x8] sm:$0xff]
    %v2061 = vld [vmem:[%s2058 + $0x10] sm:$0xff]
    %v2062 = vld [vmem:[%s2058 + $0x18] sm:$0xff]
    %v2063 = vrot.slane %v1900, 4
    %v2064 = vsel %vm930, %v2063, 0
    %2066 = vmatprep.subr.mxu0 0.0
    %2067 = vmatpush1.msra.mxu0 %v2059
    %2068 = vmatprep.subr.mxu0 0.0
    %2069 = vmatpush1.msra.mxu0 %v2060
    %2070 = vmatprep.subr.mxu0 0.0
    %2071 = vmatpush1.msra.mxu0 %v2061
    %2072 = vmatprep.subr.mxu0 0.0
    %2073 = vmatpush1.msra.mxu0 %v2062
    %2074 = vmatprep.subr.mxu0 0.0
    %2075 = vmatpush1.msra.mxu0 0.0
    %2076 = vmatprep.subr.mxu0 0.0
    %2077 = vmatpush1.msra.mxu0 0.0
    %2078 = vmatprep.subr.mxu0 0.0
    %2079 = vmatpush1.msra.mxu0 0.0
    %2080 = vmatprep.subr.mxu0 0.0
    %2081 = vmatpush1.msra.mxu0 0.0
    %2082 = vmatprep.subr.mxu0 0.0
    %2083 = vmatpush1.msra.mxu0 0.0
    %2084 = vmatprep.subr.mxu0 0.0
    %2085 = vmatpush1.msra.mxu0 0.0
    %2086 = vmatprep.subr.mxu0 0.0
    %2087 = vmatpush1.msra.mxu0 0.0
    %2088 = vmatprep.subr.mxu0 0.0
    %2089 = vmatpush1.msra.mxu0 0.0
    %2090 = vmatprep.subr.mxu0 0.0
    %2091 = vmatpush1.msra.mxu0 0.0
    %2092 = vmatprep.subr.mxu0 0.0
    %2093 = vmatpush1.msra.mxu0 0.0
    %2094 = vmatprep.subr.mxu0 0.0
    %2095 = vmatpush1.msra.mxu0 0.0
    %2096 = vmatprep.subr.mxu0 0.0
    %2097 = vmatpush1.msra.mxu0 0.0
    %2098 = vmatprep.subr.mxu0 0.0
    %2099 = vmatpush1.msra.mxu0 0.0
    %2100 = vmatprep.subr.mxu0 0.0
    %2101 = vmatpush1.msra.mxu0 0.0
    %2102 = vmatprep.subr.mxu0 0.0
    %2103 = vmatpush1.msra.mxu0 0.0
    %2104 = vmatprep.subr.mxu0 0.0
    %2105 = vmatpush1.msra.mxu0 0.0
    %2106 = vmatprep.subr.mxu0 0.0
    %2107 = vmatpush1.msra.mxu0 0.0
    %2108 = vmatprep.subr.mxu0 0.0
    %2109 = vmatpush1.msra.mxu0 0.0
    %2110 = vmatprep.subr.mxu0 0.0
    %2111 = vmatpush1.msra.mxu0 0.0
    %2112 = vmatprep.subr.mxu0 0.0
    %2113 = vmatpush1.msra.mxu0 0.0
    %2114 = vmatprep.subr.mxu0 0.0
    %2115 = vmatpush1.msra.mxu0 0.0
    %2116 = vmatprep.subr.mxu0 0.0
    %2117 = vmatpush1.msra.mxu0 0.0
    %2118 = vmatprep.subr.mxu0 0.0
    %2119 = vmatpush1.msra.mxu0 0.0
    %2120 = vmatprep.subr.mxu0 0.0
    %2121 = vmatpush1.msra.mxu0 0.0
    %2122 = vmatprep.subr.mxu0 0.0
    %2123 = vmatpush1.msra.mxu0 0.0
    %2124 = vmatprep.subr.mxu0 0.0
    %2125 = vmatpush1.msra.mxu0 0.0
    %2126 = vmatprep.subr.mxu0 0.0
    %2127 = vmatpush1.msra.mxu0 0.0
    %2128 = vmatprep.subr.mxu0 0.0
    %2129 = vmatpush1.msra.mxu0 0.0
    %2130 = vmatprep.mubr.f32.mxu0 0.0
    %2131 = vmatmul.mubr.f32.gmra.mrb[0].mxu0 %v2064
    %v2132 = vpop.f32.mrb[0].mxu0
    %v2133 = vadd.f32 0.0, %v2132
    %v2134 = vpop.f32.mrb[0].mxu0
    %2135 = vdwg.mxu0
    %v2136 = vadd.f32 %v2055, %v2133
    %s2137 = scalar_lea.vmem %s12, 96
    %v2138 = vld [vmem:[%s2137] sm:$0xff]
    %v2139 = vld [vmem:[%s2137 + $0x8] sm:$0xff]
    %v2140 = vld [vmem:[%s2137 + $0x10] sm:$0xff]
    %v2141 = vld [vmem:[%s2137 + $0x18] sm:$0xff]
    %v2142 = vrot.slane %v1900, 6
    %v2143 = vsel %vm930, %v2142, 0
    %2145 = vmatprep.subr.mxu0 0.0
    %2146 = vmatpush1.msra.mxu0 %v2138
    %2147 = vmatprep.subr.mxu0 0.0
    %2148 = vmatpush1.msra.mxu0 %v2139
    %2149 = vmatprep.subr.mxu0 0.0
    %2150 = vmatpush1.msra.mxu0 %v2140
    %2151 = vmatprep.subr.mxu0 0.0
    %2152 = vmatpush1.msra.mxu0 %v2141
    %2153 = vmatprep.subr.mxu0 0.0
    %2154 = vmatpush1.msra.mxu0 0.0
    %2155 = vmatprep.subr.mxu0 0.0
    %2156 = vmatpush1.msra.mxu0 0.0
    %2157 = vmatprep.subr.mxu0 0.0
    %2158 = vmatpush1.msra.mxu0 0.0
    %2159 = vmatprep.subr.mxu0 0.0
    %2160 = vmatpush1.msra.mxu0 0.0
    %2161 = vmatprep.subr.mxu0 0.0
    %2162 = vmatpush1.msra.mxu0 0.0
    %2163 = vmatprep.subr.mxu0 0.0
    %2164 = vmatpush1.msra.mxu0 0.0
    %2165 = vmatprep.subr.mxu0 0.0
    %2166 = vmatpush1.msra.mxu0 0.0
    %2167 = vmatprep.subr.mxu0 0.0
    %2168 = vmatpush1.msra.mxu0 0.0
    %2169 = vmatprep.subr.mxu0 0.0
    %2170 = vmatpush1.msra.mxu0 0.0
    %2171 = vmatprep.subr.mxu0 0.0
    %2172 = vmatpush1.msra.mxu0 0.0
    %2173 = vmatprep.subr.mxu0 0.0
    %2174 = vmatpush1.msra.mxu0 0.0
    %2175 = vmatprep.subr.mxu0 0.0
    %2176 = vmatpush1.msra.mxu0 0.0
    %2177 = vmatprep.subr.mxu0 0.0
    %2178 = vmatpush1.msra.mxu0 0.0
    %2179 = vmatprep.subr.mxu0 0.0
    %2180 = vmatpush1.msra.mxu0 0.0
    %2181 = vmatprep.subr.mxu0 0.0
    %2182 = vmatpush1.msra.mxu0 0.0
    %2183 = vmatprep.subr.mxu0 0.0
    %2184 = vmatpush1.msra.mxu0 0.0
    %2185 = vmatprep.subr.mxu0 0.0
    %2186 = vmatpush1.msra.mxu0 0.0
    %2187 = vmatprep.subr.mxu0 0.0
    %2188 = vmatpush1.msra.mxu0 0.0
    %2189 = vmatprep.subr.mxu0 0.0
    %2190 = vmatpush1.msra.mxu0 0.0
    %2191 = vmatprep.subr.mxu0 0.0
    %2192 = vmatpush1.msra.mxu0 0.0
    %2193 = vmatprep.subr.mxu0 0.0
    %2194 = vmatpush1.msra.mxu0 0.0
    %2195 = vmatprep.subr.mxu0 0.0
    %2196 = vmatpush1.msra.mxu0 0.0
    %2197 = vmatprep.subr.mxu0 0.0
    %2198 = vmatpush1.msra.mxu0 0.0
    %2199 = vmatprep.subr.mxu0 0.0
    %2200 = vmatpush1.msra.mxu0 0.0
    %2201 = vmatprep.subr.mxu0 0.0
    %2202 = vmatpush1.msra.mxu0 0.0
    %2203 = vmatprep.subr.mxu0 0.0
    %2204 = vmatpush1.msra.mxu0 0.0
    %2205 = vmatprep.subr.mxu0 0.0
    %2206 = vmatpush1.msra.mxu0 0.0
    %2207 = vmatprep.subr.mxu0 0.0
    %2208 = vmatpush1.msra.mxu0 0.0
    %2209 = vmatprep.mubr.f32.mxu0 0.0
    %2210 = vmatmul.mubr.f32.gmra.mrb[0].mxu0 %v2143
    %v2211 = vpop.f32.mrb[0].mxu0
    %v2212 = vadd.f32 0.0, %v2211
    %v2213 = vpop.f32.mrb[0].mxu0
    %2214 = vdwg.mxu0
    %v2215 = vadd.f32 %v2136, %v2212
    %2216 = vst [vmem:[#allocation7] sm:$0x3] %v2215
    %v2217 = vld [vmem:[%s13] sm:$0xff]
    %v2218 = vld [vmem:[%s13 + $0x8] sm:$0xff]
    %v2219 = vld [vmem:[%s13 + $0x10] sm:$0xff]
    %v2220 = vld [vmem:[%s13 + $0x18] sm:$0xff]
    %v2221 = vld [vmem:[%s13 + $0x20] sm:$0xff]
    %v2222 = vld [vmem:[%s13 + $0x28] sm:$0xff]
    %v2223 = vld [vmem:[%s13 + $0x30] sm:$0xff]
    %v2224 = vld [vmem:[%s13 + $0x38] sm:$0xff]
    %v2225 = vld [vmem:[%s13 + $0x40] sm:$0xff]
    %v2226 = vld [vmem:[%s13 + $0x48] sm:$0xff]
    %v2227 = vld [vmem:[%s13 + $0x50] sm:$0xff]
    %v2228 = vld [vmem:[%s13 + $0x58] sm:$0xff]
    %v2229 = vld [vmem:[%s13 + $0x60] sm:$0xff]
    %v2230 = vld [vmem:[%s13 + $0x68] sm:$0xff]
    %v2231 = vld [vmem:[%s13 + $0x70] sm:$0xff]
    %v2232 = vld [vmem:[%s13 + $0x78] sm:$0xff]
    %v2233 = vld [vmem:[%s14 + $0x2] sm:$0x1]
    %v2234 = vlaneseq
    %v2235 = vshrl.u32 %v2234, 7
    %v2236 = vsub.s32 0, %v2235
    %v2237 = vrot.slane %v2233, %v2236
    %2238 = vmatprep.subr.mxu0 0.0
    %2239 = vmatpush1.msra.mxu0 %v2217
    %2240 = vmatprep.subr.mxu0 0.0
    %2241 = vmatpush1.msra.mxu0 %v2218
    %2242 = vmatprep.subr.mxu0 0.0
    %2243 = vmatpush1.msra.mxu0 %v2219
    %2244 = vmatprep.subr.mxu0 0.0
    %2245 = vmatpush1.msra.mxu0 %v2220
    %2246 = vmatprep.subr.mxu0 0.0
    %2247 = vmatpush1.msra.mxu0 %v2221
    %2248 = vmatprep.subr.mxu0 0.0
    %2249 = vmatpush1.msra.mxu0 %v2222
    %2250 = vmatprep.subr.mxu0 0.0
    %2251 = vmatpush1.msra.mxu0 %v2223
    %2252 = vmatprep.subr.mxu0 0.0
    %2253 = vmatpush1.msra.mxu0 %v2224
    %2254 = vmatprep.subr.mxu0 0.0
    %2255 = vmatpush1.msra.mxu0 %v2225
    %2256 = vmatprep.subr.mxu0 0.0
    %2257 = vmatpush1.msra.mxu0 %v2226
    %2258 = vmatprep.subr.mxu0 0.0
    %2259 = vmatpush1.msra.mxu0 %v2227
    %2260 = vmatprep.subr.mxu0 0.0
    %2261 = vmatpush1.msra.mxu0 %v2228
    %2262 = vmatprep.subr.mxu0 0.0
    %2263 = vmatpush1.msra.mxu0 %v2229
    %2264 = vmatprep.subr.mxu0 0.0
    %2265 = vmatpush1.msra.mxu0 %v2230
    %2266 = vmatprep.subr.mxu0 0.0
    %2267 = vmatpush1.msra.mxu0 %v2231
    %2268 = vmatprep.subr.mxu0 0.0
    %2269 = vmatpush1.msra.mxu0 %v2232
    %2270 = vmatprep.subr.mxu0 0.0
    %2271 = vmatpush1.msra.mxu0 0.0
    %2272 = vmatprep.subr.mxu0 0.0
    %2273 = vmatpush1.msra.mxu0 0.0
    %2274 = vmatprep.subr.mxu0 0.0
    %2275 = vmatpush1.msra.mxu0 0.0
    %2276 = vmatprep.subr.mxu0 0.0
    %2277 = vmatpush1.msra.mxu0 0.0
    %2278 = vmatprep.subr.mxu0 0.0
    %2279 = vmatpush1.msra.mxu0 0.0
    %2280 = vmatprep.subr.mxu0 0.0
    %2281 = vmatpush1.msra.mxu0 0.0
    %2282 = vmatprep.subr.mxu0 0.0
    %2283 = vmatpush1.msra.mxu0 0.0
    %2284 = vmatprep.subr.mxu0 0.0
    %2285 = vmatpush1.msra.mxu0 0.0
    %2286 = vmatprep.subr.mxu0 0.0
    %2287 = vmatpush1.msra.mxu0 0.0
    %2288 = vmatprep.subr.mxu0 0.0
    %2289 = vmatpush1.msra.mxu0 0.0
    %2290 = vmatprep.subr.mxu0 0.0
    %2291 = vmatpush1.msra.mxu0 0.0
    %2292 = vmatprep.subr.mxu0 0.0
    %2293 = vmatpush1.msra.mxu0 0.0
    %2294 = vmatprep.subr.mxu0 0.0
    %2295 = vmatpush1.msra.mxu0 0.0
    %2296 = vmatprep.subr.mxu0 0.0
    %2297 = vmatpush1.msra.mxu0 0.0
    %2298 = vmatprep.subr.mxu0 0.0
    %2299 = vmatpush1.msra.mxu0 0.0
    %2300 = vmatprep.subr.mxu0 0.0
    %2301 = vmatpush1.msra.mxu0 0.0
    %2302 = vmatprep.mubr.f32.mxu0 0.0
    %2303 = vmatmul.mubr.f32.gmra.mrb[0].mxu0 %v2215
    %v2304 = vpop.f32.mrb[0].mxu0
    %v2305 = vadd.f32 %v2237, %v2304
    %v2306 = vpop.f32.mrb[0].mxu0
    %2307 = vdwg.mxu0
    %2308 = vst.msk [vmem:[#allocation6] sm:$0x3] %vm836, %v2305
    // Predicated region
    $region62: #{_lambda_.1} parent=1 // pred_check
      _
    $region63: #{_lambda_.1} parent=1 // pred_check_branch
      %2310 = sbr.rel (0) target = $region65
    $region64: #{_lambda_.1} parent=1 // pred_region
      %s2312 = ssub.s32 32, 32
      %2313 = vsyncadd [#allocation3], %s2312
      %s2315 = sshll.u32 [#allocation2], 4
      %s2316 = int_to_ptr.vmem [resolvable:$true] %s2315
      %2318 = dma.vmem_to_hbm [thread:$0]  %s2316, 32, %s15, [#allocation3]
    $region65: #{_lambda_.1} parent=1 // pred_fallthru
      _
    // Predicated region
    $region66: #{_lambda_.1} parent=1 // pred_check
      _
    $region67: #{_lambda_.1} parent=1 // pred_check_branch
      %2320 = sbr.rel (0) target = $region69
    $region68: #{_lambda_.1} parent=1 // pred_region
      %s2322 = ssub.s32 32, 32
      %2323 = vsyncadd [#allocation5], %s2322
      %s2325 = sshll.u32 [#allocation4], 4
      %s2326 = int_to_ptr.vmem [resolvable:$true] %s2325
      %2328 = dma.vmem_to_hbm [thread:$0]  %s2326, 32, %s16, [#allocation5]
    $region69: #{_lambda_.1} parent=1 // pred_fallthru
      _
    // Predicated region
    $region70: #{_lambda_.1} parent=1 // pred_check
      _
    $region71: #{_lambda_.1} parent=1 // pred_check_branch
      %2330 = sbr.rel (0) target = $region73
    $region72: #{_lambda_.1} parent=1 // pred_region
      %s2332 = ssub.s32 32, 32
      %2333 = vsyncadd [#allocation5], %s2332
      %s2335 = sshll.u32 [#allocation6], 4
      %s2336 = int_to_ptr.vmem [resolvable:$true] %s2335
      %2338 = dma.vmem_to_hbm [thread:$0]  %s2336, 32, %s17, [#allocation5]
    $region73: #{_lambda_.1} parent=1 // pred_fallthru
      _
    // Predicated region
    $region74: #{_lambda_.1} parent=1 // pred_check
      _
    $region75: #{_lambda_.1} parent=1 // pred_check_branch
      %2340 = sbr.rel (0) target = $region77
    $region76: #{_lambda_.1} parent=1 // pred_region
      %s2342 = ssub.s32 32, 32
      %2343 = vsyncadd [#allocation8], %s2342
      %s2345 = sshll.u32 [#allocation7], 4
      %s2346 = int_to_ptr.vmem [resolvable:$true] %s2345
      %2348 = dma.vmem_to_hbm [thread:$0]  %s2346, 32, %s18, [#allocation8]
    $region77: #{_lambda_.1} parent=1 // pred_fallthru
      _
    // Predicated region
    $region78: #{_lambda_.1} parent=1 // pred_check
      _
    $region79: #{_lambda_.1} parent=1 // pred_check_branch
      %2350 = sbr.rel (0) target = $region81
    $region80: #{_lambda_.1} parent=1 // pred_region
      %2351 = dma.done [#allocation3], 32
    $region81: #{_lambda_.1} parent=1 // pred_fallthru
      _
    // Predicated region
    $region82: #{_lambda_.1} parent=1 // pred_check
      _
    $region83: #{_lambda_.1} parent=1 // pred_check_branch
      %2353 = sbr.rel (0) target = $region85
    $region84: #{_lambda_.1} parent=1 // pred_region
      %2354 = dma.done [#allocation5], 32
    $region85: #{_lambda_.1} parent=1 // pred_fallthru
      _
    // Predicated region
    $region86: #{_lambda_.1} parent=1 // pred_check
      _
    $region87: #{_lambda_.1} parent=1 // pred_check_branch
      %2356 = sbr.rel (0) target = $region89
    $region88: #{_lambda_.1} parent=1 // pred_region
      %2357 = dma.done [#allocation5], 32
    $region89: #{_lambda_.1} parent=1 // pred_fallthru
      _
    // Predicated region
    $region90: #{_lambda_.1} parent=1 // pred_check
      _
    $region91: #{_lambda_.1} parent=1 // pred_check_branch
      %2359 = sbr.rel (0) target = $region93
    $region92: #{_lambda_.1} parent=1 // pred_region
      %2360 = dma.done [#allocation8], 32
    $region93: #{_lambda_.1} parent=1 // pred_fallthru
      _
    %2361 = vsyncpa [#allocation3], 1
    %2362 = vsyncpa [#allocation5], 1
    %2363 = vsyncpa [#allocation8], 1

</llo_original>
